<compile_context>
chip_gen: v6e
topology: v6e:2x2x1
jax: 0.10.0
libtpu: 0.0.40
codegen_flags: <defaults>
</compile_context>

<pallas_src>
import functools
import numpy as np

import jax
import jax.numpy as jnp
from jax.experimental import pallas as pl
from jax.experimental.pallas import tpu as pltpu


# ----------------------------------------------------------------------------
# Position encoding table (matches get_position_encoding_table in the PyTorch src)
# ----------------------------------------------------------------------------
def get_position_encoding_table(max_sequence_size: int, d_hidden: int) -> jnp.ndarray:
    pos = np.arange(max_sequence_size, dtype=np.float64)[:, None]
    i = np.arange(d_hidden, dtype=np.float64)[None, :]
    angle = pos / np.power(10000.0, 2.0 * (i // 2) / d_hidden)
    table = angle.astype(np.float32)
    table[:, 0::2] = np.sin(table[:, 0::2])
    table[:, 1::2] = np.cos(table[:, 1::2])
    return jnp.asarray(table, dtype=jnp.float32)


# ----------------------------------------------------------------------------
# Fused BERT kernel: grid = (batch_block, layer).  The output block (Bblk, S, D)
# is the per-batch-block activation carried across the layer axis.
# ----------------------------------------------------------------------------
def bert_layers_kernel(n_heads, eps,
                       emb_ref, mask_ref,
                       wq_ref, bq_ref, wk_ref, bk_ref, wv_ref, bv_ref,
                       wo_ref, bo_ref,
                       ln1_g_ref, ln1_b_ref,
                       w1_ref, b1_ref, w2_ref, b2_ref,
                       ln2_g_ref, ln2_b_ref,
                       out_ref):
    layer = pl.program_id(1)

    # Layer 0: seed the layer-carried activation with the fused embedding block.
    @pl.when(layer == 0)
    def _():
        out_ref[...] = emb_ref[...]

    x3 = out_ref[...]                              # (Bblk, S, D) f32, resident in VMEM
    Bb, S, D = x3.shape
    hd = D // n_heads
    inv_scale = jnp.float32(1.0 / (float(hd) ** 0.5))
    inv_sqrt2 = jnp.float32(1.0 / np.sqrt(2.0))

    add_mask = mask_ref[...]                       # (Bblk, 1, S): 0 / -1e9 key mask

    x = x3.reshape(Bb * S, D)                      # flatten leading dims (no relayout)
    x_bf = x.astype(jnp.bfloat16)

    def pdot(a_bf, w_bf):                          # bf16 MXU dot, f32 accumulate
        return jnp.dot(a_bf, w_bf, preferred_element_type=jnp.float32)

    # --- Multi-head self-attention: head-split weights, concat-free epilogue ---
    attn = None
    for h in range(n_heads):                       # static unroll; H is small
        qh = (pdot(x_bf, wq_ref[0, h]) + bq_ref[0, h]) * inv_scale   # (Bb*S, hd)
        kh = pdot(x_bf, wk_ref[0, h]) + bk_ref[0, h]
        vh = pdot(x_bf, wv_ref[0, h]) + bv_ref[0, h]
        q3 = qh.reshape(Bb, S, hd).astype(jnp.bfloat16)
        k3 = kh.reshape(Bb, S, hd).astype(jnp.bfloat16)
        v3 = vh.reshape(Bb, S, hd).astype(jnp.bfloat16)
        s = jnp.einsum('bqe,bke->bqk', q3, k3,
                       preferred_element_type=jnp.float32)           # (Bb, S, S)
        s = s + add_mask                                             # key-padding mask
        m = jnp.max(s, axis=-1, keepdims=True)                       # f32 softmax
        p = jnp.exp(s - m)
        p = p / jnp.sum(p, axis=-1, keepdims=True)                   # exact divide
        ctx = jnp.einsum('bqk,bke->bqe', p.astype(jnp.bfloat16), v3,
                         preferred_element_type=jnp.float32)         # (Bb, S, hd)
        part = pdot(ctx.reshape(Bb * S, hd).astype(jnp.bfloat16),
                    wo_ref[0, h])                                    # (Bb*S, D)
        attn = part if attn is None else attn + part                 # Σ_h ctx_h @ wo_h
    attn = attn + bo_ref[0]

    def layer_norm(a, g, b):                       # f32 statistics (biased variance)
        mu = jnp.mean(a, axis=-1, keepdims=True)
        var = jnp.mean((a - mu) ** 2, axis=-1, keepdims=True)
        return (a - mu) * jax.lax.rsqrt(var + eps) * g + b

    h1 = layer_norm(x + attn, ln1_g_ref[0], ln1_b_ref[0])

    # --- Position-wise feed-forward (exact erf GELU = F.gelu default) ---------
    ff = pdot(h1.astype(jnp.bfloat16), w1_ref[0]) + b1_ref[0]        # (Bb*S, F)
    ff = 0.5 * ff * (1.0 + jax.lax.erf(ff * inv_sqrt2))
    ff = pdot(ff.astype(jnp.bfloat16), w2_ref[0]) + b2_ref[0]        # (Bb*S, D)

    out_ref[...] = layer_norm(h1 + ff, ln2_g_ref[0], ln2_b_ref[0]).reshape(Bb, S, D)


# ----------------------------------------------------------------------------
# Parameter init (deterministic, synthetic).  QKV / output-projection weights are
# stored head-split so the kernel never lane-slices a (D, D) projection.
# ----------------------------------------------------------------------------
_LAYER_PARAM_NAMES = ('wq', 'bq', 'wk', 'bk', 'wv', 'bv', 'wo', 'bo',
                      'ln1_g', 'ln1_b', 'w1', 'b1', 'w2', 'b2', 'ln2_g', 'ln2_b')


def init_bert_params(key, vocab_size, d_hidden, n_heads, ff_dim, n_layers, max_seq_len):
    keys = jax.random.split(key, 16)
    s = 0.02
    L, D, F, H = n_layers, d_hidden, ff_dim, n_heads
    hd = D // H

    def w(k, shape):      # matmul weights stored bf16 (half the HBM traffic / VMEM)
        return (jax.random.normal(k, shape, jnp.float32) * s).astype(jnp.bfloat16)

    def b(k, shape):      # biases / LN params stay f32
        return jax.random.normal(k, shape, jnp.float32) * s

    return {
        'tok_emb': jax.random.normal(keys[0], (vocab_size, D), jnp.float32) * s,
        'seg_emb': jax.random.normal(keys[1], (2, D), jnp.float32) * s,
        'pos_emb': get_position_encoding_table(max_seq_len, D),
        # head-split projections: (L, H, D, hd) for q/k/v, (L, H, hd, D) for the output
        'wq': w(keys[2], (L, H, D, hd)), 'bq': b(keys[3], (L, H, 1, hd)),
        'wk': w(keys[4], (L, H, D, hd)), 'bk': b(keys[5], (L, H, 1, hd)),
        'wv': w(keys[6], (L, H, D, hd)), 'bv': b(keys[7], (L, H, 1, hd)),
        'wo': w(keys[8], (L, H, hd, D)), 'bo': b(keys[9], (L, 1, D)),
        'ln1_g': jnp.ones((L, 1, D), jnp.float32),
        'ln1_b': jnp.zeros((L, 1, D), jnp.float32),
        'w1': w(keys[10], (L, D, F)), 'b1': b(keys[11], (L, 1, F)),
        'w2': w(keys[12], (L, F, D)), 'b2': b(keys[13], (L, 1, D)),
        'ln2_g': jnp.ones((L, 1, D), jnp.float32),
        'ln2_b': jnp.zeros((L, 1, D), jnp.float32),
    }


# ----------------------------------------------------------------------------
# Full BERT forward: one pallas_call over grid = (B // Bblk, L)
# ----------------------------------------------------------------------------
def bert_forward(params, enc_inputs, segment_tensor, n_heads, padding_id,
                 eps=1e-12, block_b=None):
    B, S = enc_inputs.shape
    D = params['tok_emb'].shape[1]
    L = params['w1'].shape[0]

    # Batch block: amortizes weight streaming.  (On v7x pick block_b so that
    # B // block_b >= 2 to use both TensorCores; irrelevant at this toy size.)
    if block_b is None:
        block_b = B
    assert B % block_b == 0
    nb = B // block_b

    # Embedding gathers + tok/seg/pos add fused in XLA (irregular gather, free add).
    emb = (jnp.take(params['tok_emb'], enc_inputs, axis=0)
           + jnp.take(params['seg_emb'], segment_tensor, axis=0)
           + params['pos_emb'][:S][None, :, :]).astype(jnp.float32)      # (B, S, D)

    # Additive key-padding mask, (B, 1, S): -1e9 at pad positions, 0 otherwise.
    neg_mask = jnp.where(enc_inputs == padding_id, jnp.float32(-1e9),
                         jnp.float32(0.0)).reshape(B, 1, S)

    layer_args = [params[n] for n in _LAYER_PARAM_NAMES]

    def batch_spec(shape):
        nz = len(shape) - 1
        return pl.BlockSpec((block_b,) + shape[1:],
                            lambda b, l, nz=nz: (b,) + (0,) * nz)

    def layer_spec(a):
        nz = a.ndim - 1
        return pl.BlockSpec((1,) + a.shape[1:],
                            lambda b, l, nz=nz: (l,) + (0,) * nz)

    in_specs = ([batch_spec(emb.shape), batch_spec(neg_mask.shape)]
                + [layer_spec(a) for a in layer_args])

    # Explicit scoped-VMEM budget: double-buffered per-layer weights + activation
    # blocks, with 2x headroom, clamped to [32 MiB, 64 MiB] (safe on v5e/v6e/v7x).
    per_layer_w = sum(a.size * a.dtype.itemsize // L for a in layer_args)
    act_bytes = block_b * S * D * 4
    est = 2 * per_layer_w + 3 * act_bytes + 2 * block_b * S * 4 + (1 << 20)
    vmem_limit = int(min(64 * 2**20, max(32 * 2**20, 2 * est)))

    kernel = functools.partial(bert_layers_kernel, n_heads, eps)

    return pl.pallas_call(
        kernel,
        out_shape=jax.ShapeDtypeStruct((B, S, D), jnp.float32),
        grid=(nb, L),
        in_specs=in_specs,
        out_specs=pl.BlockSpec((block_b, S, D), lambda b, l: (b, 0, 0)),
        compiler_params=pltpu.CompilerParams(
            dimension_semantics=("parallel", "arbitrary"),
            vmem_limit_bytes=vmem_limit),
    )(emb, neg_mask, *layer_args)


if __name__ == "__main__":
    vocab_size = 50
    d_hidden = 32
    n_heads = 4
    ff_dim = 64
    n_layers = 2
    max_seq_len = 8
    padding_id = 0
    B, S = 2, 8

    key = jax.random.PRNGKey(0)
    pkey, ikey, skey = jax.random.split(key, 3)

    params = init_bert_params(pkey, vocab_size, d_hidden, n_heads, ff_dim,
                              n_layers, max_seq_len)

    enc_inputs = jax.random.randint(ikey, (B, S), 1, vocab_size, dtype=jnp.int32)
    enc_inputs = enc_inputs.at[:, -2:].set(padding_id)   # deterministic padding tail
    segment_tensor = jax.random.randint(skey, (B, S), 0, 2, dtype=jnp.int32)

    out = bert_forward(params, enc_inputs, segment_tensor, n_heads, padding_id)
    out = jax.block_until_ready(out)
    assert out.shape == (B, S, d_hidden) and out.dtype == jnp.float32
    print("KERNEL_OK")
</pallas_src>

<mosaic_0001>
module attributes {stable_mosaic.version = 11 : i64} {
  func.func @bert_layers_kernel(%arg0: i32, %arg1: i32, %arg2: memref<2x8x32xf32, #tpu.memory_space<vmem>>, %arg3: memref<2x1x8xf32, #tpu.memory_space<vmem>>, %arg4: memref<1x4x32x8xbf16, #tpu.memory_space<vmem>>, %arg5: memref<1x4x1x8xf32, #tpu.memory_space<vmem>>, %arg6: memref<1x4x32x8xbf16, #tpu.memory_space<vmem>>, %arg7: memref<1x4x1x8xf32, #tpu.memory_space<vmem>>, %arg8: memref<1x4x32x8xbf16, #tpu.memory_space<vmem>>, %arg9: memref<1x4x1x8xf32, #tpu.memory_space<vmem>>, %arg10: memref<1x4x8x32xbf16, #tpu.memory_space<vmem>>, %arg11: memref<1x1x32xf32, #tpu.memory_space<vmem>>, %arg12: memref<1x1x32xf32, #tpu.memory_space<vmem>>, %arg13: memref<1x1x32xf32, #tpu.memory_space<vmem>>, %arg14: memref<1x32x64xbf16, #tpu.memory_space<vmem>>, %arg15: memref<1x1x64xf32, #tpu.memory_space<vmem>>, %arg16: memref<1x64x32xbf16, #tpu.memory_space<vmem>>, %arg17: memref<1x1x32xf32, #tpu.memory_space<vmem>>, %arg18: memref<1x1x32xf32, #tpu.memory_space<vmem>>, %arg19: memref<1x1x32xf32, #tpu.memory_space<vmem>>, %arg20: memref<2x8x32xf32, #tpu.memory_space<vmem>>) attributes {dimension_semantics = [#tpu.dimension_semantics<parallel>, #tpu.dimension_semantics<arbitrary>], iteration_bounds = array<i64: 1, 2>, scalar_prefetch = 0 : i64, scratch_operands = 0 : i64, tpu.core_type = #tpu.core_type<tc>, window_params = [{transform_indices = @transform_0, window_bounds = array<i64: 2, 8, 32>}, {transform_indices = @transform_1, window_bounds = array<i64: 2, 1, 8>}, {transform_indices = @transform_2, window_bounds = array<i64: 1, 4, 32, 8>}, {transform_indices = @transform_3, window_bounds = array<i64: 1, 4, 1, 8>}, {transform_indices = @transform_4, window_bounds = array<i64: 1, 4, 32, 8>}, {transform_indices = @transform_5, window_bounds = array<i64: 1, 4, 1, 8>}, {transform_indices = @transform_6, window_bounds = array<i64: 1, 4, 32, 8>}, {transform_indices = @transform_7, window_bounds = array<i64: 1, 4, 1, 8>}, {transform_indices = @transform_8, window_bounds = array<i64: 1, 4, 8, 32>}, {transform_indices = @transform_9, window_bounds = array<i64: 1, 1, 32>}, {transform_indices = @transform_10, window_bounds = array<i64: 1, 1, 32>}, {transform_indices = @transform_11, window_bounds = array<i64: 1, 1, 32>}, {transform_indices = @transform_12, window_bounds = array<i64: 1, 32, 64>}, {transform_indices = @transform_13, window_bounds = array<i64: 1, 1, 64>}, {transform_indices = @transform_14, window_bounds = array<i64: 1, 64, 32>}, {transform_indices = @transform_15, window_bounds = array<i64: 1, 1, 32>}, {transform_indices = @transform_16, window_bounds = array<i64: 1, 1, 32>}, {transform_indices = @transform_17, window_bounds = array<i64: 1, 1, 32>}, {transform_indices = @transform_18, window_bounds = array<i64: 2, 8, 32>}]} {
    %c0_i32 = arith.constant 0 : i32
    %0 = arith.cmpi eq, %arg1, %c0_i32 : i32
    %1 = arith.extui %0 : i1 to i32
    %c0_i32_0 = arith.constant 0 : i32
    %2 = arith.cmpi ne, %1, %c0_i32_0 : i32
    scf.if %2 {
      %c0_195 = arith.constant 0 : index
      %c0_196 = arith.constant 0 : index
      %c0_197 = arith.constant 0 : index
      %286 = vector.load %arg2[%c0_195, %c0_196, %c0_197] : memref<2x8x32xf32, #tpu.memory_space<vmem>>, vector<2x8x32xf32>
      %c0_198 = arith.constant 0 : index
      %c0_199 = arith.constant 0 : index
      %c0_200 = arith.constant 0 : index
      %287 = vector.load %arg20[%c0_198, %c0_199, %c0_200] : memref<2x8x32xf32, #tpu.memory_space<vmem>>, vector<2x8x32xf32>
      tpu.vector_store %arg20[%c0_198, %c0_199, %c0_200], %286 {strides = array<i32>} : memref<2x8x32xf32, #tpu.memory_space<vmem>>, vector<2x8x32xf32>,
    } else {
    }
    %c0 = arith.constant 0 : index
    %c0_1 = arith.constant 0 : index
    %c0_2 = arith.constant 0 : index
    %3 = vector.load %arg20[%c0, %c0_1, %c0_2] : memref<2x8x32xf32, #tpu.memory_space<vmem>>, vector<2x8x32xf32>
    %c0_3 = arith.constant 0 : index
    %c0_4 = arith.constant 0 : index
    %c0_5 = arith.constant 0 : index
    %4 = vector.load %arg3[%c0_3, %c0_4, %c0_5] : memref<2x1x8xf32, #tpu.memory_space<vmem>>, vector<2x1x8xf32>
    %5 = vector.shape_cast %3 : vector<2x8x32xf32> to vector<16x32xf32>
    %6 = arith.truncf %5 : vector<16x32xf32> to vector<16x32xbf16>
    %c0_6 = arith.constant 0 : index
    %c0_7 = arith.constant 0 : index
    %c0_8 = arith.constant 0 : index
    %c0_9 = arith.constant 0 : index
    %7 = vector.load %arg4[%c0_6, %c0_7, %c0_8, %c0_9] : memref<1x4x32x8xbf16, #tpu.memory_space<vmem>>, vector<1x1x32x8xbf16>
    %8 = vector.shape_cast %7 : vector<1x1x32x8xbf16> to vector<32x8xbf16>
    %cst = arith.constant dense<0.000000e+00> : vector<16x8xf32>
    %9 = tpu.matmul %6, %8, %cst {dimension_numbers = #tpu.dot_dimension_numbers<[1], [0], [0], [1], [0, 0, 1, 1], [], []>} : vector<16x32xbf16>, vector<32x8xbf16>, vector<16x8xf32> -> vector<16x8xf32>
    %c0_10 = arith.constant 0 : index
    %c0_11 = arith.constant 0 : index
    %c0_12 = arith.constant 0 : index
    %c0_13 = arith.constant 0 : index
    %10 = vector.load %arg5[%c0_10, %c0_11, %c0_12, %c0_13] : memref<1x4x1x8xf32, #tpu.memory_space<vmem>>, vector<1x1x1x8xf32>
    %11 = vector.shape_cast %10 : vector<1x1x1x8xf32> to vector<1x8xf32>
    %12 = vector.broadcast %11 : vector<1x8xf32> to vector<16x8xf32>
    %13 = arith.addf %9, %12 : vector<16x8xf32>
    %cst_14 = arith.constant 0.353553385 : f32
    %14 = vector.broadcast %cst_14 : f32 to vector<16x8xf32>
    %15 = arith.mulf %13, %14 : vector<16x8xf32>
    %c0_15 = arith.constant 0 : index
    %c0_16 = arith.constant 0 : index
    %c0_17 = arith.constant 0 : index
    %c0_18 = arith.constant 0 : index
    %16 = vector.load %arg6[%c0_15, %c0_16, %c0_17, %c0_18] : memref<1x4x32x8xbf16, #tpu.memory_space<vmem>>, vector<1x1x32x8xbf16>
    %17 = vector.shape_cast %16 : vector<1x1x32x8xbf16> to vector<32x8xbf16>
    %cst_19 = arith.constant dense<0.000000e+00> : vector<16x8xf32>
    %18 = tpu.matmul %6, %17, %cst_19 {dimension_numbers = #tpu.dot_dimension_numbers<[1], [0], [0], [1], [0, 0, 1, 1], [], []>} : vector<16x32xbf16>, vector<32x8xbf16>, vector<16x8xf32> -> vector<16x8xf32>
    %c0_20 = arith.constant 0 : index
    %c0_21 = arith.constant 0 : index
    %c0_22 = arith.constant 0 : index
    %c0_23 = arith.constant 0 : index
    %19 = vector.load %arg7[%c0_20, %c0_21, %c0_22, %c0_23] : memref<1x4x1x8xf32, #tpu.memory_space<vmem>>, vector<1x1x1x8xf32>
    %20 = vector.shape_cast %19 : vector<1x1x1x8xf32> to vector<1x8xf32>
    %21 = vector.broadcast %20 : vector<1x8xf32> to vector<16x8xf32>
    %22 = arith.addf %18, %21 : vector<16x8xf32>
    %c0_24 = arith.constant 0 : index
    %c0_25 = arith.constant 0 : index
    %c0_26 = arith.constant 0 : index
    %c0_27 = arith.constant 0 : index
    %23 = vector.load %arg8[%c0_24, %c0_25, %c0_26, %c0_27] : memref<1x4x32x8xbf16, #tpu.memory_space<vmem>>, vector<1x1x32x8xbf16>
    %24 = vector.shape_cast %23 : vector<1x1x32x8xbf16> to vector<32x8xbf16>
    %cst_28 = arith.constant dense<0.000000e+00> : vector<16x8xf32>
    %25 = tpu.matmul %6, %24, %cst_28 {dimension_numbers = #tpu.dot_dimension_numbers<[1], [0], [0], [1], [0, 0, 1, 1], [], []>} : vector<16x32xbf16>, vector<32x8xbf16>, vector<16x8xf32> -> vector<16x8xf32>
    %c0_29 = arith.constant 0 : index
    %c0_30 = arith.constant 0 : index
    %c0_31 = arith.constant 0 : index
    %c0_32 = arith.constant 0 : index
    %26 = vector.load %arg9[%c0_29, %c0_30, %c0_31, %c0_32] : memref<1x4x1x8xf32, #tpu.memory_space<vmem>>, vector<1x1x1x8xf32>
    %27 = vector.shape_cast %26 : vector<1x1x1x8xf32> to vector<1x8xf32>
    %28 = vector.broadcast %27 : vector<1x8xf32> to vector<16x8xf32>
    %29 = arith.addf %25, %28 : vector<16x8xf32>
    %30 = vector.shape_cast %15 : vector<16x8xf32> to vector<2x8x8xf32>
    %31 = arith.truncf %30 : vector<2x8x8xf32> to vector<2x8x8xbf16>
    %32 = vector.shape_cast %22 : vector<16x8xf32> to vector<2x8x8xf32>
    %33 = arith.truncf %32 : vector<2x8x8xf32> to vector<2x8x8xbf16>
    %34 = vector.shape_cast %29 : vector<16x8xf32> to vector<2x8x8xf32>
    %35 = arith.truncf %34 : vector<2x8x8xf32> to vector<2x8x8xbf16>
    "tpu.trace_start"() <{level = 10 : i32, message = "bqe,bke->bqk"}> : () -> ()
    %cst_33 = arith.constant dense<0.000000e+00> : vector<2x8x8xf32>
    %36 = tpu.matmul %31, %33, %cst_33 {dimension_numbers = #tpu.dot_dimension_numbers<[2], [2], [1], [1], [0, 0, 0, 1, 1, 1], [0], [0]>} : vector<2x8x8xbf16>, vector<2x8x8xbf16>, vector<2x8x8xf32> -> vector<2x8x8xf32>
    "tpu.trace_stop"() : () -> ()
    %37 = vector.broadcast %4 : vector<2x1x8xf32> to vector<2x8x8xf32>
    %38 = arith.addf %36, %37 : vector<2x8x8xf32>
    %cst_34 = arith.constant dense<0xFF800000> : vector<2x8xf32>
    %39 = vector.multi_reduction <maximumf>, %38, %cst_34 [2] : vector<2x8x8xf32> to vector<2x8xf32>
    %40 = vector.shape_cast %39 : vector<2x8xf32> to vector<2x8x1xf32>
    %41 = vector.broadcast %40 : vector<2x8x1xf32> to vector<2x8x8xf32>
    %42 = arith.subf %38, %41 : vector<2x8x8xf32>
    %43 = math.exp %42 : vector<2x8x8xf32>
    %cst_35 = arith.constant dense<0.000000e+00> : vector<2x8xf32>
    %44 = vector.multi_reduction <add>, %43, %cst_35 [2] : vector<2x8x8xf32> to vector<2x8xf32>
    %45 = vector.shape_cast %44 : vector<2x8xf32> to vector<2x8x1xf32>
    %46 = vector.broadcast %45 : vector<2x8x1xf32> to vector<2x8x8xf32>
    %47 = arith.divf %43, %46 : vector<2x8x8xf32>
    %48 = arith.truncf %47 : vector<2x8x8xf32> to vector<2x8x8xbf16>
    "tpu.trace_start"() <{level = 10 : i32, message = "bqk,bke->bqe"}> : () -> ()
    %cst_36 = arith.constant dense<0.000000e+00> : vector<2x8x8xf32>
    %49 = tpu.matmul %48, %35, %cst_36 {dimension_numbers = #tpu.dot_dimension_numbers<[2], [1], [1], [2], [0, 0, 0, 1, 1, 2], [0], [0]>} : vector<2x8x8xbf16>, vector<2x8x8xbf16>, vector<2x8x8xf32> -> vector<2x8x8xf32>
    "tpu.trace_stop"() : () -> ()
    %50 = vector.shape_cast %49 : vector<2x8x8xf32> to vector<16x8xf32>
    %51 = arith.truncf %50 : vector<16x8xf32> to vector<16x8xbf16>
    %c0_37 = arith.constant 0 : index
    %c0_38 = arith.constant 0 : index
    %c0_39 = arith.constant 0 : index
    %c0_40 = arith.constant 0 : index
    %52 = vector.load %arg10[%c0_37, %c0_38, %c0_39, %c0_40] : memref<1x4x8x32xbf16, #tpu.memory_space<vmem>>, vector<1x1x8x32xbf16>
    %53 = vector.shape_cast %52 : vector<1x1x8x32xbf16> to vector<8x32xbf16>
    %cst_41 = arith.constant dense<0.000000e+00> : vector<16x32xf32>
    %54 = tpu.matmul %51, %53, %cst_41 {dimension_numbers = #tpu.dot_dimension_numbers<[1], [0], [0], [1], [0, 0, 1, 1], [], []>} : vector<16x8xbf16>, vector<8x32xbf16>, vector<16x32xf32> -> vector<16x32xf32>
    %c0_42 = arith.constant 0 : index
    %c1 = arith.constant 1 : index
    %c0_43 = arith.constant 0 : index
    %c0_44 = arith.constant 0 : index
    %55 = vector.load %arg4[%c0_42, %c1, %c0_43, %c0_44] : memref<1x4x32x8xbf16, #tpu.memory_space<vmem>>, vector<1x1x32x8xbf16>
    %56 = vector.shape_cast %55 : vector<1x1x32x8xbf16> to vector<32x8xbf16>
    %cst_45 = arith.constant dense<0.000000e+00> : vector<16x8xf32>
    %57 = tpu.matmul %6, %56, %cst_45 {dimension_numbers = #tpu.dot_dimension_numbers<[1], [0], [0], [1], [0, 0, 1, 1], [], []>} : vector<16x32xbf16>, vector<32x8xbf16>, vector<16x8xf32> -> vector<16x8xf32>
    %c0_46 = arith.constant 0 : index
    %c1_47 = arith.constant 1 : index
    %c0_48 = arith.constant 0 : index
    %c0_49 = arith.constant 0 : index
    %58 = vector.load %arg5[%c0_46, %c1_47, %c0_48, %c0_49] : memref<1x4x1x8xf32, #tpu.memory_space<vmem>>, vector<1x1x1x8xf32>
    %59 = vector.shape_cast %58 : vector<1x1x1x8xf32> to vector<1x8xf32>
    %60 = vector.broadcast %59 : vector<1x8xf32> to vector<16x8xf32>
    %61 = arith.addf %57, %60 : vector<16x8xf32>
    %cst_50 = arith.constant 0.353553385 : f32
    %62 = vector.broadcast %cst_50 : f32 to vector<16x8xf32>
    %63 = arith.mulf %61, %62 : vector<16x8xf32>
    %c0_51 = arith.constant 0 : index
    %c1_52 = arith.constant 1 : index
    %c0_53 = arith.constant 0 : index
    %c0_54 = arith.constant 0 : index
    %64 = vector.load %arg6[%c0_51, %c1_52, %c0_53, %c0_54] : memref<1x4x32x8xbf16, #tpu.memory_space<vmem>>, vector<1x1x32x8xbf16>
    %65 = vector.shape_cast %64 : vector<1x1x32x8xbf16> to vector<32x8xbf16>
    %cst_55 = arith.constant dense<0.000000e+00> : vector<16x8xf32>
    %66 = tpu.matmul %6, %65, %cst_55 {dimension_numbers = #tpu.dot_dimension_numbers<[1], [0], [0], [1], [0, 0, 1, 1], [], []>} : vector<16x32xbf16>, vector<32x8xbf16>, vector<16x8xf32> -> vector<16x8xf32>
    %c0_56 = arith.constant 0 : index
    %c1_57 = arith.constant 1 : index
    %c0_58 = arith.constant 0 : index
    %c0_59 = arith.constant 0 : index
    %67 = vector.load %arg7[%c0_56, %c1_57, %c0_58, %c0_59] : memref<1x4x1x8xf32, #tpu.memory_space<vmem>>, vector<1x1x1x8xf32>
    %68 = vector.shape_cast %67 : vector<1x1x1x8xf32> to vector<1x8xf32>
    %69 = vector.broadcast %68 : vector<1x8xf32> to vector<16x8xf32>
    %70 = arith.addf %66, %69 : vector<16x8xf32>
    %c0_60 = arith.constant 0 : index
    %c1_61 = arith.constant 1 : index
    %c0_62 = arith.constant 0 : index
    %c0_63 = arith.constant 0 : index
    %71 = vector.load %arg8[%c0_60, %c1_61, %c0_62, %c0_63] : memref<1x4x32x8xbf16, #tpu.memory_space<vmem>>, vector<1x1x32x8xbf16>
    %72 = vector.shape_cast %71 : vector<1x1x32x8xbf16> to vector<32x8xbf16>
    %cst_64 = arith.constant dense<0.000000e+00> : vector<16x8xf32>
    %73 = tpu.matmul %6, %72, %cst_64 {dimension_numbers = #tpu.dot_dimension_numbers<[1], [0], [0], [1], [0, 0, 1, 1], [], []>} : vector<16x32xbf16>, vector<32x8xbf16>, vector<16x8xf32> -> vector<16x8xf32>
    %c0_65 = arith.constant 0 : index
    %c1_66 = arith.constant 1 : index
    %c0_67 = arith.constant 0 : index
    %c0_68 = arith.constant 0 : index
    %74 = vector.load %arg9[%c0_65, %c1_66, %c0_67, %c0_68] : memref<1x4x1x8xf32, #tpu.memory_space<vmem>>, vector<1x1x1x8xf32>
    %75 = vector.shape_cast %74 : vector<1x1x1x8xf32> to vector<1x8xf32>
    %76 = vector.broadcast %75 : vector<1x8xf32> to vector<16x8xf32>
    %77 = arith.addf %73, %76 : vector<16x8xf32>
    %78 = vector.shape_cast %63 : vector<16x8xf32> to vector<2x8x8xf32>
    %79 = arith.truncf %78 : vector<2x8x8xf32> to vector<2x8x8xbf16>
    %80 = vector.shape_cast %70 : vector<16x8xf32> to vector<2x8x8xf32>
    %81 = arith.truncf %80 : vector<2x8x8xf32> to vector<2x8x8xbf16>
    %82 = vector.shape_cast %77 : vector<16x8xf32> to vector<2x8x8xf32>
    %83 = arith.truncf %82 : vector<2x8x8xf32> to vector<2x8x8xbf16>
    "tpu.trace_start"() <{level = 10 : i32, message = "bqe,bke->bqk"}> : () -> ()
    %cst_69 = arith.constant dense<0.000000e+00> : vector<2x8x8xf32>
    %84 = tpu.matmul %79, %81, %cst_69 {dimension_numbers = #tpu.dot_dimension_numbers<[2], [2], [1], [1], [0, 0, 0, 1, 1, 1], [0], [0]>} : vector<2x8x8xbf16>, vector<2x8x8xbf16>, vector<2x8x8xf32> -> vector<2x8x8xf32>
    "tpu.trace_stop"() : () -> ()
    %85 = vector.broadcast %4 : vector<2x1x8xf32> to vector<2x8x8xf32>
    %86 = arith.addf %84, %85 : vector<2x8x8xf32>
    %cst_70 = arith.constant dense<0xFF800000> : vector<2x8xf32>
    %87 = vector.multi_reduction <maximumf>, %86, %cst_70 [2] : vector<2x8x8xf32> to vector<2x8xf32>
    %88 = vector.shape_cast %87 : vector<2x8xf32> to vector<2x8x1xf32>
    %89 = vector.broadcast %88 : vector<2x8x1xf32> to vector<2x8x8xf32>
    %90 = arith.subf %86, %89 : vector<2x8x8xf32>
    %91 = math.exp %90 : vector<2x8x8xf32>
    %cst_71 = arith.constant dense<0.000000e+00> : vector<2x8xf32>
    %92 = vector.multi_reduction <add>, %91, %cst_71 [2] : vector<2x8x8xf32> to vector<2x8xf32>
    %93 = vector.shape_cast %92 : vector<2x8xf32> to vector<2x8x1xf32>
    %94 = vector.broadcast %93 : vector<2x8x1xf32> to vector<2x8x8xf32>
    %95 = arith.divf %91, %94 : vector<2x8x8xf32>
    %96 = arith.truncf %95 : vector<2x8x8xf32> to vector<2x8x8xbf16>
    "tpu.trace_start"() <{level = 10 : i32, message = "bqk,bke->bqe"}> : () -> ()
    %cst_72 = arith.constant dense<0.000000e+00> : vector<2x8x8xf32>
    %97 = tpu.matmul %96, %83, %cst_72 {dimension_numbers = #tpu.dot_dimension_numbers<[2], [1], [1], [2], [0, 0, 0, 1, 1, 2], [0], [0]>} : vector<2x8x8xbf16>, vector<2x8x8xbf16>, vector<2x8x8xf32> -> vector<2x8x8xf32>
    "tpu.trace_stop"() : () -> ()
    %98 = vector.shape_cast %97 : vector<2x8x8xf32> to vector<16x8xf32>
    %99 = arith.truncf %98 : vector<16x8xf32> to vector<16x8xbf16>
    %c0_73 = arith.constant 0 : index
    %c1_74 = arith.constant 1 : index
    %c0_75 = arith.constant 0 : index
    %c0_76 = arith.constant 0 : index
    %100 = vector.load %arg10[%c0_73, %c1_74, %c0_75, %c0_76] : memref<1x4x8x32xbf16, #tpu.memory_space<vmem>>, vector<1x1x8x32xbf16>
    %101 = vector.shape_cast %100 : vector<1x1x8x32xbf16> to vector<8x32xbf16>
    %cst_77 = arith.constant dense<0.000000e+00> : vector<16x32xf32>
    %102 = tpu.matmul %99, %101, %cst_77 {dimension_numbers = #tpu.dot_dimension_numbers<[1], [0], [0], [1], [0, 0, 1, 1], [], []>} : vector<16x8xbf16>, vector<8x32xbf16>, vector<16x32xf32> -> vector<16x32xf32>
    %103 = arith.addf %54, %102 : vector<16x32xf32>
    %c0_78 = arith.constant 0 : index
    %c2 = arith.constant 2 : index
    %c0_79 = arith.constant 0 : index
    %c0_80 = arith.constant 0 : index
    %104 = vector.load %arg4[%c0_78, %c2, %c0_79, %c0_80] : memref<1x4x32x8xbf16, #tpu.memory_space<vmem>>, vector<1x1x32x8xbf16>
    %105 = vector.shape_cast %104 : vector<1x1x32x8xbf16> to vector<32x8xbf16>
    %cst_81 = arith.constant dense<0.000000e+00> : vector<16x8xf32>
    %106 = tpu.matmul %6, %105, %cst_81 {dimension_numbers = #tpu.dot_dimension_numbers<[1], [0], [0], [1], [0, 0, 1, 1], [], []>} : vector<16x32xbf16>, vector<32x8xbf16>, vector<16x8xf32> -> vector<16x8xf32>
    %c0_82 = arith.constant 0 : index
    %c2_83 = arith.constant 2 : index
    %c0_84 = arith.constant 0 : index
    %c0_85 = arith.constant 0 : index
    %107 = vector.load %arg5[%c0_82, %c2_83, %c0_84, %c0_85] : memref<1x4x1x8xf32, #tpu.memory_space<vmem>>, vector<1x1x1x8xf32>
    %108 = vector.shape_cast %107 : vector<1x1x1x8xf32> to vector<1x8xf32>
    %109 = vector.broadcast %108 : vector<1x8xf32> to vector<16x8xf32>
    %110 = arith.addf %106, %109 : vector<16x8xf32>
    %cst_86 = arith.constant 0.353553385 : f32
    %111 = vector.broadcast %cst_86 : f32 to vector<16x8xf32>
    %112 = arith.mulf %110, %111 : vector<16x8xf32>
    %c0_87 = arith.constant 0 : index
    %c2_88 = arith.constant 2 : index
    %c0_89 = arith.constant 0 : index
    %c0_90 = arith.constant 0 : index
    %113 = vector.load %arg6[%c0_87, %c2_88, %c0_89, %c0_90] : memref<1x4x32x8xbf16, #tpu.memory_space<vmem>>, vector<1x1x32x8xbf16>
    %114 = vector.shape_cast %113 : vector<1x1x32x8xbf16> to vector<32x8xbf16>
    %cst_91 = arith.constant dense<0.000000e+00> : vector<16x8xf32>
    %115 = tpu.matmul %6, %114, %cst_91 {dimension_numbers = #tpu.dot_dimension_numbers<[1], [0], [0], [1], [0, 0, 1, 1], [], []>} : vector<16x32xbf16>, vector<32x8xbf16>, vector<16x8xf32> -> vector<16x8xf32>
    %c0_92 = arith.constant 0 : index
    %c2_93 = arith.constant 2 : index
    %c0_94 = arith.constant 0 : index
    %c0_95 = arith.constant 0 : index
    %116 = vector.load %arg7[%c0_92, %c2_93, %c0_94, %c0_95] : memref<1x4x1x8xf32, #tpu.memory_space<vmem>>, vector<1x1x1x8xf32>
    %117 = vector.shape_cast %116 : vector<1x1x1x8xf32> to vector<1x8xf32>
    %118 = vector.broadcast %117 : vector<1x8xf32> to vector<16x8xf32>
    %119 = arith.addf %115, %118 : vector<16x8xf32>
    %c0_96 = arith.constant 0 : index
    %c2_97 = arith.constant 2 : index
    %c0_98 = arith.constant 0 : index
    %c0_99 = arith.constant 0 : index
    %120 = vector.load %arg8[%c0_96, %c2_97, %c0_98, %c0_99] : memref<1x4x32x8xbf16, #tpu.memory_space<vmem>>, vector<1x1x32x8xbf16>
    %121 = vector.shape_cast %120 : vector<1x1x32x8xbf16> to vector<32x8xbf16>
    %cst_100 = arith.constant dense<0.000000e+00> : vector<16x8xf32>
    %122 = tpu.matmul %6, %121, %cst_100 {dimension_numbers = #tpu.dot_dimension_numbers<[1], [0], [0], [1], [0, 0, 1, 1], [], []>} : vector<16x32xbf16>, vector<32x8xbf16>, vector<16x8xf32> -> vector<16x8xf32>
    %c0_101 = arith.constant 0 : index
    %c2_102 = arith.constant 2 : index
    %c0_103 = arith.constant 0 : index
    %c0_104 = arith.constant 0 : index
    %123 = vector.load %arg9[%c0_101, %c2_102, %c0_103, %c0_104] : memref<1x4x1x8xf32, #tpu.memory_space<vmem>>, vector<1x1x1x8xf32>
    %124 = vector.shape_cast %123 : vector<1x1x1x8xf32> to vector<1x8xf32>
    %125 = vector.broadcast %124 : vector<1x8xf32> to vector<16x8xf32>
    %126 = arith.addf %122, %125 : vector<16x8xf32>
    %127 = vector.shape_cast %112 : vector<16x8xf32> to vector<2x8x8xf32>
    %128 = arith.truncf %127 : vector<2x8x8xf32> to vector<2x8x8xbf16>
    %129 = vector.shape_cast %119 : vector<16x8xf32> to vector<2x8x8xf32>
    %130 = arith.truncf %129 : vector<2x8x8xf32> to vector<2x8x8xbf16>
    %131 = vector.shape_cast %126 : vector<16x8xf32> to vector<2x8x8xf32>
    %132 = arith.truncf %131 : vector<2x8x8xf32> to vector<2x8x8xbf16>
    "tpu.trace_start"() <{level = 10 : i32, message = "bqe,bke->bqk"}> : () -> ()
    %cst_105 = arith.constant dense<0.000000e+00> : vector<2x8x8xf32>
    %133 = tpu.matmul %128, %130, %cst_105 {dimension_numbers = #tpu.dot_dimension_numbers<[2], [2], [1], [1], [0, 0, 0, 1, 1, 1], [0], [0]>} : vector<2x8x8xbf16>, vector<2x8x8xbf16>, vector<2x8x8xf32> -> vector<2x8x8xf32>
    "tpu.trace_stop"() : () -> ()
    %134 = vector.broadcast %4 : vector<2x1x8xf32> to vector<2x8x8xf32>
    %135 = arith.addf %133, %134 : vector<2x8x8xf32>
    %cst_106 = arith.constant dense<0xFF800000> : vector<2x8xf32>
    %136 = vector.multi_reduction <maximumf>, %135, %cst_106 [2] : vector<2x8x8xf32> to vector<2x8xf32>
    %137 = vector.shape_cast %136 : vector<2x8xf32> to vector<2x8x1xf32>
    %138 = vector.broadcast %137 : vector<2x8x1xf32> to vector<2x8x8xf32>
    %139 = arith.subf %135, %138 : vector<2x8x8xf32>
    %140 = math.exp %139 : vector<2x8x8xf32>
    %cst_107 = arith.constant dense<0.000000e+00> : vector<2x8xf32>
    %141 = vector.multi_reduction <add>, %140, %cst_107 [2] : vector<2x8x8xf32> to vector<2x8xf32>
    %142 = vector.shape_cast %141 : vector<2x8xf32> to vector<2x8x1xf32>
    %143 = vector.broadcast %142 : vector<2x8x1xf32> to vector<2x8x8xf32>
    %144 = arith.divf %140, %143 : vector<2x8x8xf32>
    %145 = arith.truncf %144 : vector<2x8x8xf32> to vector<2x8x8xbf16>
    "tpu.trace_start"() <{level = 10 : i32, message = "bqk,bke->bqe"}> : () -> ()
    %cst_108 = arith.constant dense<0.000000e+00> : vector<2x8x8xf32>
    %146 = tpu.matmul %145, %132, %cst_108 {dimension_numbers = #tpu.dot_dimension_numbers<[2], [1], [1], [2], [0, 0, 0, 1, 1, 2], [0], [0]>} : vector<2x8x8xbf16>, vector<2x8x8xbf16>, vector<2x8x8xf32> -> vector<2x8x8xf32>
    "tpu.trace_stop"() : () -> ()
    %147 = vector.shape_cast %146 : vector<2x8x8xf32> to vector<16x8xf32>
    %148 = arith.truncf %147 : vector<16x8xf32> to vector<16x8xbf16>
    %c0_109 = arith.constant 0 : index
    %c2_110 = arith.constant 2 : index
    %c0_111 = arith.constant 0 : index
    %c0_112 = arith.constant 0 : index
    %149 = vector.load %arg10[%c0_109, %c2_110, %c0_111, %c0_112] : memref<1x4x8x32xbf16, #tpu.memory_space<vmem>>, vector<1x1x8x32xbf16>
    %150 = vector.shape_cast %149 : vector<1x1x8x32xbf16> to vector<8x32xbf16>
    %cst_113 = arith.constant dense<0.000000e+00> : vector<16x32xf32>
    %151 = tpu.matmul %148, %150, %cst_113 {dimension_numbers = #tpu.dot_dimension_numbers<[1], [0], [0], [1], [0, 0, 1, 1], [], []>} : vector<16x8xbf16>, vector<8x32xbf16>, vector<16x32xf32> -> vector<16x32xf32>
    %152 = arith.addf %103, %151 : vector<16x32xf32>
    %c0_114 = arith.constant 0 : index
    %c3 = arith.constant 3 : index
    %c0_115 = arith.constant 0 : index
    %c0_116 = arith.constant 0 : index
    %153 = vector.load %arg4[%c0_114, %c3, %c0_115, %c0_116] : memref<1x4x32x8xbf16, #tpu.memory_space<vmem>>, vector<1x1x32x8xbf16>
    %154 = vector.shape_cast %153 : vector<1x1x32x8xbf16> to vector<32x8xbf16>
    %cst_117 = arith.constant dense<0.000000e+00> : vector<16x8xf32>
    %155 = tpu.matmul %6, %154, %cst_117 {dimension_numbers = #tpu.dot_dimension_numbers<[1], [0], [0], [1], [0, 0, 1, 1], [], []>} : vector<16x32xbf16>, vector<32x8xbf16>, vector<16x8xf32> -> vector<16x8xf32>
    %c0_118 = arith.constant 0 : index
    %c3_119 = arith.constant 3 : index
    %c0_120 = arith.constant 0 : index
    %c0_121 = arith.constant 0 : index
    %156 = vector.load %arg5[%c0_118, %c3_119, %c0_120, %c0_121] : memref<1x4x1x8xf32, #tpu.memory_space<vmem>>, vector<1x1x1x8xf32>
    %157 = vector.shape_cast %156 : vector<1x1x1x8xf32> to vector<1x8xf32>
    %158 = vector.broadcast %157 : vector<1x8xf32> to vector<16x8xf32>
    %159 = arith.addf %155, %158 : vector<16x8xf32>
    %cst_122 = arith.constant 0.353553385 : f32
    %160 = vector.broadcast %cst_122 : f32 to vector<16x8xf32>
    %161 = arith.mulf %159, %160 : vector<16x8xf32>
    %c0_123 = arith.constant 0 : index
    %c3_124 = arith.constant 3 : index
    %c0_125 = arith.constant 0 : index
    %c0_126 = arith.constant 0 : index
    %162 = vector.load %arg6[%c0_123, %c3_124, %c0_125, %c0_126] : memref<1x4x32x8xbf16, #tpu.memory_space<vmem>>, vector<1x1x32x8xbf16>
    %163 = vector.shape_cast %162 : vector<1x1x32x8xbf16> to vector<32x8xbf16>
    %cst_127 = arith.constant dense<0.000000e+00> : vector<16x8xf32>
    %164 = tpu.matmul %6, %163, %cst_127 {dimension_numbers = #tpu.dot_dimension_numbers<[1], [0], [0], [1], [0, 0, 1, 1], [], []>} : vector<16x32xbf16>, vector<32x8xbf16>, vector<16x8xf32> -> vector<16x8xf32>
    %c0_128 = arith.constant 0 : index
    %c3_129 = arith.constant 3 : index
    %c0_130 = arith.constant 0 : index
    %c0_131 = arith.constant 0 : index
    %165 = vector.load %arg7[%c0_128, %c3_129, %c0_130, %c0_131] : memref<1x4x1x8xf32, #tpu.memory_space<vmem>>, vector<1x1x1x8xf32>
    %166 = vector.shape_cast %165 : vector<1x1x1x8xf32> to vector<1x8xf32>
    %167 = vector.broadcast %166 : vector<1x8xf32> to vector<16x8xf32>
    %168 = arith.addf %164, %167 : vector<16x8xf32>
    %c0_132 = arith.constant 0 : index
    %c3_133 = arith.constant 3 : index
    %c0_134 = arith.constant 0 : index
    %c0_135 = arith.constant 0 : index
    %169 = vector.load %arg8[%c0_132, %c3_133, %c0_134, %c0_135] : memref<1x4x32x8xbf16, #tpu.memory_space<vmem>>, vector<1x1x32x8xbf16>
    %170 = vector.shape_cast %169 : vector<1x1x32x8xbf16> to vector<32x8xbf16>
    %cst_136 = arith.constant dense<0.000000e+00> : vector<16x8xf32>
    %171 = tpu.matmul %6, %170, %cst_136 {dimension_numbers = #tpu.dot_dimension_numbers<[1], [0], [0], [1], [0, 0, 1, 1], [], []>} : vector<16x32xbf16>, vector<32x8xbf16>, vector<16x8xf32> -> vector<16x8xf32>
    %c0_137 = arith.constant 0 : index
    %c3_138 = arith.constant 3 : index
    %c0_139 = arith.constant 0 : index
    %c0_140 = arith.constant 0 : index
    %172 = vector.load %arg9[%c0_137, %c3_138, %c0_139, %c0_140] : memref<1x4x1x8xf32, #tpu.memory_space<vmem>>, vector<1x1x1x8xf32>
    %173 = vector.shape_cast %172 : vector<1x1x1x8xf32> to vector<1x8xf32>
    %174 = vector.broadcast %173 : vector<1x8xf32> to vector<16x8xf32>
    %175 = arith.addf %171, %174 : vector<16x8xf32>
    %176 = vector.shape_cast %161 : vector<16x8xf32> to vector<2x8x8xf32>
    %177 = arith.truncf %176 : vector<2x8x8xf32> to vector<2x8x8xbf16>
    %178 = vector.shape_cast %168 : vector<16x8xf32> to vector<2x8x8xf32>
    %179 = arith.truncf %178 : vector<2x8x8xf32> to vector<2x8x8xbf16>
    %180 = vector.shape_cast %175 : vector<16x8xf32> to vector<2x8x8xf32>
    %181 = arith.truncf %180 : vector<2x8x8xf32> to vector<2x8x8xbf16>
    "tpu.trace_start"() <{level = 10 : i32, message = "bqe,bke->bqk"}> : () -> ()
    %cst_141 = arith.constant dense<0.000000e+00> : vector<2x8x8xf32>
    %182 = tpu.matmul %177, %179, %cst_141 {dimension_numbers = #tpu.dot_dimension_numbers<[2], [2], [1], [1], [0, 0, 0, 1, 1, 1], [0], [0]>} : vector<2x8x8xbf16>, vector<2x8x8xbf16>, vector<2x8x8xf32> -> vector<2x8x8xf32>
    "tpu.trace_stop"() : () -> ()
    %183 = vector.broadcast %4 : vector<2x1x8xf32> to vector<2x8x8xf32>
    %184 = arith.addf %182, %183 : vector<2x8x8xf32>
    %cst_142 = arith.constant dense<0xFF800000> : vector<2x8xf32>
    %185 = vector.multi_reduction <maximumf>, %184, %cst_142 [2] : vector<2x8x8xf32> to vector<2x8xf32>
    %186 = vector.shape_cast %185 : vector<2x8xf32> to vector<2x8x1xf32>
    %187 = vector.broadcast %186 : vector<2x8x1xf32> to vector<2x8x8xf32>
    %188 = arith.subf %184, %187 : vector<2x8x8xf32>
    %189 = math.exp %188 : vector<2x8x8xf32>
    %cst_143 = arith.constant dense<0.000000e+00> : vector<2x8xf32>
    %190 = vector.multi_reduction <add>, %189, %cst_143 [2] : vector<2x8x8xf32> to vector<2x8xf32>
    %191 = vector.shape_cast %190 : vector<2x8xf32> to vector<2x8x1xf32>
    %192 = vector.broadcast %191 : vector<2x8x1xf32> to vector<2x8x8xf32>
    %193 = arith.divf %189, %192 : vector<2x8x8xf32>
    %194 = arith.truncf %193 : vector<2x8x8xf32> to vector<2x8x8xbf16>
    "tpu.trace_start"() <{level = 10 : i32, message = "bqk,bke->bqe"}> : () -> ()
    %cst_144 = arith.constant dense<0.000000e+00> : vector<2x8x8xf32>
    %195 = tpu.matmul %194, %181, %cst_144 {dimension_numbers = #tpu.dot_dimension_numbers<[2], [1], [1], [2], [0, 0, 0, 1, 1, 2], [0], [0]>} : vector<2x8x8xbf16>, vector<2x8x8xbf16>, vector<2x8x8xf32> -> vector<2x8x8xf32>
    "tpu.trace_stop"() : () -> ()
    %196 = vector.shape_cast %195 : vector<2x8x8xf32> to vector<16x8xf32>
    %197 = arith.truncf %196 : vector<16x8xf32> to vector<16x8xbf16>
    %c0_145 = arith.constant 0 : index
    %c3_146 = arith.constant 3 : index
    %c0_147 = arith.constant 0 : index
    %c0_148 = arith.constant 0 : index
    %198 = vector.load %arg10[%c0_145, %c3_146, %c0_147, %c0_148] : memref<1x4x8x32xbf16, #tpu.memory_space<vmem>>, vector<1x1x8x32xbf16>
    %199 = vector.shape_cast %198 : vector<1x1x8x32xbf16> to vector<8x32xbf16>
    %cst_149 = arith.constant dense<0.000000e+00> : vector<16x32xf32>
    %200 = tpu.matmul %197, %199, %cst_149 {dimension_numbers = #tpu.dot_dimension_numbers<[1], [0], [0], [1], [0, 0, 1, 1], [], []>} : vector<16x8xbf16>, vector<8x32xbf16>, vector<16x32xf32> -> vector<16x32xf32>
    %201 = arith.addf %152, %200 : vector<16x32xf32>
    %c0_150 = arith.constant 0 : index
    %c0_151 = arith.constant 0 : index
    %c0_152 = arith.constant 0 : index
    %202 = vector.load %arg11[%c0_150, %c0_151, %c0_152] : memref<1x1x32xf32, #tpu.memory_space<vmem>>, vector<1x1x32xf32>
    %203 = vector.shape_cast %202 : vector<1x1x32xf32> to vector<1x32xf32>
    %204 = vector.broadcast %203 : vector<1x32xf32> to vector<16x32xf32>
    %205 = arith.addf %201, %204 : vector<16x32xf32>
    %206 = arith.addf %5, %205 : vector<16x32xf32>
    %c0_153 = arith.constant 0 : index
    %c0_154 = arith.constant 0 : index
    %c0_155 = arith.constant 0 : index
    %207 = vector.load %arg12[%c0_153, %c0_154, %c0_155] : memref<1x1x32xf32, #tpu.memory_space<vmem>>, vector<1x1x32xf32>
    %208 = vector.shape_cast %207 : vector<1x1x32xf32> to vector<1x32xf32>
    %c0_156 = arith.constant 0 : index
    %c0_157 = arith.constant 0 : index
    %c0_158 = arith.constant 0 : index
    %209 = vector.load %arg13[%c0_156, %c0_157, %c0_158] : memref<1x1x32xf32, #tpu.memory_space<vmem>>, vector<1x1x32xf32>
    %210 = vector.shape_cast %209 : vector<1x1x32xf32> to vector<1x32xf32>
    %cst_159 = arith.constant dense<0.000000e+00> : vector<16xf32>
    %211 = vector.multi_reduction <add>, %206, %cst_159 [1] : vector<16x32xf32> to vector<16xf32>
    %212 = vector.shape_cast %211 : vector<16xf32> to vector<16x1xf32>
    %cst_160 = arith.constant 3.200000e+01 : f32
    %213 = vector.broadcast %cst_160 : f32 to vector<16x1xf32>
    %214 = arith.divf %212, %213 : vector<16x1xf32>
    %215 = vector.broadcast %214 : vector<16x1xf32> to vector<16x32xf32>
    %216 = arith.subf %206, %215 : vector<16x32xf32>
    %217 = arith.mulf %216, %216 : vector<16x32xf32>
    %cst_161 = arith.constant dense<0.000000e+00> : vector<16xf32>
    %218 = vector.multi_reduction <add>, %217, %cst_161 [1] : vector<16x32xf32> to vector<16xf32>
    %219 = vector.shape_cast %218 : vector<16xf32> to vector<16x1xf32>
    %cst_162 = arith.constant 3.200000e+01 : f32
    %220 = vector.broadcast %cst_162 : f32 to vector<16x1xf32>
    %221 = arith.divf %219, %220 : vector<16x1xf32>
    %222 = vector.broadcast %214 : vector<16x1xf32> to vector<16x32xf32>
    %223 = arith.subf %206, %222 : vector<16x32xf32>
    %cst_163 = arith.constant 9.99999996E-13 : f32
    %224 = vector.broadcast %cst_163 : f32 to vector<16x1xf32>
    %225 = arith.addf %221, %224 : vector<16x1xf32>
    %226 = math.rsqrt %225 : vector<16x1xf32>
    %227 = vector.broadcast %226 : vector<16x1xf32> to vector<16x32xf32>
    %228 = arith.mulf %223, %227 : vector<16x32xf32>
    %229 = vector.broadcast %208 : vector<1x32xf32> to vector<16x32xf32>
    %230 = arith.mulf %228, %229 : vector<16x32xf32>
    %231 = vector.broadcast %210 : vector<1x32xf32> to vector<16x32xf32>
    %232 = arith.addf %230, %231 : vector<16x32xf32>
    %233 = arith.truncf %232 : vector<16x32xf32> to vector<16x32xbf16>
    %c0_164 = arith.constant 0 : index
    %c0_165 = arith.constant 0 : index
    %c0_166 = arith.constant 0 : index
    %234 = vector.load %arg14[%c0_164, %c0_165, %c0_166] : memref<1x32x64xbf16, #tpu.memory_space<vmem>>, vector<1x32x64xbf16>
    %235 = vector.shape_cast %234 : vector<1x32x64xbf16> to vector<32x64xbf16>
    %cst_167 = arith.constant dense<0.000000e+00> : vector<16x64xf32>
    %236 = tpu.matmul %233, %235, %cst_167 {dimension_numbers = #tpu.dot_dimension_numbers<[1], [0], [0], [1], [0, 0, 1, 1], [], []>} : vector<16x32xbf16>, vector<32x64xbf16>, vector<16x64xf32> -> vector<16x64xf32>
    %c0_168 = arith.constant 0 : index
    %c0_169 = arith.constant 0 : index
    %c0_170 = arith.constant 0 : index
    %237 = vector.load %arg15[%c0_168, %c0_169, %c0_170] : memref<1x1x64xf32, #tpu.memory_space<vmem>>, vector<1x1x64xf32>
    %238 = vector.shape_cast %237 : vector<1x1x64xf32> to vector<1x64xf32>
    %239 = vector.broadcast %238 : vector<1x64xf32> to vector<16x64xf32>
    %240 = arith.addf %236, %239 : vector<16x64xf32>
    %cst_171 = arith.constant 5.000000e-01 : f32
    %241 = vector.broadcast %cst_171 : f32 to vector<16x64xf32>
    %242 = arith.mulf %241, %240 : vector<16x64xf32>
    %cst_172 = arith.constant 0.707106769 : f32
    %243 = vector.broadcast %cst_172 : f32 to vector<16x64xf32>
    %244 = arith.mulf %240, %243 : vector<16x64xf32>
    %245 = math.erf %244 : vector<16x64xf32>
    %cst_173 = arith.constant 1.000000e+00 : f32
    %246 = vector.broadcast %cst_173 : f32 to vector<16x64xf32>
    %247 = arith.addf %246, %245 : vector<16x64xf32>
    %248 = arith.mulf %242, %247 : vector<16x64xf32>
    %249 = arith.truncf %248 : vector<16x64xf32> to vector<16x64xbf16>
    %c0_174 = arith.constant 0 : index
    %c0_175 = arith.constant 0 : index
    %c0_176 = arith.constant 0 : index
    %250 = vector.load %arg16[%c0_174, %c0_175, %c0_176] : memref<1x64x32xbf16, #tpu.memory_space<vmem>>, vector<1x64x32xbf16>
    %251 = vector.shape_cast %250 : vector<1x64x32xbf16> to vector<64x32xbf16>
    %cst_177 = arith.constant dense<0.000000e+00> : vector<16x32xf32>
    %252 = tpu.matmul %249, %251, %cst_177 {dimension_numbers = #tpu.dot_dimension_numbers<[1], [0], [0], [1], [0, 0, 1, 1], [], []>} : vector<16x64xbf16>, vector<64x32xbf16>, vector<16x32xf32> -> vector<16x32xf32>
    %c0_178 = arith.constant 0 : index
    %c0_179 = arith.constant 0 : index
    %c0_180 = arith.constant 0 : index
    %253 = vector.load %arg17[%c0_178, %c0_179, %c0_180] : memref<1x1x32xf32, #tpu.memory_space<vmem>>, vector<1x1x32xf32>
    %254 = vector.shape_cast %253 : vector<1x1x32xf32> to vector<1x32xf32>
    %255 = vector.broadcast %254 : vector<1x32xf32> to vector<16x32xf32>
    %256 = arith.addf %252, %255 : vector<16x32xf32>
    %257 = arith.addf %232, %256 : vector<16x32xf32>
    %c0_181 = arith.constant 0 : index
    %c0_182 = arith.constant 0 : index
    %c0_183 = arith.constant 0 : index
    %258 = vector.load %arg18[%c0_181, %c0_182, %c0_183] : memref<1x1x32xf32, #tpu.memory_space<vmem>>, vector<1x1x32xf32>
    %259 = vector.shape_cast %258 : vector<1x1x32xf32> to vector<1x32xf32>
    %c0_184 = arith.constant 0 : index
    %c0_185 = arith.constant 0 : index
    %c0_186 = arith.constant 0 : index
    %260 = vector.load %arg19[%c0_184, %c0_185, %c0_186] : memref<1x1x32xf32, #tpu.memory_space<vmem>>, vector<1x1x32xf32>
    %261 = vector.shape_cast %260 : vector<1x1x32xf32> to vector<1x32xf32>
    %cst_187 = arith.constant dense<0.000000e+00> : vector<16xf32>
    %262 = vector.multi_reduction <add>, %257, %cst_187 [1] : vector<16x32xf32> to vector<16xf32>
    %263 = vector.shape_cast %262 : vector<16xf32> to vector<16x1xf32>
    %cst_188 = arith.constant 3.200000e+01 : f32
    %264 = vector.broadcast %cst_188 : f32 to vector<16x1xf32>
    %265 = arith.divf %263, %264 : vector<16x1xf32>
    %266 = vector.broadcast %265 : vector<16x1xf32> to vector<16x32xf32>
    %267 = arith.subf %257, %266 : vector<16x32xf32>
    %268 = arith.mulf %267, %267 : vector<16x32xf32>
    %cst_189 = arith.constant dense<0.000000e+00> : vector<16xf32>
    %269 = vector.multi_reduction <add>, %268, %cst_189 [1] : vector<16x32xf32> to vector<16xf32>
    %270 = vector.shape_cast %269 : vector<16xf32> to vector<16x1xf32>
    %cst_190 = arith.constant 3.200000e+01 : f32
    %271 = vector.broadcast %cst_190 : f32 to vector<16x1xf32>
    %272 = arith.divf %270, %271 : vector<16x1xf32>
    %273 = vector.broadcast %265 : vector<16x1xf32> to vector<16x32xf32>
    %274 = arith.subf %257, %273 : vector<16x32xf32>
    %cst_191 = arith.constant 9.99999996E-13 : f32
    %275 = vector.broadcast %cst_191 : f32 to vector<16x1xf32>
    %276 = arith.addf %272, %275 : vector<16x1xf32>
    %277 = math.rsqrt %276 : vector<16x1xf32>
    %278 = vector.broadcast %277 : vector<16x1xf32> to vector<16x32xf32>
    %279 = arith.mulf %274, %278 : vector<16x32xf32>
    %280 = vector.broadcast %259 : vector<1x32xf32> to vector<16x32xf32>
    %281 = arith.mulf %279, %280 : vector<16x32xf32>
    %282 = vector.broadcast %261 : vector<1x32xf32> to vector<16x32xf32>
    %283 = arith.addf %281, %282 : vector<16x32xf32>
    %284 = vector.shape_cast %283 : vector<16x32xf32> to vector<2x8x32xf32>
    %c0_192 = arith.constant 0 : index
    %c0_193 = arith.constant 0 : index
    %c0_194 = arith.constant 0 : index
    %285 = vector.load %arg20[%c0_192, %c0_193, %c0_194] : memref<2x8x32xf32, #tpu.memory_space<vmem>>, vector<2x8x32xf32>
    tpu.vector_store %arg20[%c0_192, %c0_193, %c0_194], %284 {strides = array<i32>} : memref<2x8x32xf32, #tpu.memory_space<vmem>>, vector<2x8x32xf32>,
    return
  }
  func.func @transform_0(%arg0: i32, %arg1: i32) -> (i32, i32, i32) {
    %c0_i32 = arith.constant 0 : i32
    %c0_i32_0 = arith.constant 0 : i32
    %c0_i32_1 = arith.constant 0 : i32
    return %arg0, %c0_i32, %c0_i32_0 : i32, i32, i32
  }
  func.func @transform_1(%arg0: i32, %arg1: i32) -> (i32, i32, i32) {
    %c0_i32 = arith.constant 0 : i32
    %c0_i32_0 = arith.constant 0 : i32
    %c0_i32_1 = arith.constant 0 : i32
    return %arg0, %c0_i32, %c0_i32_0 : i32, i32, i32
  }
  func.func @transform_2(%arg0: i32, %arg1: i32) -> (i32, i32, i32, i32) {
    %c0_i32 = arith.constant 0 : i32
    %c0_i32_0 = arith.constant 0 : i32
    %c0_i32_1 = arith.constant 0 : i32
    %c0_i32_2 = arith.constant 0 : i32
    return %arg1, %c0_i32, %c0_i32_0, %c0_i32_1 : i32, i32, i32, i32
  }
  func.func @transform_3(%arg0: i32, %arg1: i32) -> (i32, i32, i32, i32) {
    %c0_i32 = arith.constant 0 : i32
    %c0_i32_0 = arith.constant 0 : i32
    %c0_i32_1 = arith.constant 0 : i32
    %c0_i32_2 = arith.constant 0 : i32
    return %arg1, %c0_i32, %c0_i32_0, %c0_i32_1 : i32, i32, i32, i32
  }
  func.func @transform_4(%arg0: i32, %arg1: i32) -> (i32, i32, i32, i32) {
    %c0_i32 = arith.constant 0 : i32
    %c0_i32_0 = arith.constant 0 : i32
    %c0_i32_1 = arith.constant 0 : i32
    %c0_i32_2 = arith.constant 0 : i32
    return %arg1, %c0_i32, %c0_i32_0, %c0_i32_1 : i32, i32, i32, i32
  }
  func.func @transform_5(%arg0: i32, %arg1: i32) -> (i32, i32, i32, i32) {
    %c0_i32 = arith.constant 0 : i32
    %c0_i32_0 = arith.constant 0 : i32
    %c0_i32_1 = arith.constant 0 : i32
    %c0_i32_2 = arith.constant 0 : i32
    return %arg1, %c0_i32, %c0_i32_0, %c0_i32_1 : i32, i32, i32, i32
  }
  func.func @transform_6(%arg0: i32, %arg1: i32) -> (i32, i32, i32, i32) {
    %c0_i32 = arith.constant 0 : i32
    %c0_i32_0 = arith.constant 0 : i32
    %c0_i32_1 = arith.constant 0 : i32
    %c0_i32_2 = arith.constant 0 : i32
    return %arg1, %c0_i32, %c0_i32_0, %c0_i32_1 : i32, i32, i32, i32
  }
  func.func @transform_7(%arg0: i32, %arg1: i32) -> (i32, i32, i32, i32) {
    %c0_i32 = arith.constant 0 : i32
    %c0_i32_0 = arith.constant 0 : i32
    %c0_i32_1 = arith.constant 0 : i32
    %c0_i32_2 = arith.constant 0 : i32
    return %arg1, %c0_i32, %c0_i32_0, %c0_i32_1 : i32, i32, i32, i32
  }
  func.func @transform_8(%arg0: i32, %arg1: i32) -> (i32, i32, i32, i32) {
    %c0_i32 = arith.constant 0 : i32
    %c0_i32_0 = arith.constant 0 : i32
    %c0_i32_1 = arith.constant 0 : i32
    %c0_i32_2 = arith.constant 0 : i32
    return %arg1, %c0_i32, %c0_i32_0, %c0_i32_1 : i32, i32, i32, i32
  }
  func.func @transform_9(%arg0: i32, %arg1: i32) -> (i32, i32, i32) {
    %c0_i32 = arith.constant 0 : i32
    %c0_i32_0 = arith.constant 0 : i32
    %c0_i32_1 = arith.constant 0 : i32
    return %arg1, %c0_i32, %c0_i32_0 : i32, i32, i32
  }
  func.func @transform_10(%arg0: i32, %arg1: i32) -> (i32, i32, i32) {
    %c0_i32 = arith.constant 0 : i32
    %c0_i32_0 = arith.constant 0 : i32
    %c0_i32_1 = arith.constant 0 : i32
    return %arg1, %c0_i32, %c0_i32_0 : i32, i32, i32
  }
  func.func @transform_11(%arg0: i32, %arg1: i32) -> (i32, i32, i32) {
    %c0_i32 = arith.constant 0 : i32
    %c0_i32_0 = arith.constant 0 : i32
    %c0_i32_1 = arith.constant 0 : i32
    return %arg1, %c0_i32, %c0_i32_0 : i32, i32, i32
  }
  func.func @transform_12(%arg0: i32, %arg1: i32) -> (i32, i32, i32) {
    %c0_i32 = arith.constant 0 : i32
    %c0_i32_0 = arith.constant 0 : i32
    %c0_i32_1 = arith.constant 0 : i32
    return %arg1, %c0_i32, %c0_i32_0 : i32, i32, i32
  }
  func.func @transform_13(%arg0: i32, %arg1: i32) -> (i32, i32, i32) {
    %c0_i32 = arith.constant 0 : i32
    %c0_i32_0 = arith.constant 0 : i32
    %c0_i32_1 = arith.constant 0 : i32
    return %arg1, %c0_i32, %c0_i32_0 : i32, i32, i32
  }
  func.func @transform_14(%arg0: i32, %arg1: i32) -> (i32, i32, i32) {
    %c0_i32 = arith.constant 0 : i32
    %c0_i32_0 = arith.constant 0 : i32
    %c0_i32_1 = arith.constant 0 : i32
    return %arg1, %c0_i32, %c0_i32_0 : i32, i32, i32
  }
  func.func @transform_15(%arg0: i32, %arg1: i32) -> (i32, i32, i32) {
    %c0_i32 = arith.constant 0 : i32
    %c0_i32_0 = arith.constant 0 : i32
    %c0_i32_1 = arith.constant 0 : i32
    return %arg1, %c0_i32, %c0_i32_0 : i32, i32, i32
  }
  func.func @transform_16(%arg0: i32, %arg1: i32) -> (i32, i32, i32) {
    %c0_i32 = arith.constant 0 : i32
    %c0_i32_0 = arith.constant 0 : i32
    %c0_i32_1 = arith.constant 0 : i32
    return %arg1, %c0_i32, %c0_i32_0 : i32, i32, i32
  }
  func.func @transform_17(%arg0: i32, %arg1: i32) -> (i32, i32, i32) {
    %c0_i32 = arith.constant 0 : i32
    %c0_i32_0 = arith.constant 0 : i32
    %c0_i32_1 = arith.constant 0 : i32
    return %arg1, %c0_i32, %c0_i32_0 : i32, i32, i32
  }
  func.func @transform_18(%arg0: i32, %arg1: i32) -> (i32, i32, i32) {
    %c0_i32 = arith.constant 0 : i32
    %c0_i32_0 = arith.constant 0 : i32
    %c0_i32_1 = arith.constant 0 : i32
    return %arg0, %c0_i32, %c0_i32_0 : i32, i32, i32
  }
}

</mosaic_0001>

<llo_original>
// kernel: tpu_custom_call.1
$region0: #{tpu_custom_call.1}
  #allocation0 [shape = 'u32[]', space=smem, size = 0x4, offset = 0x4, fixed_abs, tag = 'smem constant byte address 0x4 - core index']
  #allocation1 [shape = 'u32[144,128]{1,0:T(1,128)}', space=vmem, size = 0x12000, scoped, tag = 'internal scratch']
  %s0 = inlined_call_operand.vmem [shape: f32[2,8,32], index: 0, kind: input, shape index: {}]
  %s1 = inlined_call_operand.vmem [shape: f32[2,1,8], index: 1, kind: input, shape index: {}]
  %s2 = inlined_call_operand.vmem [shape: bf16[2,4,32,8], index: 2, kind: input, shape index: {}]
  %s3 = inlined_call_operand.vmem [shape: f32[2,4,1,8], index: 3, kind: input, shape index: {}]
  %s4 = inlined_call_operand.vmem [shape: bf16[2,4,32,8], index: 4, kind: input, shape index: {}]
  %s5 = inlined_call_operand.vmem [shape: f32[2,4,1,8], index: 5, kind: input, shape index: {}]
  %s6 = inlined_call_operand.vmem [shape: bf16[2,4,32,8], index: 6, kind: input, shape index: {}]
  %s7 = inlined_call_operand.vmem [shape: f32[2,4,1,8], index: 7, kind: input, shape index: {}]
  %s8 = inlined_call_operand.vmem [shape: bf16[2,4,8,32], index: 8, kind: input, shape index: {}]
  %s9 = inlined_call_operand.vmem [shape: f32[2,1,32], index: 9, kind: input, shape index: {}]
  %s10 = inlined_call_operand.vmem [shape: f32[2,1,32], index: 10, kind: input, shape index: {}]
  %s11 = inlined_call_operand.vmem [shape: f32[2,1,32], index: 11, kind: input, shape index: {}]
  %s12 = inlined_call_operand.vmem [shape: bf16[2,32,64], index: 12, kind: input, shape index: {}]
  %s13 = inlined_call_operand.vmem [shape: f32[2,1,64], index: 13, kind: input, shape index: {}]
  %s14 = inlined_call_operand.vmem [shape: bf16[2,64,32], index: 14, kind: input, shape index: {}]
  %s15 = inlined_call_operand.vmem [shape: f32[2,1,32], index: 15, kind: input, shape index: {}]
  %s16 = inlined_call_operand.vmem [shape: f32[2,1,32], index: 16, kind: input, shape index: {}]
  %s17 = inlined_call_operand.vmem [shape: f32[2,1,32], index: 17, kind: input, shape index: {}]
  %s18 = inlined_call_operand.hbm [shape: f32[2,8,32], index: 18, kind: output, shape index: {}]
  %s19 = sld [smem:[#allocation0]]
  $region109: #{tpu_custom_call.1} parent=0
    _
  %s21 = ssub.s32 1, %s19
  %s22 = scalar_select 0, %s21, %s19
  $region1: #{tpu_custom_call.1} parent=0
    #allocation2 [shape = 'u8[8192]{0}', space=vmem, size = 0x2000, scoped, tag = 'output window, operand 0, single buffered']
    #allocation3 [shape = 's32[2]{0}', space=sflag, size = 0x8, scoped, tag = 'scoped memory for tpu_custom_call.1']
    %23 = vsyncpa [#allocation3], 0
    loop: start=0, step=1, limit=4
    $region2: #{tpu_custom_call.1} parent=1 // loop_pre_header
      _
    $region3: #{tpu_custom_call.1} parent=1 // loop_header
      %s25 = sphi 0, %s29
      %p26 = scmp.ge.s32.totalorder %s25, 4
      %s32 = sphi 0, %s44
      %s33 = sphi 0, %s40
      %s34 = sphi 0, %s32
      %s35 = sphi 0, %s33
      %s36 = sphi 0, %s34
      %s37 = sphi 0, %s35
      %s47 = sphi 0, %s49
      %s50 = sphi 0, %s47
      %s51 = sphi 0, %s50
      %s67 = sphi 0, %s51
      %s73 = sphi 0, %s75
      %s76 = sphi 0, %s73
      %s77 = sphi 0, %s76
      %s93 = sphi 0, %s77
      %s99 = sphi 0, %s101
      %s102 = sphi 0, %s99
      %s103 = sphi 0, %s102
      %s119 = sphi 0, %s103
      %s125 = sphi 0, %s127
      %s128 = sphi 0, %s125
      %s129 = sphi 0, %s128
      %s145 = sphi 0, %s129
      %s151 = sphi 0, %s153
      %s154 = sphi 0, %s151
      %s155 = sphi 0, %s154
      %s171 = sphi 0, %s155
      %s177 = sphi 0, %s179
      %s180 = sphi 0, %s177
      %s181 = sphi 0, %s180
      %s197 = sphi 0, %s181
      %s203 = sphi 0, %s205
      %s206 = sphi 0, %s203
      %s207 = sphi 0, %s206
      %s223 = sphi 0, %s207
      %s229 = sphi 0, %s231
      %s232 = sphi 0, %s229
      %s233 = sphi 0, %s232
      %s249 = sphi 0, %s233
      %s255 = sphi 0, %s257
      %s258 = sphi 0, %s255
      %s259 = sphi 0, %s258
      %s275 = sphi 0, %s259
      %s281 = sphi 0, %s283
      %s284 = sphi 0, %s281
      %s285 = sphi 0, %s284
      %s301 = sphi 0, %s285
      %s307 = sphi 0, %s309
      %s310 = sphi 0, %s307
      %s311 = sphi 0, %s310
      %s327 = sphi 0, %s311
      %s333 = sphi 0, %s335
      %s336 = sphi 0, %s333
      %s337 = sphi 0, %s336
      %s353 = sphi 0, %s337
      %s359 = sphi 0, %s361
      %s362 = sphi 0, %s359
      %s363 = sphi 0, %s362
      %s379 = sphi 0, %s363
      %s385 = sphi 0, %s387
      %s388 = sphi 0, %s385
      %s389 = sphi 0, %s388
      %s405 = sphi 0, %s389
      %s411 = sphi 0, %s413
      %s414 = sphi 0, %s411
      %s415 = sphi 0, %s414
      %s431 = sphi 0, %s415
      %s437 = sphi 0, %s439
      %s440 = sphi 0, %s437
      %s441 = sphi 0, %s440
      %s457 = sphi 0, %s441
      %s463 = sphi 0, %s465
      %s466 = sphi 0, %s463
      %s467 = sphi 0, %s466
      %s483 = sphi 0, %s467
      %s489 = sphi 0, %s491
      %s492 = sphi 0, %s489
      %s493 = sphi 0, %s492
      %s509 = sphi 0, %s493
      %s515 = sphi 0, %s517
      %s518 = sphi 0, %s515
      %s519 = sphi 0, %s518
      %s535 = sphi 0, %s519
    $region4: #{tpu_custom_call.1} parent=1 // loop_header_branch
      %28 = sbr.rel (%p26) target = $region8
    $region5: #{tpu_custom_call.1} parent=1 // loop_body
      %s30 = ssub.s32 %s25, 1
      %s31 = ssub.s32 %s25, 2
      %s38 = sadd.s32 1, %s33
      %p39 = scmp.ge.s32.totalorder %s38, 2
      %s40 = scalar_select %p39, 0, %s38
      %s41 = sadd.s32 1, %s32
      %s42 = scalar_select %p39, %s41, %s32
      %p43 = scmp.ge.s32.totalorder %s42, 1
      %s44 = scalar_select %p43, 0, %s42
      %s45 = ssub.s32 %s32, %s44
      %p46 = scmp.eq.s32.totalorder %s45, 0
      %s48 = sadd.s32 %s47, 1
      %s49 = scalar_select %p46, %s47, %s48
      %p52 = pneg %p46
      %p53 = scmp.eq.s32.totalorder %s25, 1
      %p54 = por %p52, %p53
      %p55 = scmp.ne.s32.totalorder %s47, %s50
      %p56 = scmp.eq.s32.totalorder %s25, 0
      %p57 = por %p55, %p56
      %p58 = scmp.ne.s32.totalorder %s47, %s50
      %p59 = scmp.eq.s32.totalorder %s30, 1
      %p60 = por %p58, %p59
      %p61 = scmp.ne.s32.totalorder %s50, %s51
      %p62 = scmp.eq.s32.totalorder %s30, 0
      %p63 = por %p61, %p62
      %p64 = scmp.ne.s32.totalorder %s50, %s51
      %p65 = scmp.eq.s32.totalorder %s31, 1
      %p66 = por %p64, %p65
      %p68 = scmp.ne.s32.totalorder %s51, %s67
      %p69 = scmp.eq.s32.totalorder %s31, 0
      %p70 = por %p68, %p69
      %s71 = ssub.s32 %s32, %s44
      %p72 = scmp.eq.s32.totalorder %s71, 0
      %s74 = sadd.s32 %s73, 1
      %s75 = scalar_select %p72, %s73, %s74
      %p78 = pneg %p72
      %p79 = scmp.eq.s32.totalorder %s25, 1
      %p80 = por %p78, %p79
      %p81 = scmp.ne.s32.totalorder %s73, %s76
      %p82 = scmp.eq.s32.totalorder %s25, 0
      %p83 = por %p81, %p82
      %p84 = scmp.ne.s32.totalorder %s73, %s76
      %p85 = scmp.eq.s32.totalorder %s30, 1
      %p86 = por %p84, %p85
      %p87 = scmp.ne.s32.totalorder %s76, %s77
      %p88 = scmp.eq.s32.totalorder %s30, 0
      %p89 = por %p87, %p88
      %p90 = scmp.ne.s32.totalorder %s76, %s77
      %p91 = scmp.eq.s32.totalorder %s31, 1
      %p92 = por %p90, %p91
      %p94 = scmp.ne.s32.totalorder %s77, %s93
      %p95 = scmp.eq.s32.totalorder %s31, 0
      %p96 = por %p94, %p95
      %s97 = ssub.s32 %s33, %s40
      %p98 = scmp.eq.s32.totalorder %s97, 0
      %s100 = sadd.s32 %s99, 1
      %s101 = scalar_select %p98, %s99, %s100
      %p104 = pneg %p98
      %p105 = scmp.eq.s32.totalorder %s25, 1
      %p106 = por %p104, %p105
      %p107 = scmp.ne.s32.totalorder %s99, %s102
      %p108 = scmp.eq.s32.totalorder %s25, 0
      %p109 = por %p107, %p108
      %p110 = scmp.ne.s32.totalorder %s99, %s102
      %p111 = scmp.eq.s32.totalorder %s30, 1
      %p112 = por %p110, %p111
      %p113 = scmp.ne.s32.totalorder %s102, %s103
      %p114 = scmp.eq.s32.totalorder %s30, 0
      %p115 = por %p113, %p114
      %p116 = scmp.ne.s32.totalorder %s102, %s103
      %p117 = scmp.eq.s32.totalorder %s31, 1
      %p118 = por %p116, %p117
      %p120 = scmp.ne.s32.totalorder %s103, %s119
      %p121 = scmp.eq.s32.totalorder %s31, 0
      %p122 = por %p120, %p121
      %s123 = ssub.s32 %s33, %s40
      %p124 = scmp.eq.s32.totalorder %s123, 0
      %s126 = sadd.s32 %s125, 1
      %s127 = scalar_select %p124, %s125, %s126
      %p130 = pneg %p124
      %p131 = scmp.eq.s32.totalorder %s25, 1
      %p132 = por %p130, %p131
      %p133 = scmp.ne.s32.totalorder %s125, %s128
      %p134 = scmp.eq.s32.totalorder %s25, 0
      %p135 = por %p133, %p134
      %p136 = scmp.ne.s32.totalorder %s125, %s128
      %p137 = scmp.eq.s32.totalorder %s30, 1
      %p138 = por %p136, %p137
      %p139 = scmp.ne.s32.totalorder %s128, %s129
      %p140 = scmp.eq.s32.totalorder %s30, 0
      %p141 = por %p139, %p140
      %p142 = scmp.ne.s32.totalorder %s128, %s129
      %p143 = scmp.eq.s32.totalorder %s31, 1
      %p144 = por %p142, %p143
      %p146 = scmp.ne.s32.totalorder %s129, %s145
      %p147 = scmp.eq.s32.totalorder %s31, 0
      %p148 = por %p146, %p147
      %s149 = ssub.s32 %s33, %s40
      %p150 = scmp.eq.s32.totalorder %s149, 0
      %s152 = sadd.s32 %s151, 1
      %s153 = scalar_select %p150, %s151, %s152
      %p156 = pneg %p150
      %p157 = scmp.eq.s32.totalorder %s25, 1
      %p158 = por %p156, %p157
      %p159 = scmp.ne.s32.totalorder %s151, %s154
      %p160 = scmp.eq.s32.totalorder %s25, 0
      %p161 = por %p159, %p160
      %p162 = scmp.ne.s32.totalorder %s151, %s154
      %p163 = scmp.eq.s32.totalorder %s30, 1
      %p164 = por %p162, %p163
      %p165 = scmp.ne.s32.totalorder %s154, %s155
      %p166 = scmp.eq.s32.totalorder %s30, 0
      %p167 = por %p165, %p166
      %p168 = scmp.ne.s32.totalorder %s154, %s155
      %p169 = scmp.eq.s32.totalorder %s31, 1
      %p170 = por %p168, %p169
      %p172 = scmp.ne.s32.totalorder %s155, %s171
      %p173 = scmp.eq.s32.totalorder %s31, 0
      %p174 = por %p172, %p173
      %s175 = ssub.s32 %s33, %s40
      %p176 = scmp.eq.s32.totalorder %s175, 0
      %s178 = sadd.s32 %s177, 1
      %s179 = scalar_select %p176, %s177, %s178
      %p182 = pneg %p176
      %p183 = scmp.eq.s32.totalorder %s25, 1
      %p184 = por %p182, %p183
      %p185 = scmp.ne.s32.totalorder %s177, %s180
      %p186 = scmp.eq.s32.totalorder %s25, 0
      %p187 = por %p185, %p186
      %p188 = scmp.ne.s32.totalorder %s177, %s180
      %p189 = scmp.eq.s32.totalorder %s30, 1
      %p190 = por %p188, %p189
      %p191 = scmp.ne.s32.totalorder %s180, %s181
      %p192 = scmp.eq.s32.totalorder %s30, 0
      %p193 = por %p191, %p192
      %p194 = scmp.ne.s32.totalorder %s180, %s181
      %p195 = scmp.eq.s32.totalorder %s31, 1
      %p196 = por %p194, %p195
      %p198 = scmp.ne.s32.totalorder %s181, %s197
      %p199 = scmp.eq.s32.totalorder %s31, 0
      %p200 = por %p198, %p199
      %s201 = ssub.s32 %s33, %s40
      %p202 = scmp.eq.s32.totalorder %s201, 0
      %s204 = sadd.s32 %s203, 1
      %s205 = scalar_select %p202, %s203, %s204
      %p208 = pneg %p202
      %p209 = scmp.eq.s32.totalorder %s25, 1
      %p210 = por %p208, %p209
      %p211 = scmp.ne.s32.totalorder %s203, %s206
      %p212 = scmp.eq.s32.totalorder %s25, 0
      %p213 = por %p211, %p212
      %p214 = scmp.ne.s32.totalorder %s203, %s206
      %p215 = scmp.eq.s32.totalorder %s30, 1
      %p216 = por %p214, %p215
      %p217 = scmp.ne.s32.totalorder %s206, %s207
      %p218 = scmp.eq.s32.totalorder %s30, 0
      %p219 = por %p217, %p218
      %p220 = scmp.ne.s32.totalorder %s206, %s207
      %p221 = scmp.eq.s32.totalorder %s31, 1
      %p222 = por %p220, %p221
      %p224 = scmp.ne.s32.totalorder %s207, %s223
      %p225 = scmp.eq.s32.totalorder %s31, 0
      %p226 = por %p224, %p225
      %s227 = ssub.s32 %s33, %s40
      %p228 = scmp.eq.s32.totalorder %s227, 0
      %s230 = sadd.s32 %s229, 1
      %s231 = scalar_select %p228, %s229, %s230
      %p234 = pneg %p228
      %p235 = scmp.eq.s32.totalorder %s25, 1
      %p236 = por %p234, %p235
      %p237 = scmp.ne.s32.totalorder %s229, %s232
      %p238 = scmp.eq.s32.totalorder %s25, 0
      %p239 = por %p237, %p238
      %p240 = scmp.ne.s32.totalorder %s229, %s232
      %p241 = scmp.eq.s32.totalorder %s30, 1
      %p242 = por %p240, %p241
      %p243 = scmp.ne.s32.totalorder %s232, %s233
      %p244 = scmp.eq.s32.totalorder %s30, 0
      %p245 = por %p243, %p244
      %p246 = scmp.ne.s32.totalorder %s232, %s233
      %p247 = scmp.eq.s32.totalorder %s31, 1
      %p248 = por %p246, %p247
      %p250 = scmp.ne.s32.totalorder %s233, %s249
      %p251 = scmp.eq.s32.totalorder %s31, 0
      %p252 = por %p250, %p251
      %s253 = ssub.s32 %s33, %s40
      %p254 = scmp.eq.s32.totalorder %s253, 0
      %s256 = sadd.s32 %s255, 1
      %s257 = scalar_select %p254, %s255, %s256
      %p260 = pneg %p254
      %p261 = scmp.eq.s32.totalorder %s25, 1
      %p262 = por %p260, %p261
      %p263 = scmp.ne.s32.totalorder %s255, %s258
      %p264 = scmp.eq.s32.totalorder %s25, 0
      %p265 = por %p263, %p264
      %p266 = scmp.ne.s32.totalorder %s255, %s258
      %p267 = scmp.eq.s32.totalorder %s30, 1
      %p268 = por %p266, %p267
      %p269 = scmp.ne.s32.totalorder %s258, %s259
      %p270 = scmp.eq.s32.totalorder %s30, 0
      %p271 = por %p269, %p270
      %p272 = scmp.ne.s32.totalorder %s258, %s259
      %p273 = scmp.eq.s32.totalorder %s31, 1
      %p274 = por %p272, %p273
      %p276 = scmp.ne.s32.totalorder %s259, %s275
      %p277 = scmp.eq.s32.totalorder %s31, 0
      %p278 = por %p276, %p277
      %s279 = ssub.s32 %s33, %s40
      %p280 = scmp.eq.s32.totalorder %s279, 0
      %s282 = sadd.s32 %s281, 1
      %s283 = scalar_select %p280, %s281, %s282
      %p286 = pneg %p280
      %p287 = scmp.eq.s32.totalorder %s25, 1
      %p288 = por %p286, %p287
      %p289 = scmp.ne.s32.totalorder %s281, %s284
      %p290 = scmp.eq.s32.totalorder %s25, 0
      %p291 = por %p289, %p290
      %p292 = scmp.ne.s32.totalorder %s281, %s284
      %p293 = scmp.eq.s32.totalorder %s30, 1
      %p294 = por %p292, %p293
      %p295 = scmp.ne.s32.totalorder %s284, %s285
      %p296 = scmp.eq.s32.totalorder %s30, 0
      %p297 = por %p295, %p296
      %p298 = scmp.ne.s32.totalorder %s284, %s285
      %p299 = scmp.eq.s32.totalorder %s31, 1
      %p300 = por %p298, %p299
      %p302 = scmp.ne.s32.totalorder %s285, %s301
      %p303 = scmp.eq.s32.totalorder %s31, 0
      %p304 = por %p302, %p303
      %s305 = ssub.s32 %s33, %s40
      %p306 = scmp.eq.s32.totalorder %s305, 0
      %s308 = sadd.s32 %s307, 1
      %s309 = scalar_select %p306, %s307, %s308
      %p312 = pneg %p306
      %p313 = scmp.eq.s32.totalorder %s25, 1
      %p314 = por %p312, %p313
      %p315 = scmp.ne.s32.totalorder %s307, %s310
      %p316 = scmp.eq.s32.totalorder %s25, 0
      %p317 = por %p315, %p316
      %p318 = scmp.ne.s32.totalorder %s307, %s310
      %p319 = scmp.eq.s32.totalorder %s30, 1
      %p320 = por %p318, %p319
      %p321 = scmp.ne.s32.totalorder %s310, %s311
      %p322 = scmp.eq.s32.totalorder %s30, 0
      %p323 = por %p321, %p322
      %p324 = scmp.ne.s32.totalorder %s310, %s311
      %p325 = scmp.eq.s32.totalorder %s31, 1
      %p326 = por %p324, %p325
      %p328 = scmp.ne.s32.totalorder %s311, %s327
      %p329 = scmp.eq.s32.totalorder %s31, 0
      %p330 = por %p328, %p329
      %s331 = ssub.s32 %s33, %s40
      %p332 = scmp.eq.s32.totalorder %s331, 0
      %s334 = sadd.s32 %s333, 1
      %s335 = scalar_select %p332, %s333, %s334
      %p338 = pneg %p332
      %p339 = scmp.eq.s32.totalorder %s25, 1
      %p340 = por %p338, %p339
      %p341 = scmp.ne.s32.totalorder %s333, %s336
      %p342 = scmp.eq.s32.totalorder %s25, 0
      %p343 = por %p341, %p342
      %p344 = scmp.ne.s32.totalorder %s333, %s336
      %p345 = scmp.eq.s32.totalorder %s30, 1
      %p346 = por %p344, %p345
      %p347 = scmp.ne.s32.totalorder %s336, %s337
      %p348 = scmp.eq.s32.totalorder %s30, 0
      %p349 = por %p347, %p348
      %p350 = scmp.ne.s32.totalorder %s336, %s337
      %p351 = scmp.eq.s32.totalorder %s31, 1
      %p352 = por %p350, %p351
      %p354 = scmp.ne.s32.totalorder %s337, %s353
      %p355 = scmp.eq.s32.totalorder %s31, 0
      %p356 = por %p354, %p355
      %s357 = ssub.s32 %s33, %s40
      %p358 = scmp.eq.s32.totalorder %s357, 0
      %s360 = sadd.s32 %s359, 1
      %s361 = scalar_select %p358, %s359, %s360
      %p364 = pneg %p358
      %p365 = scmp.eq.s32.totalorder %s25, 1
      %p366 = por %p364, %p365
      %p367 = scmp.ne.s32.totalorder %s359, %s362
      %p368 = scmp.eq.s32.totalorder %s25, 0
      %p369 = por %p367, %p368
      %p370 = scmp.ne.s32.totalorder %s359, %s362
      %p371 = scmp.eq.s32.totalorder %s30, 1
      %p372 = por %p370, %p371
      %p373 = scmp.ne.s32.totalorder %s362, %s363
      %p374 = scmp.eq.s32.totalorder %s30, 0
      %p375 = por %p373, %p374
      %p376 = scmp.ne.s32.totalorder %s362, %s363
      %p377 = scmp.eq.s32.totalorder %s31, 1
      %p378 = por %p376, %p377
      %p380 = scmp.ne.s32.totalorder %s363, %s379
      %p381 = scmp.eq.s32.totalorder %s31, 0
      %p382 = por %p380, %p381
      %s383 = ssub.s32 %s33, %s40
      %p384 = scmp.eq.s32.totalorder %s383, 0
      %s386 = sadd.s32 %s385, 1
      %s387 = scalar_select %p384, %s385, %s386
      %p390 = pneg %p384
      %p391 = scmp.eq.s32.totalorder %s25, 1
      %p392 = por %p390, %p391
      %p393 = scmp.ne.s32.totalorder %s385, %s388
      %p394 = scmp.eq.s32.totalorder %s25, 0
      %p395 = por %p393, %p394
      %p396 = scmp.ne.s32.totalorder %s385, %s388
      %p397 = scmp.eq.s32.totalorder %s30, 1
      %p398 = por %p396, %p397
      %p399 = scmp.ne.s32.totalorder %s388, %s389
      %p400 = scmp.eq.s32.totalorder %s30, 0
      %p401 = por %p399, %p400
      %p402 = scmp.ne.s32.totalorder %s388, %s389
      %p403 = scmp.eq.s32.totalorder %s31, 1
      %p404 = por %p402, %p403
      %p406 = scmp.ne.s32.totalorder %s389, %s405
      %p407 = scmp.eq.s32.totalorder %s31, 0
      %p408 = por %p406, %p407
      %s409 = ssub.s32 %s33, %s40
      %p410 = scmp.eq.s32.totalorder %s409, 0
      %s412 = sadd.s32 %s411, 1
      %s413 = scalar_select %p410, %s411, %s412
      %p416 = pneg %p410
      %p417 = scmp.eq.s32.totalorder %s25, 1
      %p418 = por %p416, %p417
      %p419 = scmp.ne.s32.totalorder %s411, %s414
      %p420 = scmp.eq.s32.totalorder %s25, 0
      %p421 = por %p419, %p420
      %p422 = scmp.ne.s32.totalorder %s411, %s414
      %p423 = scmp.eq.s32.totalorder %s30, 1
      %p424 = por %p422, %p423
      %p425 = scmp.ne.s32.totalorder %s414, %s415
      %p426 = scmp.eq.s32.totalorder %s30, 0
      %p427 = por %p425, %p426
      %p428 = scmp.ne.s32.totalorder %s414, %s415
      %p429 = scmp.eq.s32.totalorder %s31, 1
      %p430 = por %p428, %p429
      %p432 = scmp.ne.s32.totalorder %s415, %s431
      %p433 = scmp.eq.s32.totalorder %s31, 0
      %p434 = por %p432, %p433
      %s435 = ssub.s32 %s33, %s40
      %p436 = scmp.eq.s32.totalorder %s435, 0
      %s438 = sadd.s32 %s437, 1
      %s439 = scalar_select %p436, %s437, %s438
      %p442 = pneg %p436
      %p443 = scmp.eq.s32.totalorder %s25, 1
      %p444 = por %p442, %p443
      %p445 = scmp.ne.s32.totalorder %s437, %s440
      %p446 = scmp.eq.s32.totalorder %s25, 0
      %p447 = por %p445, %p446
      %p448 = scmp.ne.s32.totalorder %s437, %s440
      %p449 = scmp.eq.s32.totalorder %s30, 1
      %p450 = por %p448, %p449
      %p451 = scmp.ne.s32.totalorder %s440, %s441
      %p452 = scmp.eq.s32.totalorder %s30, 0
      %p453 = por %p451, %p452
      %p454 = scmp.ne.s32.totalorder %s440, %s441
      %p455 = scmp.eq.s32.totalorder %s31, 1
      %p456 = por %p454, %p455
      %p458 = scmp.ne.s32.totalorder %s441, %s457
      %p459 = scmp.eq.s32.totalorder %s31, 0
      %p460 = por %p458, %p459
      %s461 = ssub.s32 %s33, %s40
      %p462 = scmp.eq.s32.totalorder %s461, 0
      %s464 = sadd.s32 %s463, 1
      %s465 = scalar_select %p462, %s463, %s464
      %p468 = pneg %p462
      %p469 = scmp.eq.s32.totalorder %s25, 1
      %p470 = por %p468, %p469
      %p471 = scmp.ne.s32.totalorder %s463, %s466
      %p472 = scmp.eq.s32.totalorder %s25, 0
      %p473 = por %p471, %p472
      %p474 = scmp.ne.s32.totalorder %s463, %s466
      %p475 = scmp.eq.s32.totalorder %s30, 1
      %p476 = por %p474, %p475
      %p477 = scmp.ne.s32.totalorder %s466, %s467
      %p478 = scmp.eq.s32.totalorder %s30, 0
      %p479 = por %p477, %p478
      %p480 = scmp.ne.s32.totalorder %s466, %s467
      %p481 = scmp.eq.s32.totalorder %s31, 1
      %p482 = por %p480, %p481
      %p484 = scmp.ne.s32.totalorder %s467, %s483
      %p485 = scmp.eq.s32.totalorder %s31, 0
      %p486 = por %p484, %p485
      %s487 = ssub.s32 %s33, %s40
      %p488 = scmp.eq.s32.totalorder %s487, 0
      %s490 = sadd.s32 %s489, 1
      %s491 = scalar_select %p488, %s489, %s490
      %p494 = pneg %p488
      %p495 = scmp.eq.s32.totalorder %s25, 1
      %p496 = por %p494, %p495
      %p497 = scmp.ne.s32.totalorder %s489, %s492
      %p498 = scmp.eq.s32.totalorder %s25, 0
      %p499 = por %p497, %p498
      %p500 = scmp.ne.s32.totalorder %s489, %s492
      %p501 = scmp.eq.s32.totalorder %s30, 1
      %p502 = por %p500, %p501
      %p503 = scmp.ne.s32.totalorder %s492, %s493
      %p504 = scmp.eq.s32.totalorder %s30, 0
      %p505 = por %p503, %p504
      %p506 = scmp.ne.s32.totalorder %s492, %s493
      %p507 = scmp.eq.s32.totalorder %s31, 1
      %p508 = por %p506, %p507
      %p510 = scmp.ne.s32.totalorder %s493, %s509
      %p511 = scmp.eq.s32.totalorder %s31, 0
      %p512 = por %p510, %p511
      %s513 = ssub.s32 %s32, %s44
      %p514 = scmp.eq.s32.totalorder %s513, 0
      %s516 = sadd.s32 %s515, 1
      %s517 = scalar_select %p514, %s515, %s516
      %p520 = pneg %p514
      %p521 = scmp.eq.s32.totalorder %s25, 1
      %p522 = por %p520, %p521
      %p523 = scmp.ne.s32.totalorder %s515, %s518
      %p524 = scmp.eq.s32.totalorder %s25, 0
      %p525 = por %p523, %p524
      %p526 = scmp.ne.s32.totalorder %s515, %s518
      %p527 = scmp.eq.s32.totalorder %s30, 1
      %p528 = por %p526, %p527
      %p529 = scmp.ne.s32.totalorder %s518, %s519
      %p530 = scmp.eq.s32.totalorder %s30, 0
      %p531 = por %p529, %p530
      %p532 = scmp.ne.s32.totalorder %s518, %s519
      %p533 = scmp.eq.s32.totalorder %s31, 1
      %p534 = por %p532, %p533
      %p536 = scmp.ne.s32.totalorder %s519, %s535
      %p537 = scmp.eq.s32.totalorder %s31, 0
      %p538 = por %p536, %p537
      %p539 = scmp.le.s32.totalorder 1, %s25
      %p540 = scmp.lt.s32.totalorder %s25, 3
      %p541 = pnand %p539, %p540
      %p542 = pneg %p541
      // Predicated region
      $region9: #{tpu_custom_call.1} parent=5 // pred_check
        _
      $region10: #{tpu_custom_call.1} parent=5 // pred_check_branch
        %544 = sbr.rel (%p541) target = $region12
      $region11: #{tpu_custom_call.1} parent=5 // pred_region
        %s545 = ssub.s32 %s25, 1
        // Predicated region
        $region13: #{tpu_custom_call.1} parent=11 // pred_check
          %p546 = pneg %p63
        $region14: #{tpu_custom_call.1} parent=11 // pred_check_branch
          %548 = sbr.rel (%p546) target = $region16
        $region15: #{tpu_custom_call.1} parent=11 // pred_region
          %s549 = smul.u32 2, %s34
          %p550 = scmp.lt.s32.totalorder %s549, 1
          %s551 = scalar_select %p550, %s549, 1
          %s552 = smul.addr %s551, 8
          %s553 = scalar_lea.vmem %s0, %s552
          %s554 = smul.u32 2, %s34
        $region16: #{tpu_custom_call.1} parent=11 // pred_fallthru
          _
        // Predicated region
        $region17: #{tpu_custom_call.1} parent=11 // pred_check
          %p555 = pneg %p89
        $region18: #{tpu_custom_call.1} parent=11 // pred_check_branch
          %557 = sbr.rel (%p555) target = $region20
        $region19: #{tpu_custom_call.1} parent=11 // pred_region
          %s558 = smul.u32 2, %s34
          %p559 = scmp.lt.s32.totalorder %s558, 1
          %s560 = scalar_select %p559, %s558, 1
          %s561 = scalar_lea.vmem %s1, %s560
          %s562 = smul.u32 2, %s34
        $region20: #{tpu_custom_call.1} parent=11 // pred_fallthru
          _
      $region12: #{tpu_custom_call.1} parent=5 // pred_fallthru
        _
      %p563 = scmp.lt.s32.totalorder %s25, 2
      // Predicated region
      $region21: #{tpu_custom_call.1} parent=5 // pred_check
        %p564 = pneg %p563
      $region22: #{tpu_custom_call.1} parent=5 // pred_check_branch
        %566 = sbr.rel (%p564) target = $region24
      $region23: #{tpu_custom_call.1} parent=5 // pred_region
        // Predicated region
        $region25: #{tpu_custom_call.1} parent=23 // pred_check
          %p567 = pneg %p109
        $region26: #{tpu_custom_call.1} parent=23 // pred_check_branch
          %569 = sbr.rel (%p567) target = $region28
        $region27: #{tpu_custom_call.1} parent=23 // pred_region
          %p570 = scmp.lt.s32.totalorder %s33, 1
          %s571 = scalar_select %p570, %s33, 1
          %s572 = smul.addr %s571, 16
          %s573 = smul.addr %s572, 4
          %s574 = scalar_lea.vmem %s2, %s573
        $region28: #{tpu_custom_call.1} parent=23 // pred_fallthru
          _
        // Predicated region
        $region29: #{tpu_custom_call.1} parent=23 // pred_check
          %p575 = pneg %p135
        $region30: #{tpu_custom_call.1} parent=23 // pred_check_branch
          %577 = sbr.rel (%p575) target = $region32
        $region31: #{tpu_custom_call.1} parent=23 // pred_region
          %p578 = scmp.lt.s32.totalorder %s33, 1
          %s579 = scalar_select %p578, %s33, 1
          %s580 = smul.addr %s579, 4
          %s581 = scalar_lea.vmem %s3, %s580
        $region32: #{tpu_custom_call.1} parent=23 // pred_fallthru
          _
        // Predicated region
        $region33: #{tpu_custom_call.1} parent=23 // pred_check
          %p582 = pneg %p161
        $region34: #{tpu_custom_call.1} parent=23 // pred_check_branch
          %584 = sbr.rel (%p582) target = $region36
        $region35: #{tpu_custom_call.1} parent=23 // pred_region
          %p585 = scmp.lt.s32.totalorder %s33, 1
          %s586 = scalar_select %p585, %s33, 1
          %s587 = smul.addr %s586, 16
          %s588 = smul.addr %s587, 4
          %s589 = scalar_lea.vmem %s4, %s588
        $region36: #{tpu_custom_call.1} parent=23 // pred_fallthru
          _
        // Predicated region
        $region37: #{tpu_custom_call.1} parent=23 // pred_check
          %p590 = pneg %p187
        $region38: #{tpu_custom_call.1} parent=23 // pred_check_branch
          %592 = sbr.rel (%p590) target = $region40
        $region39: #{tpu_custom_call.1} parent=23 // pred_region
          %p593 = scmp.lt.s32.totalorder %s33, 1
          %s594 = scalar_select %p593, %s33, 1
          %s595 = smul.addr %s594, 4
          %s596 = scalar_lea.vmem %s5, %s595
        $region40: #{tpu_custom_call.1} parent=23 // pred_fallthru
          _
        // Predicated region
        $region41: #{tpu_custom_call.1} parent=23 // pred_check
          %p597 = pneg %p213
        $region42: #{tpu_custom_call.1} parent=23 // pred_check_branch
          %599 = sbr.rel (%p597) target = $region44
        $region43: #{tpu_custom_call.1} parent=23 // pred_region
          %p600 = scmp.lt.s32.totalorder %s33, 1
          %s601 = scalar_select %p600, %s33, 1
          %s602 = smul.addr %s601, 16
          %s603 = smul.addr %s602, 4
          %s604 = scalar_lea.vmem %s6, %s603
        $region44: #{tpu_custom_call.1} parent=23 // pred_fallthru
          _
        // Predicated region
        $region45: #{tpu_custom_call.1} parent=23 // pred_check
          %p605 = pneg %p239
        $region46: #{tpu_custom_call.1} parent=23 // pred_check_branch
          %607 = sbr.rel (%p605) target = $region48
        $region47: #{tpu_custom_call.1} parent=23 // pred_region
          %p608 = scmp.lt.s32.totalorder %s33, 1
          %s609 = scalar_select %p608, %s33, 1
          %s610 = smul.addr %s609, 4
          %s611 = scalar_lea.vmem %s7, %s610
        $region48: #{tpu_custom_call.1} parent=23 // pred_fallthru
          _
        // Predicated region
        $region49: #{tpu_custom_call.1} parent=23 // pred_check
          %p612 = pneg %p265
        $region50: #{tpu_custom_call.1} parent=23 // pred_check_branch
          %614 = sbr.rel (%p612) target = $region52
        $region51: #{tpu_custom_call.1} parent=23 // pred_region
          %p615 = scmp.lt.s32.totalorder %s33, 1
          %s616 = scalar_select %p615, %s33, 1
          %s617 = smul.addr %s616, 4
          %s618 = smul.addr %s617, 4
          %s619 = scalar_lea.vmem %s8, %s618
        $region52: #{tpu_custom_call.1} parent=23 // pred_fallthru
          _
        // Predicated region
        $region53: #{tpu_custom_call.1} parent=23 // pred_check
          %p620 = pneg %p291
        $region54: #{tpu_custom_call.1} parent=23 // pred_check_branch
          %622 = sbr.rel (%p620) target = $region56
        $region55: #{tpu_custom_call.1} parent=23 // pred_region
          %p623 = scmp.lt.s32.totalorder %s33, 1
          %s624 = scalar_select %p623, %s33, 1
          %s625 = scalar_lea.vmem %s9, %s624
        $region56: #{tpu_custom_call.1} parent=23 // pred_fallthru
          _
        // Predicated region
        $region57: #{tpu_custom_call.1} parent=23 // pred_check
          %p626 = pneg %p317
        $region58: #{tpu_custom_call.1} parent=23 // pred_check_branch
          %628 = sbr.rel (%p626) target = $region60
        $region59: #{tpu_custom_call.1} parent=23 // pred_region
          %p629 = scmp.lt.s32.totalorder %s33, 1
          %s630 = scalar_select %p629, %s33, 1
          %s631 = scalar_lea.vmem %s10, %s630
        $region60: #{tpu_custom_call.1} parent=23 // pred_fallthru
          _
        // Predicated region
        $region61: #{tpu_custom_call.1} parent=23 // pred_check
          %p632 = pneg %p343
        $region62: #{tpu_custom_call.1} parent=23 // pred_check_branch
          %634 = sbr.rel (%p632) target = $region64
        $region63: #{tpu_custom_call.1} parent=23 // pred_region
          %p635 = scmp.lt.s32.totalorder %s33, 1
          %s636 = scalar_select %p635, %s33, 1
          %s637 = scalar_lea.vmem %s11, %s636
        $region64: #{tpu_custom_call.1} parent=23 // pred_fallthru
          _
        // Predicated region
        $region65: #{tpu_custom_call.1} parent=23 // pred_check
          %p638 = pneg %p369
        $region66: #{tpu_custom_call.1} parent=23 // pred_check_branch
          %640 = sbr.rel (%p638) target = $region68
        $region67: #{tpu_custom_call.1} parent=23 // pred_region
          %p641 = scmp.lt.s32.totalorder %s33, 1
          %s642 = scalar_select %p641, %s33, 1
          %s643 = smul.addr %s642, 4
          %s644 = smul.addr %s643, 4
          %s645 = scalar_lea.vmem %s12, %s644
        $region68: #{tpu_custom_call.1} parent=23 // pred_fallthru
          _
        // Predicated region
        $region69: #{tpu_custom_call.1} parent=23 // pred_check
          %p646 = pneg %p395
        $region70: #{tpu_custom_call.1} parent=23 // pred_check_branch
          %648 = sbr.rel (%p646) target = $region72
        $region71: #{tpu_custom_call.1} parent=23 // pred_region
          %p649 = scmp.lt.s32.totalorder %s33, 1
          %s650 = scalar_select %p649, %s33, 1
          %s651 = scalar_lea.vmem %s13, %s650
        $region72: #{tpu_custom_call.1} parent=23 // pred_fallthru
          _
        // Predicated region
        $region73: #{tpu_custom_call.1} parent=23 // pred_check
          %p652 = pneg %p421
        $region74: #{tpu_custom_call.1} parent=23 // pred_check_branch
          %654 = sbr.rel (%p652) target = $region76
        $region75: #{tpu_custom_call.1} parent=23 // pred_region
          %p655 = scmp.lt.s32.totalorder %s33, 1
          %s656 = scalar_select %p655, %s33, 1
          %s657 = smul.addr %s656, 8
          %s658 = smul.addr %s657, 4
          %s659 = scalar_lea.vmem %s14, %s658
        $region76: #{tpu_custom_call.1} parent=23 // pred_fallthru
          _
        // Predicated region
        $region77: #{tpu_custom_call.1} parent=23 // pred_check
          %p660 = pneg %p447
        $region78: #{tpu_custom_call.1} parent=23 // pred_check_branch
          %662 = sbr.rel (%p660) target = $region80
        $region79: #{tpu_custom_call.1} parent=23 // pred_region
          %p663 = scmp.lt.s32.totalorder %s33, 1
          %s664 = scalar_select %p663, %s33, 1
          %s665 = scalar_lea.vmem %s15, %s664
        $region80: #{tpu_custom_call.1} parent=23 // pred_fallthru
          _
        // Predicated region
        $region81: #{tpu_custom_call.1} parent=23 // pred_check
          %p666 = pneg %p473
        $region82: #{tpu_custom_call.1} parent=23 // pred_check_branch
          %668 = sbr.rel (%p666) target = $region84
        $region83: #{tpu_custom_call.1} parent=23 // pred_region
          %p669 = scmp.lt.s32.totalorder %s33, 1
          %s670 = scalar_select %p669, %s33, 1
          %s671 = scalar_lea.vmem %s16, %s670
        $region84: #{tpu_custom_call.1} parent=23 // pred_fallthru
          _
        // Predicated region
        $region85: #{tpu_custom_call.1} parent=23 // pred_check
          %p672 = pneg %p499
        $region86: #{tpu_custom_call.1} parent=23 // pred_check_branch
          %674 = sbr.rel (%p672) target = $region88
        $region87: #{tpu_custom_call.1} parent=23 // pred_region
          %p675 = scmp.lt.s32.totalorder %s33, 1
          %s676 = scalar_select %p675, %s33, 1
          %s677 = scalar_lea.vmem %s17, %s676
        $region88: #{tpu_custom_call.1} parent=23 // pred_fallthru
          _
      $region24: #{tpu_custom_call.1} parent=5 // pred_fallthru
        _
      %p678 = scmp.le.s32.totalorder 1, %s25
      %p679 = scmp.lt.s32.totalorder %s25, 3
      %p680 = pnand %p678, %p679
      %p681 = pneg %p680
      // Predicated region
      $region89: #{tpu_custom_call.1} parent=5 // pred_check
        _
      $region90: #{tpu_custom_call.1} parent=5 // pred_check_branch
        %683 = sbr.rel (%p680) target = $region92
      $region91: #{tpu_custom_call.1} parent=5 // pred_region
        %s684 = ssub.s32 %s25, 1
        %s685 = smul.u32 2, %s34
        %p686 = scmp.lt.s32.totalorder %s685, 1
        %s687 = scalar_select %p686, %s685, 1
        %s688 = smul.addr %s687, 8
        %s689 = scalar_lea.vmem %s0, %s688
        %p690 = pneg %p63
        %p691 = pneg %p60
        %s692 = smul.u32 2, %s34
        %p693 = scmp.lt.s32.totalorder %s692, 1
        %s694 = scalar_select %p693, %s692, 1
        %s695 = scalar_lea.vmem %s1, %s694
        %p696 = pneg %p89
        %p697 = pneg %p86
        %p698 = scmp.lt.s32.totalorder %s35, 1
        %s699 = scalar_select %p698, %s35, 1
        %s700 = smul.addr %s699, 16
        %s701 = smul.addr %s700, 4
        %s702 = scalar_lea.vmem %s2, %s701
        %p703 = pneg %p115
        %p704 = pneg %p112
        %p705 = scmp.lt.s32.totalorder %s35, 1
        %s706 = scalar_select %p705, %s35, 1
        %s707 = smul.addr %s706, 4
        %s708 = scalar_lea.vmem %s3, %s707
        %p709 = pneg %p141
        %p710 = pneg %p138
        %p711 = scmp.lt.s32.totalorder %s35, 1
        %s712 = scalar_select %p711, %s35, 1
        %s713 = smul.addr %s712, 16
        %s714 = smul.addr %s713, 4
        %s715 = scalar_lea.vmem %s4, %s714
        %p716 = pneg %p167
        %p717 = pneg %p164
        %p718 = scmp.lt.s32.totalorder %s35, 1
        %s719 = scalar_select %p718, %s35, 1
        %s720 = smul.addr %s719, 4
        %s721 = scalar_lea.vmem %s5, %s720
        %p722 = pneg %p193
        %p723 = pneg %p190
        %p724 = scmp.lt.s32.totalorder %s35, 1
        %s725 = scalar_select %p724, %s35, 1
        %s726 = smul.addr %s725, 16
        %s727 = smul.addr %s726, 4
        %s728 = scalar_lea.vmem %s6, %s727
        %p729 = pneg %p219
        %p730 = pneg %p216
        %p731 = scmp.lt.s32.totalorder %s35, 1
        %s732 = scalar_select %p731, %s35, 1
        %s733 = smul.addr %s732, 4
        %s734 = scalar_lea.vmem %s7, %s733
        %p735 = pneg %p245
        %p736 = pneg %p242
        %p737 = scmp.lt.s32.totalorder %s35, 1
        %s738 = scalar_select %p737, %s35, 1
        %s739 = smul.addr %s738, 4
        %s740 = smul.addr %s739, 4
        %s741 = scalar_lea.vmem %s8, %s740
        %p742 = pneg %p271
        %p743 = pneg %p268
        %p744 = scmp.lt.s32.totalorder %s35, 1
        %s745 = scalar_select %p744, %s35, 1
        %s746 = scalar_lea.vmem %s9, %s745
        %p747 = pneg %p297
        %p748 = pneg %p294
        %p749 = scmp.lt.s32.totalorder %s35, 1
        %s750 = scalar_select %p749, %s35, 1
        %s751 = scalar_lea.vmem %s10, %s750
        %p752 = pneg %p323
        %p753 = pneg %p320
        %p754 = scmp.lt.s32.totalorder %s35, 1
        %s755 = scalar_select %p754, %s35, 1
        %s756 = scalar_lea.vmem %s11, %s755
        %p757 = pneg %p349
        %p758 = pneg %p346
        %p759 = scmp.lt.s32.totalorder %s35, 1
        %s760 = scalar_select %p759, %s35, 1
        %s761 = smul.addr %s760, 4
        %s762 = smul.addr %s761, 4
        %s763 = scalar_lea.vmem %s12, %s762
        %p764 = pneg %p375
        %p765 = pneg %p372
        %p766 = scmp.lt.s32.totalorder %s35, 1
        %s767 = scalar_select %p766, %s35, 1
        %s768 = scalar_lea.vmem %s13, %s767
        %p769 = pneg %p401
        %p770 = pneg %p398
        %p771 = scmp.lt.s32.totalorder %s35, 1
        %s772 = scalar_select %p771, %s35, 1
        %s773 = smul.addr %s772, 8
        %s774 = smul.addr %s773, 4
        %s775 = scalar_lea.vmem %s14, %s774
        %p776 = pneg %p427
        %p777 = pneg %p424
        %p778 = scmp.lt.s32.totalorder %s35, 1
        %s779 = scalar_select %p778, %s35, 1
        %s780 = scalar_lea.vmem %s15, %s779
        %p781 = pneg %p453
        %p782 = pneg %p450
        %p783 = scmp.lt.s32.totalorder %s35, 1
        %s784 = scalar_select %p783, %s35, 1
        %s785 = scalar_lea.vmem %s16, %s784
        %p786 = pneg %p479
        %p787 = pneg %p476
        %p788 = scmp.lt.s32.totalorder %s35, 1
        %s789 = scalar_select %p788, %s35, 1
        %s790 = scalar_lea.vmem %s17, %s789
        %p791 = pneg %p505
        %p792 = pneg %p502
        %p793 = pneg %p531
        %p794 = pneg %p528
        %s795 = smul.u32 2, %s34
        %p796 = scmp.lt.s32.totalorder %s795, 1
        %s797 = scalar_select %p796, %s795, 1
        %s798 = smul.addr %s797, 8
        %s799 = scalar_lea.vmem %s0, %s798
        %s800 = smul.u32 2, %s34
        %s801 = smul.u32 2, %s34
        %p802 = scmp.lt.s32.totalorder %s801, 1
        %s803 = scalar_select %p802, %s801, 1
        %s804 = scalar_lea.vmem %s1, %s803
        %s805 = smul.u32 2, %s34
        %p806 = scmp.lt.s32.totalorder %s35, 1
        %s807 = scalar_select %p806, %s35, 1
        %s808 = smul.addr %s807, 16
        %s809 = smul.addr %s808, 4
        %s810 = scalar_lea.vmem %s2, %s809
        %p811 = scmp.lt.s32.totalorder %s35, 1
        %s812 = scalar_select %p811, %s35, 1
        %s813 = smul.addr %s812, 4
        %s814 = scalar_lea.vmem %s3, %s813
        %p815 = scmp.lt.s32.totalorder %s35, 1
        %s816 = scalar_select %p815, %s35, 1
        %s817 = smul.addr %s816, 16
        %s818 = smul.addr %s817, 4
        %s819 = scalar_lea.vmem %s4, %s818
        %p820 = scmp.lt.s32.totalorder %s35, 1
        %s821 = scalar_select %p820, %s35, 1
        %s822 = smul.addr %s821, 4
        %s823 = scalar_lea.vmem %s5, %s822
        %p824 = scmp.lt.s32.totalorder %s35, 1
        %s825 = scalar_select %p824, %s35, 1
        %s826 = smul.addr %s825, 16
        %s827 = smul.addr %s826, 4
        %s828 = scalar_lea.vmem %s6, %s827
        %p829 = scmp.lt.s32.totalorder %s35, 1
        %s830 = scalar_select %p829, %s35, 1
        %s831 = smul.addr %s830, 4
        %s832 = scalar_lea.vmem %s7, %s831
        %p833 = scmp.lt.s32.totalorder %s35, 1
        %s834 = scalar_select %p833, %s35, 1
        %s835 = smul.addr %s834, 4
        %s836 = smul.addr %s835, 4
        %s837 = scalar_lea.vmem %s8, %s836
        %p838 = scmp.lt.s32.totalorder %s35, 1
        %s839 = scalar_select %p838, %s35, 1
        %s840 = scalar_lea.vmem %s9, %s839
        %p841 = scmp.lt.s32.totalorder %s35, 1
        %s842 = scalar_select %p841, %s35, 1
        %s843 = scalar_lea.vmem %s10, %s842
        %p844 = scmp.lt.s32.totalorder %s35, 1
        %s845 = scalar_select %p844, %s35, 1
        %s846 = scalar_lea.vmem %s11, %s845
        %p847 = scmp.lt.s32.totalorder %s35, 1
        %s848 = scalar_select %p847, %s35, 1
        %s849 = smul.addr %s848, 4
        %s850 = smul.addr %s849, 4
        %s851 = scalar_lea.vmem %s12, %s850
        %p852 = scmp.lt.s32.totalorder %s35, 1
        %s853 = scalar_select %p852, %s35, 1
        %s854 = scalar_lea.vmem %s13, %s853
        %p855 = scmp.lt.s32.totalorder %s35, 1
        %s856 = scalar_select %p855, %s35, 1
        %s857 = smul.addr %s856, 8
        %s858 = smul.addr %s857, 4
        %s859 = scalar_lea.vmem %s14, %s858
        %p860 = scmp.lt.s32.totalorder %s35, 1
        %s861 = scalar_select %p860, %s35, 1
        %s862 = scalar_lea.vmem %s15, %s861
        %p863 = scmp.lt.s32.totalorder %s35, 1
        %s864 = scalar_select %p863, %s35, 1
        %s865 = scalar_lea.vmem %s16, %s864
        %p866 = scmp.lt.s32.totalorder %s35, 1
        %s867 = scalar_select %p866, %s35, 1
        %s868 = scalar_lea.vmem %s17, %s867
        %s869 = smul.u32 2, %s34
        %p871 = scmp.eq.s32.totalorder %s35, 0
        // Predicated region
        $region93: #{tpu_custom_call.1} parent=91 // pred_check
          %p872 = pneg %p871
        $region94: #{tpu_custom_call.1} parent=91 // pred_check_branch
          %874 = sbr.rel (%p872) target = $region96
        $region95: #{tpu_custom_call.1} parent=91 // pred_region
          %v875 = vld [vmem:[%s799] sm:$0xff]
          %v876 = vld [vmem:[%s799 + $0x8] sm:$0xff]
          %vm877 = vcmask 261120
          %878 = vst.msk [vmem:[#allocation2] sm:$0xff] %vm877, %v875
          %879 = vst.msk [vmem:[#allocation2 + $0x8] sm:$0xff] %vm877, %v876
        $region96: #{tpu_custom_call.1} parent=91 // pred_fallthru
          _
        %v880 = vld [vmem:[#allocation2] sm:$0xff]
        %v881 = vld [vmem:[#allocation2 + $0x8] sm:$0xff]
        %v882 = vld [vmem:[%s804] sm:$0x1]
        %v883 = vld [vmem:[%s804 + $0x1] sm:$0x1]
        %v884 = vpack.c.bf16 %v881, %v880
        %v885 = vld [vmem:[%s810] sm:$0xf]
        %v886 = vld [vmem:[%s810 + $0x4] sm:$0xf]
        %v887 = vld [vmem:[%s810 + $0x8] sm:$0xf]
        %v888 = vld [vmem:[%s810 + $0xc] sm:$0xf]
        %v889 = vld [vmem:[%s814] sm:$0x1]
        %v891 = vlaneseq
        %v892 = vshrl.u32 %v891, 7
        %v893 = vsub.s32 0, %v892
        %v894 = vrot.slane %v889, %v893
        %v900 = vunpack.c.l.b16 %v885
        %v901 = vunpack.c.l.b16 %v886
        %v902 = vunpack.c.l.b16 %v887
        %v903 = vunpack.c.l.b16 %v888
        %v904 = vpack.c.b16 %v901, %v900
        %v905 = vpack.c.b16 %v903, %v902
        %vm908 = vcmask 261120
        %v910 = vsel %vm908, %v884, 0
        %912 = vmatprep.subr.bf16.mxu0 0
        %913 = vmatpush1.bf16.msra.mxu0 0
        %914 = vmatprep.subr.bf16.mxu0 0
        %915 = vmatpush1.bf16.msra.mxu0 0
        %916 = vmatprep.subr.bf16.mxu0 0
        %917 = vmatpush1.bf16.msra.mxu0 0
        %918 = vmatprep.subr.bf16.mxu0 0
        %919 = vmatpush1.bf16.msra.mxu0 0
        %920 = vmatprep.subr.bf16.mxu0 0
        %921 = vmatpush1.bf16.msra.mxu0 0
        %922 = vmatprep.subr.bf16.mxu0 0
        %923 = vmatpush1.bf16.msra.mxu0 0
        %924 = vmatprep.subr.bf16.mxu0 0
        %925 = vmatpush1.bf16.msra.mxu0 %v905
        %926 = vmatprep.subr.bf16.mxu0 0
        %927 = vmatpush1.bf16.msra.mxu0 %v904
        %928 = vmatprep.subr.bf16.mxu0 0
        %929 = vmatpush2.bf16.msra.mxu0 0
        %930 = vmatprep.subr.bf16.mxu0 0
        %931 = vmatpush2.bf16.msra.mxu0 0
        %932 = vmatprep.subr.bf16.mxu0 0
        %933 = vmatpush2.bf16.msra.mxu0 0
        %934 = vmatprep.subr.bf16.mxu0 0
        %935 = vmatpush2.bf16.msra.mxu0 0
        %936 = vmatprep.subr.bf16.mxu0 0
        %937 = vmatpush2.bf16.msra.mxu0 0
        %938 = vmatprep.subr.bf16.mxu0 0
        %939 = vmatpush2.bf16.msra.mxu0 0
        %940 = vmatprep.subr.bf16.mxu0 0
        %941 = vmatpush2.bf16.msra.mxu0 0
        %942 = vmatprep.subr.bf16.mxu0 0
        %943 = vmatpush2.bf16.msra.mxu0 0
        %944 = vmatprep.mubr.bf16.mxu0 0
        %945 = vmatmul.mubr.bf16.gmra.mxu0 %v910
        %v946 = vpop.f32.mrf.mxu0
        %v947 = vadd.f32 %v894, %v946
        %v948 = vpop.f32.mrf.mxu0
        %v949 = vpop.f32.mrf.mxu0
        %v950 = vadd.f32 %v894, %v949
        %v951 = vpop.f32.mrf.mxu0
        %952 = vdwg.mxu0
        %v953 = vmul.f32 %v947, 0.35355338
        %v954 = vmul.f32 %v950, 0.35355338
        %v955 = vld [vmem:[%s819] sm:$0xf]
        %v956 = vld [vmem:[%s819 + $0x4] sm:$0xf]
        %v957 = vld [vmem:[%s819 + $0x8] sm:$0xf]
        %v958 = vld [vmem:[%s819 + $0xc] sm:$0xf]
        %v959 = vld [vmem:[%s823] sm:$0x1]
        %v961 = vlaneseq
        %v962 = vshrl.u32 %v961, 7
        %v963 = vsub.s32 0, %v962
        %v964 = vrot.slane %v959, %v963
        %v970 = vunpack.c.l.b16 %v955
        %v971 = vunpack.c.l.b16 %v956
        %v972 = vunpack.c.l.b16 %v957
        %v973 = vunpack.c.l.b16 %v958
        %v974 = vpack.c.b16 %v971, %v970
        %v975 = vpack.c.b16 %v973, %v972
        %978 = vmatprep.subr.bf16.mxu0 0
        %979 = vmatpush1.bf16.msra.mxu0 0
        %980 = vmatprep.subr.bf16.mxu0 0
        %981 = vmatpush1.bf16.msra.mxu0 0
        %982 = vmatprep.subr.bf16.mxu0 0
        %983 = vmatpush1.bf16.msra.mxu0 0
        %984 = vmatprep.subr.bf16.mxu0 0
        %985 = vmatpush1.bf16.msra.mxu0 0
        %986 = vmatprep.subr.bf16.mxu0 0
        %987 = vmatpush1.bf16.msra.mxu0 0
        %988 = vmatprep.subr.bf16.mxu0 0
        %989 = vmatpush1.bf16.msra.mxu0 0
        %990 = vmatprep.subr.bf16.mxu0 0
        %991 = vmatpush1.bf16.msra.mxu0 %v975
        %992 = vmatprep.subr.bf16.mxu0 0
        %993 = vmatpush1.bf16.msra.mxu0 %v974
        %994 = vmatprep.subr.bf16.mxu0 0
        %995 = vmatpush2.bf16.msra.mxu0 0
        %996 = vmatprep.subr.bf16.mxu0 0
        %997 = vmatpush2.bf16.msra.mxu0 0
        %998 = vmatprep.subr.bf16.mxu0 0
        %999 = vmatpush2.bf16.msra.mxu0 0
        %1000 = vmatprep.subr.bf16.mxu0 0
        %1001 = vmatpush2.bf16.msra.mxu0 0
        %1002 = vmatprep.subr.bf16.mxu0 0
        %1003 = vmatpush2.bf16.msra.mxu0 0
        %1004 = vmatprep.subr.bf16.mxu0 0
        %1005 = vmatpush2.bf16.msra.mxu0 0
        %1006 = vmatprep.subr.bf16.mxu0 0
        %1007 = vmatpush2.bf16.msra.mxu0 0
        %1008 = vmatprep.subr.bf16.mxu0 0
        %1009 = vmatpush2.bf16.msra.mxu0 0
        %1010 = vmatprep.mubr.bf16.mxu0 0
        %1011 = vmatmul.mubr.bf16.gmra.mxu0 %v910
        %v1012 = vpop.f32.mrf.mxu0
        %v1013 = vadd.f32 %v964, %v1012
        %v1014 = vpop.f32.mrf.mxu0
        %v1015 = vpop.f32.mrf.mxu0
        %v1016 = vadd.f32 %v964, %v1015
        %v1017 = vpop.f32.mrf.mxu0
        %1018 = vdwg.mxu0
        %v1019 = vld [vmem:[%s828] sm:$0xf]
        %v1020 = vld [vmem:[%s828 + $0x4] sm:$0xf]
        %v1021 = vld [vmem:[%s828 + $0x8] sm:$0xf]
        %v1022 = vld [vmem:[%s828 + $0xc] sm:$0xf]
        %v1023 = vld [vmem:[%s832] sm:$0x1]
        %v1025 = vlaneseq
        %v1026 = vshrl.u32 %v1025, 7
        %v1027 = vsub.s32 0, %v1026
        %v1028 = vrot.slane %v1023, %v1027
        %v1034 = vunpack.c.l.b16 %v1019
        %v1035 = vunpack.c.l.b16 %v1020
        %v1036 = vunpack.c.l.b16 %v1021
        %v1037 = vunpack.c.l.b16 %v1022
        %v1038 = vpack.c.b16 %v1035, %v1034
        %v1039 = vpack.c.b16 %v1037, %v1036
        %1042 = vmatprep.subr.bf16.mxu0 0
        %1043 = vmatpush1.bf16.msra.mxu0 0
        %1044 = vmatprep.subr.bf16.mxu0 0
        %1045 = vmatpush1.bf16.msra.mxu0 0
        %1046 = vmatprep.subr.bf16.mxu0 0
        %1047 = vmatpush1.bf16.msra.mxu0 0
        %1048 = vmatprep.subr.bf16.mxu0 0
        %1049 = vmatpush1.bf16.msra.mxu0 0
        %1050 = vmatprep.subr.bf16.mxu0 0
        %1051 = vmatpush1.bf16.msra.mxu0 0
        %1052 = vmatprep.subr.bf16.mxu0 0
        %1053 = vmatpush1.bf16.msra.mxu0 0
        %1054 = vmatprep.subr.bf16.mxu0 0
        %1055 = vmatpush1.bf16.msra.mxu0 %v1039
        %1056 = vmatprep.subr.bf16.mxu0 0
        %1057 = vmatpush1.bf16.msra.mxu0 %v1038
        %1058 = vmatprep.subr.bf16.mxu0 0
        %1059 = vmatpush2.bf16.msra.mxu0 0
        %1060 = vmatprep.subr.bf16.mxu0 0
        %1061 = vmatpush2.bf16.msra.mxu0 0
        %1062 = vmatprep.subr.bf16.mxu0 0
        %1063 = vmatpush2.bf16.msra.mxu0 0
        %1064 = vmatprep.subr.bf16.mxu0 0
        %1065 = vmatpush2.bf16.msra.mxu0 0
        %1066 = vmatprep.subr.bf16.mxu0 0
        %1067 = vmatpush2.bf16.msra.mxu0 0
        %1068 = vmatprep.subr.bf16.mxu0 0
        %1069 = vmatpush2.bf16.msra.mxu0 0
        %1070 = vmatprep.subr.bf16.mxu0 0
        %1071 = vmatpush2.bf16.msra.mxu0 0
        %1072 = vmatprep.subr.bf16.mxu0 0
        %1073 = vmatpush2.bf16.msra.mxu0 0
        %1074 = vmatprep.mubr.bf16.mxu0 0
        %1075 = vmatmul.mubr.bf16.gmra.mxu0 %v910
        %v1076 = vpop.f32.mrf.mxu0
        %v1077 = vadd.f32 %v1028, %v1076
        %v1078 = vpop.f32.mrf.mxu0
        %v1079 = vpop.f32.mrf.mxu0
        %v1080 = vadd.f32 %v1028, %v1079
        %v1081 = vpop.f32.mrf.mxu0
        %1082 = vdwg.mxu0
        %v1083 = vpack.c.bf16 %v953, %v953
        %v1084 = vpack.c.bf16 %v954, %v954
        %v1085 = vpack.c.bf16 %v1013, %v1013
        %v1086 = vpack.c.bf16 %v1016, %v1016
        %v1087 = vpack.c.bf16 %v1077, %v1077
        %v1088 = vpack.c.bf16 %v1080, %v1080
        %v1091 = vlaneseq
        %v1092 = vshrl.u32 %v1091, 7
        %v1093 = vsub.s32 0, %v1092
        %v1094 = vrot.slane %v882, %v1093
        %v1095 = vlaneseq
        %v1096 = vshrl.u32 %v1095, 7
        %v1097 = vsub.s32 0, %v1096
        %v1098 = vrot.slane %v883, %v1097
        %vm1101 = vcmask 64512
        %v1103 = vsel %vm1101, %v1083, 0
        %v1106 = vsel %vm1101, %v1085, 0
        %1108 = vmatprep.subr.bf16.mxu0 0
        %1109 = vmatpush1.bf16.xpose.msra.mxu0 0
        %1110 = vmatprep.subr.bf16.mxu0 0
        %1111 = vmatpush1.bf16.xpose.msra.mxu0 0
        %1112 = vmatprep.subr.bf16.mxu0 0
        %1113 = vmatpush1.bf16.xpose.msra.mxu0 0
        %1114 = vmatprep.subr.bf16.mxu0 0
        %1115 = vmatpush1.bf16.xpose.msra.mxu0 0
        %1116 = vmatprep.subr.bf16.mxu0 0
        %1117 = vmatpush1.bf16.xpose.msra.mxu0 0
        %1118 = vmatprep.subr.bf16.mxu0 0
        %1119 = vmatpush1.bf16.xpose.msra.mxu0 0
        %1120 = vmatprep.subr.bf16.mxu0 0
        %1121 = vmatpush1.bf16.xpose.msra.mxu0 0
        %1122 = vmatprep.subr.bf16.mxu0 0
        %1123 = vmatpush1.bf16.xpose.msra.mxu0 %v1106
        %1124 = vmatprep.subr.bf16.mxu0 0
        %1125 = vmatpush2.bf16.xpose.msra.mxu0 0
        %1126 = vmatprep.subr.bf16.mxu0 0
        %1127 = vmatpush2.bf16.xpose.msra.mxu0 0
        %1128 = vmatprep.subr.bf16.mxu0 0
        %1129 = vmatpush2.bf16.xpose.msra.mxu0 0
        %1130 = vmatprep.subr.bf16.mxu0 0
        %1131 = vmatpush2.bf16.xpose.msra.mxu0 0
        %1132 = vmatprep.subr.bf16.mxu0 0
        %1133 = vmatpush2.bf16.xpose.msra.mxu0 0
        %1134 = vmatprep.subr.bf16.mxu0 0
        %1135 = vmatpush2.bf16.xpose.msra.mxu0 0
        %1136 = vmatprep.subr.bf16.mxu0 0
        %1137 = vmatpush2.bf16.xpose.msra.mxu0 0
        %1138 = vmatprep.subr.bf16.mxu0 0
        %1139 = vmatpush2.bf16.xpose.msra.mxu0 0
        %1140 = vmatprep.mubr.bf16.mxu0 0
        %1141 = vmatmul.mubr.bf16.gmra.mxu0 %v1103
        %v1142 = vpop.f32.mrf.mxu0
        %v1143 = vadd.f32 %v1094, %v1142
        %v1144 = vpop.f32.mrf.mxu0
        %v1145 = vpop.f32.mrf.mxu0
        %v1146 = vpop.f32.mrf.mxu0
        %1147 = vdwg.mxu0
        %v1149 = vsel %vm1101, %v1084, 0
        %v1152 = vsel %vm1101, %v1086, 0
        %1154 = vmatprep.subr.bf16.mxu0 0
        %1155 = vmatpush1.bf16.xpose.msra.mxu0 0
        %1156 = vmatprep.subr.bf16.mxu0 0
        %1157 = vmatpush1.bf16.xpose.msra.mxu0 0
        %1158 = vmatprep.subr.bf16.mxu0 0
        %1159 = vmatpush1.bf16.xpose.msra.mxu0 0
        %1160 = vmatprep.subr.bf16.mxu0 0
        %1161 = vmatpush1.bf16.xpose.msra.mxu0 0
        %1162 = vmatprep.subr.bf16.mxu0 0
        %1163 = vmatpush1.bf16.xpose.msra.mxu0 0
        %1164 = vmatprep.subr.bf16.mxu0 0
        %1165 = vmatpush1.bf16.xpose.msra.mxu0 0
        %1166 = vmatprep.subr.bf16.mxu0 0
        %1167 = vmatpush1.bf16.xpose.msra.mxu0 0
        %1168 = vmatprep.subr.bf16.mxu0 0
        %1169 = vmatpush1.bf16.xpose.msra.mxu0 %v1152
        %1170 = vmatprep.subr.bf16.mxu0 0
        %1171 = vmatpush2.bf16.xpose.msra.mxu0 0
        %1172 = vmatprep.subr.bf16.mxu0 0
        %1173 = vmatpush2.bf16.xpose.msra.mxu0 0
        %1174 = vmatprep.subr.bf16.mxu0 0
        %1175 = vmatpush2.bf16.xpose.msra.mxu0 0
        %1176 = vmatprep.subr.bf16.mxu0 0
        %1177 = vmatpush2.bf16.xpose.msra.mxu0 0
        %1178 = vmatprep.subr.bf16.mxu0 0
        %1179 = vmatpush2.bf16.xpose.msra.mxu0 0
        %1180 = vmatprep.subr.bf16.mxu0 0
        %1181 = vmatpush2.bf16.xpose.msra.mxu0 0
        %1182 = vmatprep.subr.bf16.mxu0 0
        %1183 = vmatpush2.bf16.xpose.msra.mxu0 0
        %1184 = vmatprep.subr.bf16.mxu0 0
        %1185 = vmatpush2.bf16.xpose.msra.mxu0 0
        %1186 = vmatprep.mubr.bf16.mxu0 0
        %1187 = vmatmul.mubr.bf16.gmra.mxu0 %v1149
        %v1188 = vpop.f32.mrf.mxu0
        %v1189 = vadd.f32 %v1098, %v1188
        %v1190 = vpop.f32.mrf.mxu0
        %v1191 = vpop.f32.mrf.mxu0
        %v1192 = vpop.f32.mrf.mxu0
        %1193 = vdwg.mxu0
        %v1194 = vsel %vm1101, %v1143, -inf
        %1195 = vmax.xlane.f32.xlu0 %v1194
        %v1196 = vpop.xlane.xlu0 %1195
        %v1197 = vsel %vm1101, %v1189, -inf
        %1198 = vmax.xlane.f32.xlu0 %v1197
        %v1199 = vpop.xlane.xlu0 %1198
        %v1200 = vsub.f32 %v1143, %v1196
        %v1201 = vsub.f32 %v1189, %v1199
        %v1202 = vmul.f32 %v1200, 1.442695
        %v1203 = vpow.pop %v1202
        %v1204 = vmul.f32 %v1201, 1.442695
        %v1205 = vpow.pop %v1204
        %v1206 = vsel %vm1101, %v1203, 0.0
        %1207 = vadd.xlane.f32.xlu0 %v1206
        %v1208 = vpop.xlane.xlu0 %1207
        %v1209 = vsel %vm1101, %v1205, 0.0
        %1210 = vadd.xlane.f32.xlu0 %v1209
        %v1211 = vpop.xlane.xlu0 %1210
        %v1212 = vrcp.pop %v1208
        %v1213 = vmul.f32 %v1203, %v1212
        %v1214 = vrcp.pop %v1211
        %v1215 = vmul.f32 %v1205, %v1214
        %v1216 = vpack.c.bf16 %v1213, %v1213
        %v1217 = vpack.c.bf16 %v1215, %v1215
        %v1219 = vsel %vm1101, %v1216, 0
        %vm1221 = vcmask 1043456
        %v1223 = vsel %vm1221, %v1087, 0
        %1225 = vmatprep.subr.bf16.mxu0 0
        %1226 = vmatpush1.bf16.msra.mxu0 0
        %1227 = vmatprep.subr.bf16.mxu0 0
        %1228 = vmatpush1.bf16.msra.mxu0 0
        %1229 = vmatprep.subr.bf16.mxu0 0
        %1230 = vmatpush1.bf16.msra.mxu0 0
        %1231 = vmatprep.subr.bf16.mxu0 0
        %1232 = vmatpush1.bf16.msra.mxu0 0
        %1233 = vmatprep.subr.bf16.mxu0 0
        %1234 = vmatpush1.bf16.msra.mxu0 0
        %1235 = vmatprep.subr.bf16.mxu0 0
        %1236 = vmatpush1.bf16.msra.mxu0 0
        %1237 = vmatprep.subr.bf16.mxu0 0
        %1238 = vmatpush1.bf16.msra.mxu0 0
        %1239 = vmatprep.subr.bf16.mxu0 0
        %1240 = vmatpush1.bf16.msra.mxu0 %v1223
        %1241 = vmatprep.subr.bf16.mxu0 0
        %1242 = vmatpush2.bf16.msra.mxu0 0
        %1243 = vmatprep.subr.bf16.mxu0 0
        %1244 = vmatpush2.bf16.msra.mxu0 0
        %1245 = vmatprep.subr.bf16.mxu0 0
        %1246 = vmatpush2.bf16.msra.mxu0 0
        %1247 = vmatprep.subr.bf16.mxu0 0
        %1248 = vmatpush2.bf16.msra.mxu0 0
        %1249 = vmatprep.subr.bf16.mxu0 0
        %1250 = vmatpush2.bf16.msra.mxu0 0
        %1251 = vmatprep.subr.bf16.mxu0 0
        %1252 = vmatpush2.bf16.msra.mxu0 0
        %1253 = vmatprep.subr.bf16.mxu0 0
        %1254 = vmatpush2.bf16.msra.mxu0 0
        %1255 = vmatprep.subr.bf16.mxu0 0
        %1256 = vmatpush2.bf16.msra.mxu0 0
        %1257 = vmatprep.mubr.bf16.mxu0 0
        %1258 = vmatmul.mubr.bf16.gmra.mxu0 %v1219
        %v1259 = vpop.f32.mrf.mxu0
        %v1260 = vadd.f32 0.0, %v1259
        %v1261 = vpop.f32.mrf.mxu0
        %v1262 = vpop.f32.mrf.mxu0
        %v1263 = vpop.f32.mrf.mxu0
        %1264 = vdwg.mxu0
        %v1266 = vsel %vm1101, %v1217, 0
        %v1269 = vsel %vm1221, %v1088, 0
        %1271 = vmatprep.subr.bf16.mxu0 0
        %1272 = vmatpush1.bf16.msra.mxu0 0
        %1273 = vmatprep.subr.bf16.mxu0 0
        %1274 = vmatpush1.bf16.msra.mxu0 0
        %1275 = vmatprep.subr.bf16.mxu0 0
        %1276 = vmatpush1.bf16.msra.mxu0 0
        %1277 = vmatprep.subr.bf16.mxu0 0
        %1278 = vmatpush1.bf16.msra.mxu0 0
        %1279 = vmatprep.subr.bf16.mxu0 0
        %1280 = vmatpush1.bf16.msra.mxu0 0
        %1281 = vmatprep.subr.bf16.mxu0 0
        %1282 = vmatpush1.bf16.msra.mxu0 0
        %1283 = vmatprep.subr.bf16.mxu0 0
        %1284 = vmatpush1.bf16.msra.mxu0 0
        %1285 = vmatprep.subr.bf16.mxu0 0
        %1286 = vmatpush1.bf16.msra.mxu0 %v1269
        %1287 = vmatprep.subr.bf16.mxu0 0
        %1288 = vmatpush2.bf16.msra.mxu0 0
        %1289 = vmatprep.subr.bf16.mxu0 0
        %1290 = vmatpush2.bf16.msra.mxu0 0
        %1291 = vmatprep.subr.bf16.mxu0 0
        %1292 = vmatpush2.bf16.msra.mxu0 0
        %1293 = vmatprep.subr.bf16.mxu0 0
        %1294 = vmatpush2.bf16.msra.mxu0 0
        %1295 = vmatprep.subr.bf16.mxu0 0
        %1296 = vmatpush2.bf16.msra.mxu0 0
        %1297 = vmatprep.subr.bf16.mxu0 0
        %1298 = vmatpush2.bf16.msra.mxu0 0
        %1299 = vmatprep.subr.bf16.mxu0 0
        %1300 = vmatpush2.bf16.msra.mxu0 0
        %1301 = vmatprep.subr.bf16.mxu0 0
        %1302 = vmatpush2.bf16.msra.mxu0 0
        %1303 = vmatprep.mubr.bf16.mxu0 0
        %1304 = vmatmul.mubr.bf16.gmra.mxu0 %v1266
        %v1305 = vpop.f32.mrf.mxu0
        %v1306 = vadd.f32 0.0, %v1305
        %v1307 = vpop.f32.mrf.mxu0
        %v1308 = vpop.f32.mrf.mxu0
        %v1309 = vpop.f32.mrf.mxu0
        %1310 = vdwg.mxu0
        %v1311 = vpack.c.bf16 %v1306, %v1260
        %v1312 = vld [vmem:[%s837] sm:$0xf]
        %s1313 = scalar_lea.vmem %s810, 16
        %v1314 = vld [vmem:[%s1313] sm:$0xf]
        %v1315 = vld [vmem:[%s1313 + $0x4] sm:$0xf]
        %v1316 = vld [vmem:[%s1313 + $0x8] sm:$0xf]
        %v1317 = vld [vmem:[%s1313 + $0xc] sm:$0xf]
        %s1318 = scalar_lea.vmem %s814, 1
        %v1319 = vld [vmem:[%s1318] sm:$0x1]
        %v1321 = vlaneseq
        %v1322 = vshrl.u32 %v1321, 7
        %v1323 = vsub.s32 0, %v1322
        %v1324 = vrot.slane %v1319, %v1323
        %v1330 = vunpack.c.l.b16 %v1314
        %v1331 = vunpack.c.l.b16 %v1315
        %v1332 = vunpack.c.l.b16 %v1316
        %v1333 = vunpack.c.l.b16 %v1317
        %v1334 = vpack.c.b16 %v1331, %v1330
        %v1335 = vpack.c.b16 %v1333, %v1332
        %1338 = vmatprep.subr.bf16.mxu0 0
        %1339 = vmatpush1.bf16.msra.mxu0 0
        %1340 = vmatprep.subr.bf16.mxu0 0
        %1341 = vmatpush1.bf16.msra.mxu0 0
        %1342 = vmatprep.subr.bf16.mxu0 0
        %1343 = vmatpush1.bf16.msra.mxu0 0
        %1344 = vmatprep.subr.bf16.mxu0 0
        %1345 = vmatpush1.bf16.msra.mxu0 0
        %1346 = vmatprep.subr.bf16.mxu0 0
        %1347 = vmatpush1.bf16.msra.mxu0 0
        %1348 = vmatprep.subr.bf16.mxu0 0
        %1349 = vmatpush1.bf16.msra.mxu0 0
        %1350 = vmatprep.subr.bf16.mxu0 0
        %1351 = vmatpush1.bf16.msra.mxu0 %v1335
        %1352 = vmatprep.subr.bf16.mxu0 0
        %1353 = vmatpush1.bf16.msra.mxu0 %v1334
        %1354 = vmatprep.subr.bf16.mxu0 0
        %1355 = vmatpush2.bf16.msra.mxu0 0
        %1356 = vmatprep.subr.bf16.mxu0 0
        %1357 = vmatpush2.bf16.msra.mxu0 0
        %1358 = vmatprep.subr.bf16.mxu0 0
        %1359 = vmatpush2.bf16.msra.mxu0 0
        %1360 = vmatprep.subr.bf16.mxu0 0
        %1361 = vmatpush2.bf16.msra.mxu0 0
        %1362 = vmatprep.subr.bf16.mxu0 0
        %1363 = vmatpush2.bf16.msra.mxu0 0
        %1364 = vmatprep.subr.bf16.mxu0 0
        %1365 = vmatpush2.bf16.msra.mxu0 0
        %1366 = vmatprep.subr.bf16.mxu0 0
        %1367 = vmatpush2.bf16.msra.mxu0 0
        %1368 = vmatprep.subr.bf16.mxu0 0
        %1369 = vmatpush2.bf16.msra.mxu0 0
        %1370 = vmatprep.mubr.bf16.mxu0 0
        %1371 = vmatmul.mubr.bf16.gmra.mxu0 %v910
        %v1372 = vpop.f32.mrf.mxu0
        %v1373 = vadd.f32 %v1324, %v1372
        %v1374 = vpop.f32.mrf.mxu0
        %v1375 = vpop.f32.mrf.mxu0
        %v1376 = vadd.f32 %v1324, %v1375
        %v1377 = vpop.f32.mrf.mxu0
        %1378 = vdwg.mxu0
        %v1379 = vmul.f32 %v1373, 0.35355338
        %v1380 = vmul.f32 %v1376, 0.35355338
        %s1381 = scalar_lea.vmem %s819, 16
        %v1382 = vld [vmem:[%s1381] sm:$0xf]
        %v1383 = vld [vmem:[%s1381 + $0x4] sm:$0xf]
        %v1384 = vld [vmem:[%s1381 + $0x8] sm:$0xf]
        %v1385 = vld [vmem:[%s1381 + $0xc] sm:$0xf]
        %s1386 = scalar_lea.vmem %s823, 1
        %v1387 = vld [vmem:[%s1386] sm:$0x1]
        %v1389 = vlaneseq
        %v1390 = vshrl.u32 %v1389, 7
        %v1391 = vsub.s32 0, %v1390
        %v1392 = vrot.slane %v1387, %v1391
        %v1398 = vunpack.c.l.b16 %v1382
        %v1399 = vunpack.c.l.b16 %v1383
        %v1400 = vunpack.c.l.b16 %v1384
        %v1401 = vunpack.c.l.b16 %v1385
        %v1402 = vpack.c.b16 %v1399, %v1398
        %v1403 = vpack.c.b16 %v1401, %v1400
        %1406 = vmatprep.subr.bf16.mxu0 0
        %1407 = vmatpush1.bf16.msra.mxu0 0
        %1408 = vmatprep.subr.bf16.mxu0 0
        %1409 = vmatpush1.bf16.msra.mxu0 0
        %1410 = vmatprep.subr.bf16.mxu0 0
        %1411 = vmatpush1.bf16.msra.mxu0 0
        %1412 = vmatprep.subr.bf16.mxu0 0
        %1413 = vmatpush1.bf16.msra.mxu0 0
        %1414 = vmatprep.subr.bf16.mxu0 0
        %1415 = vmatpush1.bf16.msra.mxu0 0
        %1416 = vmatprep.subr.bf16.mxu0 0
        %1417 = vmatpush1.bf16.msra.mxu0 0
        %1418 = vmatprep.subr.bf16.mxu0 0
        %1419 = vmatpush1.bf16.msra.mxu0 %v1403
        %1420 = vmatprep.subr.bf16.mxu0 0
        %1421 = vmatpush1.bf16.msra.mxu0 %v1402
        %1422 = vmatprep.subr.bf16.mxu0 0
        %1423 = vmatpush2.bf16.msra.mxu0 0
        %1424 = vmatprep.subr.bf16.mxu0 0
        %1425 = vmatpush2.bf16.msra.mxu0 0
        %1426 = vmatprep.subr.bf16.mxu0 0
        %1427 = vmatpush2.bf16.msra.mxu0 0
        %1428 = vmatprep.subr.bf16.mxu0 0
        %1429 = vmatpush2.bf16.msra.mxu0 0
        %1430 = vmatprep.subr.bf16.mxu0 0
        %1431 = vmatpush2.bf16.msra.mxu0 0
        %1432 = vmatprep.subr.bf16.mxu0 0
        %1433 = vmatpush2.bf16.msra.mxu0 0
        %1434 = vmatprep.subr.bf16.mxu0 0
        %1435 = vmatpush2.bf16.msra.mxu0 0
        %1436 = vmatprep.subr.bf16.mxu0 0
        %1437 = vmatpush2.bf16.msra.mxu0 0
        %1438 = vmatprep.mubr.bf16.mxu0 0
        %1439 = vmatmul.mubr.bf16.gmra.mxu0 %v910
        %v1440 = vpop.f32.mrf.mxu0
        %v1441 = vadd.f32 %v1392, %v1440
        %v1442 = vpop.f32.mrf.mxu0
        %v1443 = vpop.f32.mrf.mxu0
        %v1444 = vadd.f32 %v1392, %v1443
        %v1445 = vpop.f32.mrf.mxu0
        %1446 = vdwg.mxu0
        %s1447 = scalar_lea.vmem %s828, 16
        %v1448 = vld [vmem:[%s1447] sm:$0xf]
        %v1449 = vld [vmem:[%s1447 + $0x4] sm:$0xf]
        %v1450 = vld [vmem:[%s1447 + $0x8] sm:$0xf]
        %v1451 = vld [vmem:[%s1447 + $0xc] sm:$0xf]
        %s1452 = scalar_lea.vmem %s832, 1
        %v1453 = vld [vmem:[%s1452] sm:$0x1]
        %v1455 = vlaneseq
        %v1456 = vshrl.u32 %v1455, 7
        %v1457 = vsub.s32 0, %v1456
        %v1458 = vrot.slane %v1453, %v1457
        %v1464 = vunpack.c.l.b16 %v1448
        %v1465 = vunpack.c.l.b16 %v1449
        %v1466 = vunpack.c.l.b16 %v1450
        %v1467 = vunpack.c.l.b16 %v1451
        %v1468 = vpack.c.b16 %v1465, %v1464
        %v1469 = vpack.c.b16 %v1467, %v1466
        %1472 = vmatprep.subr.bf16.mxu0 0
        %1473 = vmatpush1.bf16.msra.mxu0 0
        %1474 = vmatprep.subr.bf16.mxu0 0
        %1475 = vmatpush1.bf16.msra.mxu0 0
        %1476 = vmatprep.subr.bf16.mxu0 0
        %1477 = vmatpush1.bf16.msra.mxu0 0
        %1478 = vmatprep.subr.bf16.mxu0 0
        %1479 = vmatpush1.bf16.msra.mxu0 0
        %1480 = vmatprep.subr.bf16.mxu0 0
        %1481 = vmatpush1.bf16.msra.mxu0 0
        %1482 = vmatprep.subr.bf16.mxu0 0
        %1483 = vmatpush1.bf16.msra.mxu0 0
        %1484 = vmatprep.subr.bf16.mxu0 0
        %1485 = vmatpush1.bf16.msra.mxu0 %v1469
        %1486 = vmatprep.subr.bf16.mxu0 0
        %1487 = vmatpush1.bf16.msra.mxu0 %v1468
        %1488 = vmatprep.subr.bf16.mxu0 0
        %1489 = vmatpush2.bf16.msra.mxu0 0
        %1490 = vmatprep.subr.bf16.mxu0 0
        %1491 = vmatpush2.bf16.msra.mxu0 0
        %1492 = vmatprep.subr.bf16.mxu0 0
        %1493 = vmatpush2.bf16.msra.mxu0 0
        %1494 = vmatprep.subr.bf16.mxu0 0
        %1495 = vmatpush2.bf16.msra.mxu0 0
        %1496 = vmatprep.subr.bf16.mxu0 0
        %1497 = vmatpush2.bf16.msra.mxu0 0
        %1498 = vmatprep.subr.bf16.mxu0 0
        %1499 = vmatpush2.bf16.msra.mxu0 0
        %1500 = vmatprep.subr.bf16.mxu0 0
        %1501 = vmatpush2.bf16.msra.mxu0 0
        %1502 = vmatprep.subr.bf16.mxu0 0
        %1503 = vmatpush2.bf16.msra.mxu0 0
        %1504 = vmatprep.mubr.bf16.mxu0 0
        %1505 = vmatmul.mubr.bf16.gmra.mxu0 %v910
        %v1506 = vpop.f32.mrf.mxu0
        %v1507 = vadd.f32 %v1458, %v1506
        %v1508 = vpop.f32.mrf.mxu0
        %v1509 = vpop.f32.mrf.mxu0
        %v1510 = vadd.f32 %v1458, %v1509
        %v1511 = vpop.f32.mrf.mxu0
        %1512 = vdwg.mxu0
        %v1513 = vpack.c.bf16 %v1379, %v1379
        %v1514 = vpack.c.bf16 %v1380, %v1380
        %v1515 = vpack.c.bf16 %v1441, %v1441
        %v1516 = vpack.c.bf16 %v1444, %v1444
        %v1517 = vpack.c.bf16 %v1507, %v1507
        %v1518 = vpack.c.bf16 %v1510, %v1510
        %v1520 = vsel %vm1101, %v1513, 0
        %v1523 = vsel %vm1101, %v1515, 0
        %1525 = vmatprep.subr.bf16.mxu0 0
        %1526 = vmatpush1.bf16.xpose.msra.mxu0 0
        %1527 = vmatprep.subr.bf16.mxu0 0
        %1528 = vmatpush1.bf16.xpose.msra.mxu0 0
        %1529 = vmatprep.subr.bf16.mxu0 0
        %1530 = vmatpush1.bf16.xpose.msra.mxu0 0
        %1531 = vmatprep.subr.bf16.mxu0 0
        %1532 = vmatpush1.bf16.xpose.msra.mxu0 0
        %1533 = vmatprep.subr.bf16.mxu0 0
        %1534 = vmatpush1.bf16.xpose.msra.mxu0 0
        %1535 = vmatprep.subr.bf16.mxu0 0
        %1536 = vmatpush1.bf16.xpose.msra.mxu0 0
        %1537 = vmatprep.subr.bf16.mxu0 0
        %1538 = vmatpush1.bf16.xpose.msra.mxu0 0
        %1539 = vmatprep.subr.bf16.mxu0 0
        %1540 = vmatpush1.bf16.xpose.msra.mxu0 %v1523
        %1541 = vmatprep.subr.bf16.mxu0 0
        %1542 = vmatpush2.bf16.xpose.msra.mxu0 0
        %1543 = vmatprep.subr.bf16.mxu0 0
        %1544 = vmatpush2.bf16.xpose.msra.mxu0 0
        %1545 = vmatprep.subr.bf16.mxu0 0
        %1546 = vmatpush2.bf16.xpose.msra.mxu0 0
        %1547 = vmatprep.subr.bf16.mxu0 0
        %1548 = vmatpush2.bf16.xpose.msra.mxu0 0
        %1549 = vmatprep.subr.bf16.mxu0 0
        %1550 = vmatpush2.bf16.xpose.msra.mxu0 0
        %1551 = vmatprep.subr.bf16.mxu0 0
        %1552 = vmatpush2.bf16.xpose.msra.mxu0 0
        %1553 = vmatprep.subr.bf16.mxu0 0
        %1554 = vmatpush2.bf16.xpose.msra.mxu0 0
        %1555 = vmatprep.subr.bf16.mxu0 0
        %1556 = vmatpush2.bf16.xpose.msra.mxu0 0
        %1557 = vmatprep.mubr.bf16.mxu0 0
        %1558 = vmatmul.mubr.bf16.gmra.mxu0 %v1520
        %v1559 = vpop.f32.mrf.mxu0
        %v1560 = vadd.f32 %v1094, %v1559
        %v1561 = vpop.f32.mrf.mxu0
        %v1562 = vpop.f32.mrf.mxu0
        %v1563 = vpop.f32.mrf.mxu0
        %1564 = vdwg.mxu0
        %v1566 = vsel %vm1101, %v1514, 0
        %v1569 = vsel %vm1101, %v1516, 0
        %1571 = vmatprep.subr.bf16.mxu0 0
        %1572 = vmatpush1.bf16.xpose.msra.mxu0 0
        %1573 = vmatprep.subr.bf16.mxu0 0
        %1574 = vmatpush1.bf16.xpose.msra.mxu0 0
        %1575 = vmatprep.subr.bf16.mxu0 0
        %1576 = vmatpush1.bf16.xpose.msra.mxu0 0
        %1577 = vmatprep.subr.bf16.mxu0 0
        %1578 = vmatpush1.bf16.xpose.msra.mxu0 0
        %1579 = vmatprep.subr.bf16.mxu0 0
        %1580 = vmatpush1.bf16.xpose.msra.mxu0 0
        %1581 = vmatprep.subr.bf16.mxu0 0
        %1582 = vmatpush1.bf16.xpose.msra.mxu0 0
        %1583 = vmatprep.subr.bf16.mxu0 0
        %1584 = vmatpush1.bf16.xpose.msra.mxu0 0
        %1585 = vmatprep.subr.bf16.mxu0 0
        %1586 = vmatpush1.bf16.xpose.msra.mxu0 %v1569
        %1587 = vmatprep.subr.bf16.mxu0 0
        %1588 = vmatpush2.bf16.xpose.msra.mxu0 0
        %1589 = vmatprep.subr.bf16.mxu0 0
        %1590 = vmatpush2.bf16.xpose.msra.mxu0 0
        %1591 = vmatprep.subr.bf16.mxu0 0
        %1592 = vmatpush2.bf16.xpose.msra.mxu0 0
        %1593 = vmatprep.subr.bf16.mxu0 0
        %1594 = vmatpush2.bf16.xpose.msra.mxu0 0
        %1595 = vmatprep.subr.bf16.mxu0 0
        %1596 = vmatpush2.bf16.xpose.msra.mxu0 0
        %1597 = vmatprep.subr.bf16.mxu0 0
        %1598 = vmatpush2.bf16.xpose.msra.mxu0 0
        %1599 = vmatprep.subr.bf16.mxu0 0
        %1600 = vmatpush2.bf16.xpose.msra.mxu0 0
        %1601 = vmatprep.subr.bf16.mxu0 0
        %1602 = vmatpush2.bf16.xpose.msra.mxu0 0
        %1603 = vmatprep.mubr.bf16.mxu0 0
        %1604 = vmatmul.mubr.bf16.gmra.mxu0 %v1566
        %v1605 = vpop.f32.mrf.mxu0
        %v1606 = vadd.f32 %v1098, %v1605
        %v1607 = vpop.f32.mrf.mxu0
        %v1608 = vpop.f32.mrf.mxu0
        %v1609 = vpop.f32.mrf.mxu0
        %1610 = vdwg.mxu0
        %v1611 = vsel %vm1101, %v1560, -inf
        %1612 = vmax.xlane.f32.xlu0 %v1611
        %v1613 = vpop.xlane.xlu0 %1612
        %v1614 = vsel %vm1101, %v1606, -inf
        %1615 = vmax.xlane.f32.xlu0 %v1614
        %v1616 = vpop.xlane.xlu0 %1615
        %v1617 = vsub.f32 %v1560, %v1613
        %v1618 = vsub.f32 %v1606, %v1616
        %v1619 = vmul.f32 %v1617, 1.442695
        %v1620 = vpow.pop %v1619
        %v1621 = vmul.f32 %v1618, 1.442695
        %v1622 = vpow.pop %v1621
        %v1623 = vsel %vm1101, %v1620, 0.0
        %1624 = vadd.xlane.f32.xlu0 %v1623
        %v1625 = vpop.xlane.xlu0 %1624
        %v1626 = vsel %vm1101, %v1622, 0.0
        %1627 = vadd.xlane.f32.xlu0 %v1626
        %v1628 = vpop.xlane.xlu0 %1627
        %v1629 = vrcp.pop %v1625
        %v1630 = vmul.f32 %v1620, %v1629
        %v1631 = vrcp.pop %v1628
        %v1632 = vmul.f32 %v1622, %v1631
        %v1633 = vpack.c.bf16 %v1630, %v1630
        %v1634 = vpack.c.bf16 %v1632, %v1632
        %v1636 = vsel %vm1101, %v1633, 0
        %v1639 = vsel %vm1221, %v1517, 0
        %1641 = vmatprep.subr.bf16.mxu0 0
        %1642 = vmatpush1.bf16.msra.mxu0 0
        %1643 = vmatprep.subr.bf16.mxu0 0
        %1644 = vmatpush1.bf16.msra.mxu0 0
        %1645 = vmatprep.subr.bf16.mxu0 0
        %1646 = vmatpush1.bf16.msra.mxu0 0
        %1647 = vmatprep.subr.bf16.mxu0 0
        %1648 = vmatpush1.bf16.msra.mxu0 0
        %1649 = vmatprep.subr.bf16.mxu0 0
        %1650 = vmatpush1.bf16.msra.mxu0 0
        %1651 = vmatprep.subr.bf16.mxu0 0
        %1652 = vmatpush1.bf16.msra.mxu0 0
        %1653 = vmatprep.subr.bf16.mxu0 0
        %1654 = vmatpush1.bf16.msra.mxu0 0
        %1655 = vmatprep.subr.bf16.mxu0 0
        %1656 = vmatpush1.bf16.msra.mxu0 %v1639
        %1657 = vmatprep.subr.bf16.mxu0 0
        %1658 = vmatpush2.bf16.msra.mxu0 0
        %1659 = vmatprep.subr.bf16.mxu0 0
        %1660 = vmatpush2.bf16.msra.mxu0 0
        %1661 = vmatprep.subr.bf16.mxu0 0
        %1662 = vmatpush2.bf16.msra.mxu0 0
        %1663 = vmatprep.subr.bf16.mxu0 0
        %1664 = vmatpush2.bf16.msra.mxu0 0
        %1665 = vmatprep.subr.bf16.mxu0 0
        %1666 = vmatpush2.bf16.msra.mxu0 0
        %1667 = vmatprep.subr.bf16.mxu0 0
        %1668 = vmatpush2.bf16.msra.mxu0 0
        %1669 = vmatprep.subr.bf16.mxu0 0
        %1670 = vmatpush2.bf16.msra.mxu0 0
        %1671 = vmatprep.subr.bf16.mxu0 0
        %1672 = vmatpush2.bf16.msra.mxu0 0
        %1673 = vmatprep.mubr.bf16.mxu0 0
        %1674 = vmatmul.mubr.bf16.gmra.mxu0 %v1636
        %v1675 = vpop.f32.mrf.mxu0
        %v1676 = vadd.f32 0.0, %v1675
        %v1677 = vpop.f32.mrf.mxu0
        %v1678 = vpop.f32.mrf.mxu0
        %v1679 = vpop.f32.mrf.mxu0
        %1680 = vdwg.mxu0
        %v1682 = vsel %vm1101, %v1634, 0
        %v1685 = vsel %vm1221, %v1518, 0
        %1687 = vmatprep.subr.bf16.mxu0 0
        %1688 = vmatpush1.bf16.msra.mxu0 0
        %1689 = vmatprep.subr.bf16.mxu0 0
        %1690 = vmatpush1.bf16.msra.mxu0 0
        %1691 = vmatprep.subr.bf16.mxu0 0
        %1692 = vmatpush1.bf16.msra.mxu0 0
        %1693 = vmatprep.subr.bf16.mxu0 0
        %1694 = vmatpush1.bf16.msra.mxu0 0
        %1695 = vmatprep.subr.bf16.mxu0 0
        %1696 = vmatpush1.bf16.msra.mxu0 0
        %1697 = vmatprep.subr.bf16.mxu0 0
        %1698 = vmatpush1.bf16.msra.mxu0 0
        %1699 = vmatprep.subr.bf16.mxu0 0
        %1700 = vmatpush1.bf16.msra.mxu0 0
        %1701 = vmatprep.subr.bf16.mxu0 0
        %1702 = vmatpush1.bf16.msra.mxu0 %v1685
        %1703 = vmatprep.subr.bf16.mxu0 0
        %1704 = vmatpush2.bf16.msra.mxu0 0
        %1705 = vmatprep.subr.bf16.mxu0 0
        %1706 = vmatpush2.bf16.msra.mxu0 0
        %1707 = vmatprep.subr.bf16.mxu0 0
        %1708 = vmatpush2.bf16.msra.mxu0 0
        %1709 = vmatprep.subr.bf16.mxu0 0
        %1710 = vmatpush2.bf16.msra.mxu0 0
        %1711 = vmatprep.subr.bf16.mxu0 0
        %1712 = vmatpush2.bf16.msra.mxu0 0
        %1713 = vmatprep.subr.bf16.mxu0 0
        %1714 = vmatpush2.bf16.msra.mxu0 0
        %1715 = vmatprep.subr.bf16.mxu0 0
        %1716 = vmatpush2.bf16.msra.mxu0 0
        %1717 = vmatprep.subr.bf16.mxu0 0
        %1718 = vmatpush2.bf16.msra.mxu0 0
        %1719 = vmatprep.mubr.bf16.mxu0 0
        %1720 = vmatmul.mubr.bf16.gmra.mxu0 %v1682
        %v1721 = vpop.f32.mrf.mxu0
        %v1722 = vadd.f32 0.0, %v1721
        %v1723 = vpop.f32.mrf.mxu0
        %v1724 = vpop.f32.mrf.mxu0
        %v1725 = vpop.f32.mrf.mxu0
        %1726 = vdwg.mxu0
        %v1727 = vpack.c.bf16 %v1722, %v1676
        %s1728 = scalar_lea.vmem %s837, 4
        %v1729 = vld [vmem:[%s1728] sm:$0xf]
        %v1731 = vsel %vm1101, %v1727, 0
        %v1734 = vsel %vm1221, %v1729, 0
        %1736 = vmatprep.subr.bf16.mxu0 0
        %1737 = vmatpush1.bf16.msra.mxu0 0
        %1738 = vmatprep.subr.bf16.mxu0 0
        %1739 = vmatpush1.bf16.msra.mxu0 0
        %1740 = vmatprep.subr.bf16.mxu0 0
        %1741 = vmatpush1.bf16.msra.mxu0 0
        %1742 = vmatprep.subr.bf16.mxu0 0
        %1743 = vmatpush1.bf16.msra.mxu0 0
        %1744 = vmatprep.subr.bf16.mxu0 0
        %1745 = vmatpush1.bf16.msra.mxu0 0
        %1746 = vmatprep.subr.bf16.mxu0 0
        %1747 = vmatpush1.bf16.msra.mxu0 0
        %1748 = vmatprep.subr.bf16.mxu0 0
        %1749 = vmatpush1.bf16.msra.mxu0 0
        %1750 = vmatprep.subr.bf16.mxu0 0
        %1751 = vmatpush1.bf16.msra.mxu0 %v1734
        %1752 = vmatprep.subr.bf16.mxu0 0
        %1753 = vmatpush2.bf16.msra.mxu0 0
        %1754 = vmatprep.subr.bf16.mxu0 0
        %1755 = vmatpush2.bf16.msra.mxu0 0
        %1756 = vmatprep.subr.bf16.mxu0 0
        %1757 = vmatpush2.bf16.msra.mxu0 0
        %1758 = vmatprep.subr.bf16.mxu0 0
        %1759 = vmatpush2.bf16.msra.mxu0 0
        %1760 = vmatprep.subr.bf16.mxu0 0
        %1761 = vmatpush2.bf16.msra.mxu0 0
        %1762 = vmatprep.subr.bf16.mxu0 0
        %1763 = vmatpush2.bf16.msra.mxu0 0
        %1764 = vmatprep.subr.bf16.mxu0 0
        %1765 = vmatpush2.bf16.msra.mxu0 0
        %1766 = vmatprep.subr.bf16.mxu0 0
        %1767 = vmatpush2.bf16.msra.mxu0 0
        %1768 = vmatprep.mubr.bf16.mxu0 0
        %1769 = vmatmul.mubr.bf16.gmra.mxu0 %v1731
        %v1770 = vpop.f32.mrf.mxu0
        %v1771 = vadd.f32 0.0, %v1770
        %v1772 = vpop.f32.mrf.mxu0
        %v1773 = vpop.f32.mrf.mxu0
        %v1774 = vadd.f32 0.0, %v1773
        %v1775 = vpop.f32.mrf.mxu0
        %1776 = vdwg.mxu0
        %v1778 = vsel %vm1101, %v1311, 0
        %v1781 = vsel %vm1221, %v1312, 0
        %1783 = vmatprep.subr.bf16.mxu0 0
        %1784 = vmatpush1.bf16.msra.mxu0 0
        %1785 = vmatprep.subr.bf16.mxu0 0
        %1786 = vmatpush1.bf16.msra.mxu0 0
        %1787 = vmatprep.subr.bf16.mxu0 0
        %1788 = vmatpush1.bf16.msra.mxu0 0
        %1789 = vmatprep.subr.bf16.mxu0 0
        %1790 = vmatpush1.bf16.msra.mxu0 0
        %1791 = vmatprep.subr.bf16.mxu0 0
        %1792 = vmatpush1.bf16.msra.mxu0 0
        %1793 = vmatprep.subr.bf16.mxu0 0
        %1794 = vmatpush1.bf16.msra.mxu0 0
        %1795 = vmatprep.subr.bf16.mxu0 0
        %1796 = vmatpush1.bf16.msra.mxu0 0
        %1797 = vmatprep.subr.bf16.mxu0 0
        %1798 = vmatpush1.bf16.msra.mxu0 %v1781
        %1799 = vmatprep.subr.bf16.mxu0 0
        %1800 = vmatpush2.bf16.msra.mxu0 0
        %1801 = vmatprep.subr.bf16.mxu0 0
        %1802 = vmatpush2.bf16.msra.mxu0 0
        %1803 = vmatprep.subr.bf16.mxu0 0
        %1804 = vmatpush2.bf16.msra.mxu0 0
        %1805 = vmatprep.subr.bf16.mxu0 0
        %1806 = vmatpush2.bf16.msra.mxu0 0
        %1807 = vmatprep.subr.bf16.mxu0 0
        %1808 = vmatpush2.bf16.msra.mxu0 0
        %1809 = vmatprep.subr.bf16.mxu0 0
        %1810 = vmatpush2.bf16.msra.mxu0 0
        %1811 = vmatprep.subr.bf16.mxu0 0
        %1812 = vmatpush2.bf16.msra.mxu0 0
        %1813 = vmatprep.subr.bf16.mxu0 0
        %1814 = vmatpush2.bf16.msra.mxu0 0
        %1815 = vmatprep.mubr.bf16.mxu0 0
        %1816 = vmatmul.mubr.bf16.gmra.mxu0 %v1778
        %v1817 = vpop.f32.mrf.mxu0
        %v1818 = vadd.f32 %v1771, %v1817
        %v1819 = vpop.f32.mrf.mxu0
        %v1820 = vpop.f32.mrf.mxu0
        %v1821 = vadd.f32 %v1774, %v1820
        %v1822 = vpop.f32.mrf.mxu0
        %1823 = vdwg.mxu0
        %s1824 = scalar_lea.vmem %s810, 32
        %v1825 = vld [vmem:[%s1824] sm:$0xf]
        %v1826 = vld [vmem:[%s1824 + $0x4] sm:$0xf]
        %v1827 = vld [vmem:[%s1824 + $0x8] sm:$0xf]
        %v1828 = vld [vmem:[%s1824 + $0xc] sm:$0xf]
        %s1829 = scalar_lea.vmem %s814, 2
        %v1830 = vld [vmem:[%s1829] sm:$0x1]
        %v1832 = vlaneseq
        %v1833 = vshrl.u32 %v1832, 7
        %v1834 = vsub.s32 0, %v1833
        %v1835 = vrot.slane %v1830, %v1834
        %v1841 = vunpack.c.l.b16 %v1825
        %v1842 = vunpack.c.l.b16 %v1826
        %v1843 = vunpack.c.l.b16 %v1827
        %v1844 = vunpack.c.l.b16 %v1828
        %v1845 = vpack.c.b16 %v1842, %v1841
        %v1846 = vpack.c.b16 %v1844, %v1843
        %1849 = vmatprep.subr.bf16.mxu0 0
        %1850 = vmatpush1.bf16.msra.mxu0 0
        %1851 = vmatprep.subr.bf16.mxu0 0
        %1852 = vmatpush1.bf16.msra.mxu0 0
        %1853 = vmatprep.subr.bf16.mxu0 0
        %1854 = vmatpush1.bf16.msra.mxu0 0
        %1855 = vmatprep.subr.bf16.mxu0 0
        %1856 = vmatpush1.bf16.msra.mxu0 0
        %1857 = vmatprep.subr.bf16.mxu0 0
        %1858 = vmatpush1.bf16.msra.mxu0 0
        %1859 = vmatprep.subr.bf16.mxu0 0
        %1860 = vmatpush1.bf16.msra.mxu0 0
        %1861 = vmatprep.subr.bf16.mxu0 0
        %1862 = vmatpush1.bf16.msra.mxu0 %v1846
        %1863 = vmatprep.subr.bf16.mxu0 0
        %1864 = vmatpush1.bf16.msra.mxu0 %v1845
        %1865 = vmatprep.subr.bf16.mxu0 0
        %1866 = vmatpush2.bf16.msra.mxu0 0
        %1867 = vmatprep.subr.bf16.mxu0 0
        %1868 = vmatpush2.bf16.msra.mxu0 0
        %1869 = vmatprep.subr.bf16.mxu0 0
        %1870 = vmatpush2.bf16.msra.mxu0 0
        %1871 = vmatprep.subr.bf16.mxu0 0
        %1872 = vmatpush2.bf16.msra.mxu0 0
        %1873 = vmatprep.subr.bf16.mxu0 0
        %1874 = vmatpush2.bf16.msra.mxu0 0
        %1875 = vmatprep.subr.bf16.mxu0 0
        %1876 = vmatpush2.bf16.msra.mxu0 0
        %1877 = vmatprep.subr.bf16.mxu0 0
        %1878 = vmatpush2.bf16.msra.mxu0 0
        %1879 = vmatprep.subr.bf16.mxu0 0
        %1880 = vmatpush2.bf16.msra.mxu0 0
        %1881 = vmatprep.mubr.bf16.mxu0 0
        %1882 = vmatmul.mubr.bf16.gmra.mxu0 %v910
        %v1883 = vpop.f32.mrf.mxu0
        %v1884 = vadd.f32 %v1835, %v1883
        %v1885 = vpop.f32.mrf.mxu0
        %v1886 = vpop.f32.mrf.mxu0
        %v1887 = vadd.f32 %v1835, %v1886
        %v1888 = vpop.f32.mrf.mxu0
        %1889 = vdwg.mxu0
        %v1890 = vmul.f32 %v1884, 0.35355338
        %v1891 = vmul.f32 %v1887, 0.35355338
        %s1892 = scalar_lea.vmem %s819, 32
        %v1893 = vld [vmem:[%s1892] sm:$0xf]
        %v1894 = vld [vmem:[%s1892 + $0x4] sm:$0xf]
        %v1895 = vld [vmem:[%s1892 + $0x8] sm:$0xf]
        %v1896 = vld [vmem:[%s1892 + $0xc] sm:$0xf]
        %s1897 = scalar_lea.vmem %s823, 2
        %v1898 = vld [vmem:[%s1897] sm:$0x1]
        %v1900 = vlaneseq
        %v1901 = vshrl.u32 %v1900, 7
        %v1902 = vsub.s32 0, %v1901
        %v1903 = vrot.slane %v1898, %v1902
        %v1909 = vunpack.c.l.b16 %v1893
        %v1910 = vunpack.c.l.b16 %v1894
        %v1911 = vunpack.c.l.b16 %v1895
        %v1912 = vunpack.c.l.b16 %v1896
        %v1913 = vpack.c.b16 %v1910, %v1909
        %v1914 = vpack.c.b16 %v1912, %v1911
        %1917 = vmatprep.subr.bf16.mxu0 0
        %1918 = vmatpush1.bf16.msra.mxu0 0
        %1919 = vmatprep.subr.bf16.mxu0 0
        %1920 = vmatpush1.bf16.msra.mxu0 0
        %1921 = vmatprep.subr.bf16.mxu0 0
        %1922 = vmatpush1.bf16.msra.mxu0 0
        %1923 = vmatprep.subr.bf16.mxu0 0
        %1924 = vmatpush1.bf16.msra.mxu0 0
        %1925 = vmatprep.subr.bf16.mxu0 0
        %1926 = vmatpush1.bf16.msra.mxu0 0
        %1927 = vmatprep.subr.bf16.mxu0 0
        %1928 = vmatpush1.bf16.msra.mxu0 0
        %1929 = vmatprep.subr.bf16.mxu0 0
        %1930 = vmatpush1.bf16.msra.mxu0 %v1914
        %1931 = vmatprep.subr.bf16.mxu0 0
        %1932 = vmatpush1.bf16.msra.mxu0 %v1913
        %1933 = vmatprep.subr.bf16.mxu0 0
        %1934 = vmatpush2.bf16.msra.mxu0 0
        %1935 = vmatprep.subr.bf16.mxu0 0
        %1936 = vmatpush2.bf16.msra.mxu0 0
        %1937 = vmatprep.subr.bf16.mxu0 0
        %1938 = vmatpush2.bf16.msra.mxu0 0
        %1939 = vmatprep.subr.bf16.mxu0 0
        %1940 = vmatpush2.bf16.msra.mxu0 0
        %1941 = vmatprep.subr.bf16.mxu0 0
        %1942 = vmatpush2.bf16.msra.mxu0 0
        %1943 = vmatprep.subr.bf16.mxu0 0
        %1944 = vmatpush2.bf16.msra.mxu0 0
        %1945 = vmatprep.subr.bf16.mxu0 0
        %1946 = vmatpush2.bf16.msra.mxu0 0
        %1947 = vmatprep.subr.bf16.mxu0 0
        %1948 = vmatpush2.bf16.msra.mxu0 0
        %1949 = vmatprep.mubr.bf16.mxu0 0
        %1950 = vmatmul.mubr.bf16.gmra.mxu0 %v910
        %v1951 = vpop.f32.mrf.mxu0
        %v1952 = vadd.f32 %v1903, %v1951
        %v1953 = vpop.f32.mrf.mxu0
        %v1954 = vpop.f32.mrf.mxu0
        %v1955 = vadd.f32 %v1903, %v1954
        %v1956 = vpop.f32.mrf.mxu0
        %1957 = vdwg.mxu0
        %s1958 = scalar_lea.vmem %s828, 32
        %v1959 = vld [vmem:[%s1958] sm:$0xf]
        %v1960 = vld [vmem:[%s1958 + $0x4] sm:$0xf]
        %v1961 = vld [vmem:[%s1958 + $0x8] sm:$0xf]
        %v1962 = vld [vmem:[%s1958 + $0xc] sm:$0xf]
        %s1963 = scalar_lea.vmem %s832, 2
        %v1964 = vld [vmem:[%s1963] sm:$0x1]
        %v1966 = vlaneseq
        %v1967 = vshrl.u32 %v1966, 7
        %v1968 = vsub.s32 0, %v1967
        %v1969 = vrot.slane %v1964, %v1968
        %v1975 = vunpack.c.l.b16 %v1959
        %v1976 = vunpack.c.l.b16 %v1960
        %v1977 = vunpack.c.l.b16 %v1961
        %v1978 = vunpack.c.l.b16 %v1962
        %v1979 = vpack.c.b16 %v1976, %v1975
        %v1980 = vpack.c.b16 %v1978, %v1977
        %1983 = vmatprep.subr.bf16.mxu0 0
        %1984 = vmatpush1.bf16.msra.mxu0 0
        %1985 = vmatprep.subr.bf16.mxu0 0
        %1986 = vmatpush1.bf16.msra.mxu0 0
        %1987 = vmatprep.subr.bf16.mxu0 0
        %1988 = vmatpush1.bf16.msra.mxu0 0
        %1989 = vmatprep.subr.bf16.mxu0 0
        %1990 = vmatpush1.bf16.msra.mxu0 0
        %1991 = vmatprep.subr.bf16.mxu0 0
        %1992 = vmatpush1.bf16.msra.mxu0 0
        %1993 = vmatprep.subr.bf16.mxu0 0
        %1994 = vmatpush1.bf16.msra.mxu0 0
        %1995 = vmatprep.subr.bf16.mxu0 0
        %1996 = vmatpush1.bf16.msra.mxu0 %v1980
        %1997 = vmatprep.subr.bf16.mxu0 0
        %1998 = vmatpush1.bf16.msra.mxu0 %v1979
        %1999 = vmatprep.subr.bf16.mxu0 0
        %2000 = vmatpush2.bf16.msra.mxu0 0
        %2001 = vmatprep.subr.bf16.mxu0 0
        %2002 = vmatpush2.bf16.msra.mxu0 0
        %2003 = vmatprep.subr.bf16.mxu0 0
        %2004 = vmatpush2.bf16.msra.mxu0 0
        %2005 = vmatprep.subr.bf16.mxu0 0
        %2006 = vmatpush2.bf16.msra.mxu0 0
        %2007 = vmatprep.subr.bf16.mxu0 0
        %2008 = vmatpush2.bf16.msra.mxu0 0
        %2009 = vmatprep.subr.bf16.mxu0 0
        %2010 = vmatpush2.bf16.msra.mxu0 0
        %2011 = vmatprep.subr.bf16.mxu0 0
        %2012 = vmatpush2.bf16.msra.mxu0 0
        %2013 = vmatprep.subr.bf16.mxu0 0
        %2014 = vmatpush2.bf16.msra.mxu0 0
        %2015 = vmatprep.mubr.bf16.mxu0 0
        %2016 = vmatmul.mubr.bf16.gmra.mxu0 %v910
        %v2017 = vpop.f32.mrf.mxu0
        %v2018 = vadd.f32 %v1969, %v2017
        %v2019 = vpop.f32.mrf.mxu0
        %v2020 = vpop.f32.mrf.mxu0
        %v2021 = vadd.f32 %v1969, %v2020
        %v2022 = vpop.f32.mrf.mxu0
        %2023 = vdwg.mxu0
        %v2024 = vpack.c.bf16 %v1890, %v1890
        %v2025 = vpack.c.bf16 %v1891, %v1891
        %v2026 = vpack.c.bf16 %v1952, %v1952
        %v2027 = vpack.c.bf16 %v1955, %v1955
        %v2028 = vpack.c.bf16 %v2018, %v2018
        %v2029 = vpack.c.bf16 %v2021, %v2021
        %v2031 = vsel %vm1101, %v2024, 0
        %v2034 = vsel %vm1101, %v2026, 0
        %2036 = vmatprep.subr.bf16.mxu0 0
        %2037 = vmatpush1.bf16.xpose.msra.mxu0 0
        %2038 = vmatprep.subr.bf16.mxu0 0
        %2039 = vmatpush1.bf16.xpose.msra.mxu0 0
        %2040 = vmatprep.subr.bf16.mxu0 0
        %2041 = vmatpush1.bf16.xpose.msra.mxu0 0
        %2042 = vmatprep.subr.bf16.mxu0 0
        %2043 = vmatpush1.bf16.xpose.msra.mxu0 0
        %2044 = vmatprep.subr.bf16.mxu0 0
        %2045 = vmatpush1.bf16.xpose.msra.mxu0 0
        %2046 = vmatprep.subr.bf16.mxu0 0
        %2047 = vmatpush1.bf16.xpose.msra.mxu0 0
        %2048 = vmatprep.subr.bf16.mxu0 0
        %2049 = vmatpush1.bf16.xpose.msra.mxu0 0
        %2050 = vmatprep.subr.bf16.mxu0 0
        %2051 = vmatpush1.bf16.xpose.msra.mxu0 %v2034
        %2052 = vmatprep.subr.bf16.mxu0 0
        %2053 = vmatpush2.bf16.xpose.msra.mxu0 0
        %2054 = vmatprep.subr.bf16.mxu0 0
        %2055 = vmatpush2.bf16.xpose.msra.mxu0 0
        %2056 = vmatprep.subr.bf16.mxu0 0
        %2057 = vmatpush2.bf16.xpose.msra.mxu0 0
        %2058 = vmatprep.subr.bf16.mxu0 0
        %2059 = vmatpush2.bf16.xpose.msra.mxu0 0
        %2060 = vmatprep.subr.bf16.mxu0 0
        %2061 = vmatpush2.bf16.xpose.msra.mxu0 0
        %2062 = vmatprep.subr.bf16.mxu0 0
        %2063 = vmatpush2.bf16.xpose.msra.mxu0 0
        %2064 = vmatprep.subr.bf16.mxu0 0
        %2065 = vmatpush2.bf16.xpose.msra.mxu0 0
        %2066 = vmatprep.subr.bf16.mxu0 0
        %2067 = vmatpush2.bf16.xpose.msra.mxu0 0
        %2068 = vmatprep.mubr.bf16.mxu0 0
        %2069 = vmatmul.mubr.bf16.gmra.mxu0 %v2031
        %v2070 = vpop.f32.mrf.mxu0
        %v2071 = vadd.f32 %v1094, %v2070
        %v2072 = vpop.f32.mrf.mxu0
        %v2073 = vpop.f32.mrf.mxu0
        %v2074 = vpop.f32.mrf.mxu0
        %2075 = vdwg.mxu0
        %v2077 = vsel %vm1101, %v2025, 0
        %v2080 = vsel %vm1101, %v2027, 0
        %2082 = vmatprep.subr.bf16.mxu0 0
        %2083 = vmatpush1.bf16.xpose.msra.mxu0 0
        %2084 = vmatprep.subr.bf16.mxu0 0
        %2085 = vmatpush1.bf16.xpose.msra.mxu0 0
        %2086 = vmatprep.subr.bf16.mxu0 0
        %2087 = vmatpush1.bf16.xpose.msra.mxu0 0
        %2088 = vmatprep.subr.bf16.mxu0 0
        %2089 = vmatpush1.bf16.xpose.msra.mxu0 0
        %2090 = vmatprep.subr.bf16.mxu0 0
        %2091 = vmatpush1.bf16.xpose.msra.mxu0 0
        %2092 = vmatprep.subr.bf16.mxu0 0
        %2093 = vmatpush1.bf16.xpose.msra.mxu0 0
        %2094 = vmatprep.subr.bf16.mxu0 0
        %2095 = vmatpush1.bf16.xpose.msra.mxu0 0
        %2096 = vmatprep.subr.bf16.mxu0 0
        %2097 = vmatpush1.bf16.xpose.msra.mxu0 %v2080
        %2098 = vmatprep.subr.bf16.mxu0 0
        %2099 = vmatpush2.bf16.xpose.msra.mxu0 0
        %2100 = vmatprep.subr.bf16.mxu0 0
        %2101 = vmatpush2.bf16.xpose.msra.mxu0 0
        %2102 = vmatprep.subr.bf16.mxu0 0
        %2103 = vmatpush2.bf16.xpose.msra.mxu0 0
        %2104 = vmatprep.subr.bf16.mxu0 0
        %2105 = vmatpush2.bf16.xpose.msra.mxu0 0
        %2106 = vmatprep.subr.bf16.mxu0 0
        %2107 = vmatpush2.bf16.xpose.msra.mxu0 0
        %2108 = vmatprep.subr.bf16.mxu0 0
        %2109 = vmatpush2.bf16.xpose.msra.mxu0 0
        %2110 = vmatprep.subr.bf16.mxu0 0
        %2111 = vmatpush2.bf16.xpose.msra.mxu0 0
        %2112 = vmatprep.subr.bf16.mxu0 0
        %2113 = vmatpush2.bf16.xpose.msra.mxu0 0
        %2114 = vmatprep.mubr.bf16.mxu0 0
        %2115 = vmatmul.mubr.bf16.gmra.mxu0 %v2077
        %v2116 = vpop.f32.mrf.mxu0
        %v2117 = vadd.f32 %v1098, %v2116
        %v2118 = vpop.f32.mrf.mxu0
        %v2119 = vpop.f32.mrf.mxu0
        %v2120 = vpop.f32.mrf.mxu0
        %2121 = vdwg.mxu0
        %v2122 = vsel %vm1101, %v2071, -inf
        %2123 = vmax.xlane.f32.xlu0 %v2122
        %v2124 = vpop.xlane.xlu0 %2123
        %v2125 = vsel %vm1101, %v2117, -inf
        %2126 = vmax.xlane.f32.xlu0 %v2125
        %v2127 = vpop.xlane.xlu0 %2126
        %v2128 = vsub.f32 %v2071, %v2124
        %v2129 = vsub.f32 %v2117, %v2127
        %v2130 = vmul.f32 %v2128, 1.442695
        %v2131 = vpow.pop %v2130
        %v2132 = vmul.f32 %v2129, 1.442695
        %v2133 = vpow.pop %v2132
        %v2134 = vsel %vm1101, %v2131, 0.0
        %2135 = vadd.xlane.f32.xlu0 %v2134
        %v2136 = vpop.xlane.xlu0 %2135
        %v2137 = vsel %vm1101, %v2133, 0.0
        %2138 = vadd.xlane.f32.xlu0 %v2137
        %v2139 = vpop.xlane.xlu0 %2138
        %v2140 = vrcp.pop %v2136
        %v2141 = vmul.f32 %v2131, %v2140
        %v2142 = vrcp.pop %v2139
        %v2143 = vmul.f32 %v2133, %v2142
        %v2144 = vpack.c.bf16 %v2141, %v2141
        %v2145 = vpack.c.bf16 %v2143, %v2143
        %v2147 = vsel %vm1101, %v2144, 0
        %v2150 = vsel %vm1221, %v2028, 0
        %2152 = vmatprep.subr.bf16.mxu0 0
        %2153 = vmatpush1.bf16.msra.mxu0 0
        %2154 = vmatprep.subr.bf16.mxu0 0
        %2155 = vmatpush1.bf16.msra.mxu0 0
        %2156 = vmatprep.subr.bf16.mxu0 0
        %2157 = vmatpush1.bf16.msra.mxu0 0
        %2158 = vmatprep.subr.bf16.mxu0 0
        %2159 = vmatpush1.bf16.msra.mxu0 0
        %2160 = vmatprep.subr.bf16.mxu0 0
        %2161 = vmatpush1.bf16.msra.mxu0 0
        %2162 = vmatprep.subr.bf16.mxu0 0
        %2163 = vmatpush1.bf16.msra.mxu0 0
        %2164 = vmatprep.subr.bf16.mxu0 0
        %2165 = vmatpush1.bf16.msra.mxu0 0
        %2166 = vmatprep.subr.bf16.mxu0 0
        %2167 = vmatpush1.bf16.msra.mxu0 %v2150
        %2168 = vmatprep.subr.bf16.mxu0 0
        %2169 = vmatpush2.bf16.msra.mxu0 0
        %2170 = vmatprep.subr.bf16.mxu0 0
        %2171 = vmatpush2.bf16.msra.mxu0 0
        %2172 = vmatprep.subr.bf16.mxu0 0
        %2173 = vmatpush2.bf16.msra.mxu0 0
        %2174 = vmatprep.subr.bf16.mxu0 0
        %2175 = vmatpush2.bf16.msra.mxu0 0
        %2176 = vmatprep.subr.bf16.mxu0 0
        %2177 = vmatpush2.bf16.msra.mxu0 0
        %2178 = vmatprep.subr.bf16.mxu0 0
        %2179 = vmatpush2.bf16.msra.mxu0 0
        %2180 = vmatprep.subr.bf16.mxu0 0
        %2181 = vmatpush2.bf16.msra.mxu0 0
        %2182 = vmatprep.subr.bf16.mxu0 0
        %2183 = vmatpush2.bf16.msra.mxu0 0
        %2184 = vmatprep.mubr.bf16.mxu0 0
        %2185 = vmatmul.mubr.bf16.gmra.mxu0 %v2147
        %v2186 = vpop.f32.mrf.mxu0
        %v2187 = vadd.f32 0.0, %v2186
        %v2188 = vpop.f32.mrf.mxu0
        %v2189 = vpop.f32.mrf.mxu0
        %v2190 = vpop.f32.mrf.mxu0
        %2191 = vdwg.mxu0
        %v2193 = vsel %vm1101, %v2145, 0
        %v2196 = vsel %vm1221, %v2029, 0
        %2198 = vmatprep.subr.bf16.mxu0 0
        %2199 = vmatpush1.bf16.msra.mxu0 0
        %2200 = vmatprep.subr.bf16.mxu0 0
        %2201 = vmatpush1.bf16.msra.mxu0 0
        %2202 = vmatprep.subr.bf16.mxu0 0
        %2203 = vmatpush1.bf16.msra.mxu0 0
        %2204 = vmatprep.subr.bf16.mxu0 0
        %2205 = vmatpush1.bf16.msra.mxu0 0
        %2206 = vmatprep.subr.bf16.mxu0 0
        %2207 = vmatpush1.bf16.msra.mxu0 0
        %2208 = vmatprep.subr.bf16.mxu0 0
        %2209 = vmatpush1.bf16.msra.mxu0 0
        %2210 = vmatprep.subr.bf16.mxu0 0
        %2211 = vmatpush1.bf16.msra.mxu0 0
        %2212 = vmatprep.subr.bf16.mxu0 0
        %2213 = vmatpush1.bf16.msra.mxu0 %v2196
        %2214 = vmatprep.subr.bf16.mxu0 0
        %2215 = vmatpush2.bf16.msra.mxu0 0
        %2216 = vmatprep.subr.bf16.mxu0 0
        %2217 = vmatpush2.bf16.msra.mxu0 0
        %2218 = vmatprep.subr.bf16.mxu0 0
        %2219 = vmatpush2.bf16.msra.mxu0 0
        %2220 = vmatprep.subr.bf16.mxu0 0
        %2221 = vmatpush2.bf16.msra.mxu0 0
        %2222 = vmatprep.subr.bf16.mxu0 0
        %2223 = vmatpush2.bf16.msra.mxu0 0
        %2224 = vmatprep.subr.bf16.mxu0 0
        %2225 = vmatpush2.bf16.msra.mxu0 0
        %2226 = vmatprep.subr.bf16.mxu0 0
        %2227 = vmatpush2.bf16.msra.mxu0 0
        %2228 = vmatprep.subr.bf16.mxu0 0
        %2229 = vmatpush2.bf16.msra.mxu0 0
        %2230 = vmatprep.mubr.bf16.mxu0 0
        %2231 = vmatmul.mubr.bf16.gmra.mxu0 %v2193
        %v2232 = vpop.f32.mrf.mxu0
        %v2233 = vadd.f32 0.0, %v2232
        %v2234 = vpop.f32.mrf.mxu0
        %v2235 = vpop.f32.mrf.mxu0
        %v2236 = vpop.f32.mrf.mxu0
        %2237 = vdwg.mxu0
        %v2238 = vpack.c.bf16 %v2233, %v2187
        %s2239 = scalar_lea.vmem %s837, 8
        %v2240 = vld [vmem:[%s2239] sm:$0xf]
        %v2242 = vsel %vm1101, %v2238, 0
        %v2245 = vsel %vm1221, %v2240, 0
        %2247 = vmatprep.subr.bf16.mxu0 0
        %2248 = vmatpush1.bf16.msra.mxu0 0
        %2249 = vmatprep.subr.bf16.mxu0 0
        %2250 = vmatpush1.bf16.msra.mxu0 0
        %2251 = vmatprep.subr.bf16.mxu0 0
        %2252 = vmatpush1.bf16.msra.mxu0 0
        %2253 = vmatprep.subr.bf16.mxu0 0
        %2254 = vmatpush1.bf16.msra.mxu0 0
        %2255 = vmatprep.subr.bf16.mxu0 0
        %2256 = vmatpush1.bf16.msra.mxu0 0
        %2257 = vmatprep.subr.bf16.mxu0 0
        %2258 = vmatpush1.bf16.msra.mxu0 0
        %2259 = vmatprep.subr.bf16.mxu0 0
        %2260 = vmatpush1.bf16.msra.mxu0 0
        %2261 = vmatprep.subr.bf16.mxu0 0
        %2262 = vmatpush1.bf16.msra.mxu0 %v2245
        %2263 = vmatprep.subr.bf16.mxu0 0
        %2264 = vmatpush2.bf16.msra.mxu0 0
        %2265 = vmatprep.subr.bf16.mxu0 0
        %2266 = vmatpush2.bf16.msra.mxu0 0
        %2267 = vmatprep.subr.bf16.mxu0 0
        %2268 = vmatpush2.bf16.msra.mxu0 0
        %2269 = vmatprep.subr.bf16.mxu0 0
        %2270 = vmatpush2.bf16.msra.mxu0 0
        %2271 = vmatprep.subr.bf16.mxu0 0
        %2272 = vmatpush2.bf16.msra.mxu0 0
        %2273 = vmatprep.subr.bf16.mxu0 0
        %2274 = vmatpush2.bf16.msra.mxu0 0
        %2275 = vmatprep.subr.bf16.mxu0 0
        %2276 = vmatpush2.bf16.msra.mxu0 0
        %2277 = vmatprep.subr.bf16.mxu0 0
        %2278 = vmatpush2.bf16.msra.mxu0 0
        %2279 = vmatprep.mubr.bf16.mxu0 0
        %2280 = vmatmul.mubr.bf16.gmra.mxu0 %v2242
        %v2281 = vpop.f32.mrf.mxu0
        %v2282 = vadd.f32 0.0, %v2281
        %v2283 = vpop.f32.mrf.mxu0
        %v2284 = vpop.f32.mrf.mxu0
        %v2285 = vadd.f32 0.0, %v2284
        %v2286 = vpop.f32.mrf.mxu0
        %2287 = vdwg.mxu0
        %v2288 = vadd.f32 %v1818, %v2282
        %v2289 = vadd.f32 %v1821, %v2285
        %s2290 = scalar_lea.vmem %s810, 48
        %v2291 = vld [vmem:[%s2290] sm:$0xf]
        %v2292 = vld [vmem:[%s2290 + $0x4] sm:$0xf]
        %v2293 = vld [vmem:[%s2290 + $0x8] sm:$0xf]
        %v2294 = vld [vmem:[%s2290 + $0xc] sm:$0xf]
        %s2295 = scalar_lea.vmem %s814, 3
        %v2296 = vld [vmem:[%s2295] sm:$0x1]
        %v2298 = vlaneseq
        %v2299 = vshrl.u32 %v2298, 7
        %v2300 = vsub.s32 0, %v2299
        %v2301 = vrot.slane %v2296, %v2300
        %v2307 = vunpack.c.l.b16 %v2291
        %v2308 = vunpack.c.l.b16 %v2292
        %v2309 = vunpack.c.l.b16 %v2293
        %v2310 = vunpack.c.l.b16 %v2294
        %v2311 = vpack.c.b16 %v2308, %v2307
        %v2312 = vpack.c.b16 %v2310, %v2309
        %2315 = vmatprep.subr.bf16.mxu0 0
        %2316 = vmatpush1.bf16.msra.mxu0 0
        %2317 = vmatprep.subr.bf16.mxu0 0
        %2318 = vmatpush1.bf16.msra.mxu0 0
        %2319 = vmatprep.subr.bf16.mxu0 0
        %2320 = vmatpush1.bf16.msra.mxu0 0
        %2321 = vmatprep.subr.bf16.mxu0 0
        %2322 = vmatpush1.bf16.msra.mxu0 0
        %2323 = vmatprep.subr.bf16.mxu0 0
        %2324 = vmatpush1.bf16.msra.mxu0 0
        %2325 = vmatprep.subr.bf16.mxu0 0
        %2326 = vmatpush1.bf16.msra.mxu0 0
        %2327 = vmatprep.subr.bf16.mxu0 0
        %2328 = vmatpush1.bf16.msra.mxu0 %v2312
        %2329 = vmatprep.subr.bf16.mxu0 0
        %2330 = vmatpush1.bf16.msra.mxu0 %v2311
        %2331 = vmatprep.subr.bf16.mxu0 0
        %2332 = vmatpush2.bf16.msra.mxu0 0
        %2333 = vmatprep.subr.bf16.mxu0 0
        %2334 = vmatpush2.bf16.msra.mxu0 0
        %2335 = vmatprep.subr.bf16.mxu0 0
        %2336 = vmatpush2.bf16.msra.mxu0 0
        %2337 = vmatprep.subr.bf16.mxu0 0
        %2338 = vmatpush2.bf16.msra.mxu0 0
        %2339 = vmatprep.subr.bf16.mxu0 0
        %2340 = vmatpush2.bf16.msra.mxu0 0
        %2341 = vmatprep.subr.bf16.mxu0 0
        %2342 = vmatpush2.bf16.msra.mxu0 0
        %2343 = vmatprep.subr.bf16.mxu0 0
        %2344 = vmatpush2.bf16.msra.mxu0 0
        %2345 = vmatprep.subr.bf16.mxu0 0
        %2346 = vmatpush2.bf16.msra.mxu0 0
        %2347 = vmatprep.mubr.bf16.mxu0 0
        %2348 = vmatmul.mubr.bf16.gmra.mxu0 %v910
        %v2349 = vpop.f32.mrf.mxu0
        %v2350 = vadd.f32 %v2301, %v2349
        %v2351 = vpop.f32.mrf.mxu0
        %v2352 = vpop.f32.mrf.mxu0
        %v2353 = vadd.f32 %v2301, %v2352
        %v2354 = vpop.f32.mrf.mxu0
        %2355 = vdwg.mxu0
        %v2356 = vmul.f32 %v2350, 0.35355338
        %v2357 = vmul.f32 %v2353, 0.35355338
        %s2358 = scalar_lea.vmem %s819, 48
        %v2359 = vld [vmem:[%s2358] sm:$0xf]
        %v2360 = vld [vmem:[%s2358 + $0x4] sm:$0xf]
        %v2361 = vld [vmem:[%s2358 + $0x8] sm:$0xf]
        %v2362 = vld [vmem:[%s2358 + $0xc] sm:$0xf]
        %s2363 = scalar_lea.vmem %s823, 3
        %v2364 = vld [vmem:[%s2363] sm:$0x1]
        %v2366 = vlaneseq
        %v2367 = vshrl.u32 %v2366, 7
        %v2368 = vsub.s32 0, %v2367
        %v2369 = vrot.slane %v2364, %v2368
        %v2375 = vunpack.c.l.b16 %v2359
        %v2376 = vunpack.c.l.b16 %v2360
        %v2377 = vunpack.c.l.b16 %v2361
        %v2378 = vunpack.c.l.b16 %v2362
        %v2379 = vpack.c.b16 %v2376, %v2375
        %v2380 = vpack.c.b16 %v2378, %v2377
        %2383 = vmatprep.subr.bf16.mxu0 0
        %2384 = vmatpush1.bf16.msra.mxu0 0
        %2385 = vmatprep.subr.bf16.mxu0 0
        %2386 = vmatpush1.bf16.msra.mxu0 0
        %2387 = vmatprep.subr.bf16.mxu0 0
        %2388 = vmatpush1.bf16.msra.mxu0 0
        %2389 = vmatprep.subr.bf16.mxu0 0
        %2390 = vmatpush1.bf16.msra.mxu0 0
        %2391 = vmatprep.subr.bf16.mxu0 0
        %2392 = vmatpush1.bf16.msra.mxu0 0
        %2393 = vmatprep.subr.bf16.mxu0 0
        %2394 = vmatpush1.bf16.msra.mxu0 0
        %2395 = vmatprep.subr.bf16.mxu0 0
        %2396 = vmatpush1.bf16.msra.mxu0 %v2380
        %2397 = vmatprep.subr.bf16.mxu0 0
        %2398 = vmatpush1.bf16.msra.mxu0 %v2379
        %2399 = vmatprep.subr.bf16.mxu0 0
        %2400 = vmatpush2.bf16.msra.mxu0 0
        %2401 = vmatprep.subr.bf16.mxu0 0
        %2402 = vmatpush2.bf16.msra.mxu0 0
        %2403 = vmatprep.subr.bf16.mxu0 0
        %2404 = vmatpush2.bf16.msra.mxu0 0
        %2405 = vmatprep.subr.bf16.mxu0 0
        %2406 = vmatpush2.bf16.msra.mxu0 0
        %2407 = vmatprep.subr.bf16.mxu0 0
        %2408 = vmatpush2.bf16.msra.mxu0 0
        %2409 = vmatprep.subr.bf16.mxu0 0
        %2410 = vmatpush2.bf16.msra.mxu0 0
        %2411 = vmatprep.subr.bf16.mxu0 0
        %2412 = vmatpush2.bf16.msra.mxu0 0
        %2413 = vmatprep.subr.bf16.mxu0 0
        %2414 = vmatpush2.bf16.msra.mxu0 0
        %2415 = vmatprep.mubr.bf16.mxu0 0
        %2416 = vmatmul.mubr.bf16.gmra.mxu0 %v910
        %v2417 = vpop.f32.mrf.mxu0
        %v2418 = vadd.f32 %v2369, %v2417
        %v2419 = vpop.f32.mrf.mxu0
        %v2420 = vpop.f32.mrf.mxu0
        %v2421 = vadd.f32 %v2369, %v2420
        %v2422 = vpop.f32.mrf.mxu0
        %2423 = vdwg.mxu0
        %s2424 = scalar_lea.vmem %s828, 48
        %v2425 = vld [vmem:[%s2424] sm:$0xf]
        %v2426 = vld [vmem:[%s2424 + $0x4] sm:$0xf]
        %v2427 = vld [vmem:[%s2424 + $0x8] sm:$0xf]
        %v2428 = vld [vmem:[%s2424 + $0xc] sm:$0xf]
        %s2429 = scalar_lea.vmem %s832, 3
        %v2430 = vld [vmem:[%s2429] sm:$0x1]
        %v2432 = vlaneseq
        %v2433 = vshrl.u32 %v2432, 7
        %v2434 = vsub.s32 0, %v2433
        %v2435 = vrot.slane %v2430, %v2434
        %v2441 = vunpack.c.l.b16 %v2425
        %v2442 = vunpack.c.l.b16 %v2426
        %v2443 = vunpack.c.l.b16 %v2427
        %v2444 = vunpack.c.l.b16 %v2428
        %v2445 = vpack.c.b16 %v2442, %v2441
        %v2446 = vpack.c.b16 %v2444, %v2443
        %2449 = vmatprep.subr.bf16.mxu0 0
        %2450 = vmatpush1.bf16.msra.mxu0 0
        %2451 = vmatprep.subr.bf16.mxu0 0
        %2452 = vmatpush1.bf16.msra.mxu0 0
        %2453 = vmatprep.subr.bf16.mxu0 0
        %2454 = vmatpush1.bf16.msra.mxu0 0
        %2455 = vmatprep.subr.bf16.mxu0 0
        %2456 = vmatpush1.bf16.msra.mxu0 0
        %2457 = vmatprep.subr.bf16.mxu0 0
        %2458 = vmatpush1.bf16.msra.mxu0 0
        %2459 = vmatprep.subr.bf16.mxu0 0
        %2460 = vmatpush1.bf16.msra.mxu0 0
        %2461 = vmatprep.subr.bf16.mxu0 0
        %2462 = vmatpush1.bf16.msra.mxu0 %v2446
        %2463 = vmatprep.subr.bf16.mxu0 0
        %2464 = vmatpush1.bf16.msra.mxu0 %v2445
        %2465 = vmatprep.subr.bf16.mxu0 0
        %2466 = vmatpush2.bf16.msra.mxu0 0
        %2467 = vmatprep.subr.bf16.mxu0 0
        %2468 = vmatpush2.bf16.msra.mxu0 0
        %2469 = vmatprep.subr.bf16.mxu0 0
        %2470 = vmatpush2.bf16.msra.mxu0 0
        %2471 = vmatprep.subr.bf16.mxu0 0
        %2472 = vmatpush2.bf16.msra.mxu0 0
        %2473 = vmatprep.subr.bf16.mxu0 0
        %2474 = vmatpush2.bf16.msra.mxu0 0
        %2475 = vmatprep.subr.bf16.mxu0 0
        %2476 = vmatpush2.bf16.msra.mxu0 0
        %2477 = vmatprep.subr.bf16.mxu0 0
        %2478 = vmatpush2.bf16.msra.mxu0 0
        %2479 = vmatprep.subr.bf16.mxu0 0
        %2480 = vmatpush2.bf16.msra.mxu0 0
        %2481 = vmatprep.mubr.bf16.mxu0 0
        %2482 = vmatmul.mubr.bf16.gmra.mxu0 %v910
        %v2483 = vpop.f32.mrf.mxu0
        %v2484 = vadd.f32 %v2435, %v2483
        %v2485 = vpop.f32.mrf.mxu0
        %v2486 = vpop.f32.mrf.mxu0
        %v2487 = vadd.f32 %v2435, %v2486
        %v2488 = vpop.f32.mrf.mxu0
        %2489 = vdwg.mxu0
        %v2490 = vpack.c.bf16 %v2356, %v2356
        %v2491 = vpack.c.bf16 %v2357, %v2357
        %v2492 = vpack.c.bf16 %v2418, %v2418
        %v2493 = vpack.c.bf16 %v2421, %v2421
        %v2494 = vpack.c.bf16 %v2484, %v2484
        %v2495 = vpack.c.bf16 %v2487, %v2487
        %v2497 = vsel %vm1101, %v2490, 0
        %v2500 = vsel %vm1101, %v2492, 0
        %2502 = vmatprep.subr.bf16.mxu0 0
        %2503 = vmatpush1.bf16.xpose.msra.mxu0 0
        %2504 = vmatprep.subr.bf16.mxu0 0
        %2505 = vmatpush1.bf16.xpose.msra.mxu0 0
        %2506 = vmatprep.subr.bf16.mxu0 0
        %2507 = vmatpush1.bf16.xpose.msra.mxu0 0
        %2508 = vmatprep.subr.bf16.mxu0 0
        %2509 = vmatpush1.bf16.xpose.msra.mxu0 0
        %2510 = vmatprep.subr.bf16.mxu0 0
        %2511 = vmatpush1.bf16.xpose.msra.mxu0 0
        %2512 = vmatprep.subr.bf16.mxu0 0
        %2513 = vmatpush1.bf16.xpose.msra.mxu0 0
        %2514 = vmatprep.subr.bf16.mxu0 0
        %2515 = vmatpush1.bf16.xpose.msra.mxu0 0
        %2516 = vmatprep.subr.bf16.mxu0 0
        %2517 = vmatpush1.bf16.xpose.msra.mxu0 %v2500
        %2518 = vmatprep.subr.bf16.mxu0 0
        %2519 = vmatpush2.bf16.xpose.msra.mxu0 0
        %2520 = vmatprep.subr.bf16.mxu0 0
        %2521 = vmatpush2.bf16.xpose.msra.mxu0 0
        %2522 = vmatprep.subr.bf16.mxu0 0
        %2523 = vmatpush2.bf16.xpose.msra.mxu0 0
        %2524 = vmatprep.subr.bf16.mxu0 0
        %2525 = vmatpush2.bf16.xpose.msra.mxu0 0
        %2526 = vmatprep.subr.bf16.mxu0 0
        %2527 = vmatpush2.bf16.xpose.msra.mxu0 0
        %2528 = vmatprep.subr.bf16.mxu0 0
        %2529 = vmatpush2.bf16.xpose.msra.mxu0 0
        %2530 = vmatprep.subr.bf16.mxu0 0
        %2531 = vmatpush2.bf16.xpose.msra.mxu0 0
        %2532 = vmatprep.subr.bf16.mxu0 0
        %2533 = vmatpush2.bf16.xpose.msra.mxu0 0
        %2534 = vmatprep.mubr.bf16.mxu0 0
        %2535 = vmatmul.mubr.bf16.gmra.mxu0 %v2497
        %v2536 = vpop.f32.mrf.mxu0
        %v2537 = vadd.f32 %v1094, %v2536
        %v2538 = vpop.f32.mrf.mxu0
        %v2539 = vpop.f32.mrf.mxu0
        %v2540 = vpop.f32.mrf.mxu0
        %2541 = vdwg.mxu0
        %v2543 = vsel %vm1101, %v2491, 0
        %v2546 = vsel %vm1101, %v2493, 0
        %2548 = vmatprep.subr.bf16.mxu0 0
        %2549 = vmatpush1.bf16.xpose.msra.mxu0 0
        %2550 = vmatprep.subr.bf16.mxu0 0
        %2551 = vmatpush1.bf16.xpose.msra.mxu0 0
        %2552 = vmatprep.subr.bf16.mxu0 0
        %2553 = vmatpush1.bf16.xpose.msra.mxu0 0
        %2554 = vmatprep.subr.bf16.mxu0 0
        %2555 = vmatpush1.bf16.xpose.msra.mxu0 0
        %2556 = vmatprep.subr.bf16.mxu0 0
        %2557 = vmatpush1.bf16.xpose.msra.mxu0 0
        %2558 = vmatprep.subr.bf16.mxu0 0
        %2559 = vmatpush1.bf16.xpose.msra.mxu0 0
        %2560 = vmatprep.subr.bf16.mxu0 0
        %2561 = vmatpush1.bf16.xpose.msra.mxu0 0
        %2562 = vmatprep.subr.bf16.mxu0 0
        %2563 = vmatpush1.bf16.xpose.msra.mxu0 %v2546
        %2564 = vmatprep.subr.bf16.mxu0 0
        %2565 = vmatpush2.bf16.xpose.msra.mxu0 0
        %2566 = vmatprep.subr.bf16.mxu0 0
        %2567 = vmatpush2.bf16.xpose.msra.mxu0 0
        %2568 = vmatprep.subr.bf16.mxu0 0
        %2569 = vmatpush2.bf16.xpose.msra.mxu0 0
        %2570 = vmatprep.subr.bf16.mxu0 0
        %2571 = vmatpush2.bf16.xpose.msra.mxu0 0
        %2572 = vmatprep.subr.bf16.mxu0 0
        %2573 = vmatpush2.bf16.xpose.msra.mxu0 0
        %2574 = vmatprep.subr.bf16.mxu0 0
        %2575 = vmatpush2.bf16.xpose.msra.mxu0 0
        %2576 = vmatprep.subr.bf16.mxu0 0
        %2577 = vmatpush2.bf16.xpose.msra.mxu0 0
        %2578 = vmatprep.subr.bf16.mxu0 0
        %2579 = vmatpush2.bf16.xpose.msra.mxu0 0
        %2580 = vmatprep.mubr.bf16.mxu0 0
        %2581 = vmatmul.mubr.bf16.gmra.mxu0 %v2543
        %v2582 = vpop.f32.mrf.mxu0
        %v2583 = vadd.f32 %v1098, %v2582
        %v2584 = vpop.f32.mrf.mxu0
        %v2585 = vpop.f32.mrf.mxu0
        %v2586 = vpop.f32.mrf.mxu0
        %2587 = vdwg.mxu0
        %v2588 = vsel %vm1101, %v2537, -inf
        %2589 = vmax.xlane.f32.xlu0 %v2588
        %v2590 = vpop.xlane.xlu0 %2589
        %v2591 = vsel %vm1101, %v2583, -inf
        %2592 = vmax.xlane.f32.xlu0 %v2591
        %v2593 = vpop.xlane.xlu0 %2592
        %v2594 = vsub.f32 %v2537, %v2590
        %v2595 = vsub.f32 %v2583, %v2593
        %v2596 = vmul.f32 %v2594, 1.442695
        %v2597 = vpow.pop %v2596
        %v2598 = vmul.f32 %v2595, 1.442695
        %v2599 = vpow.pop %v2598
        %v2600 = vsel %vm1101, %v2597, 0.0
        %2601 = vadd.xlane.f32.xlu0 %v2600
        %v2602 = vpop.xlane.xlu0 %2601
        %v2603 = vsel %vm1101, %v2599, 0.0
        %2604 = vadd.xlane.f32.xlu0 %v2603
        %v2605 = vpop.xlane.xlu0 %2604
        %v2606 = vrcp.pop %v2602
        %v2607 = vmul.f32 %v2597, %v2606
        %v2608 = vrcp.pop %v2605
        %v2609 = vmul.f32 %v2599, %v2608
        %v2610 = vpack.c.bf16 %v2607, %v2607
        %v2611 = vpack.c.bf16 %v2609, %v2609
        %v2613 = vsel %vm1101, %v2610, 0
        %v2616 = vsel %vm1221, %v2494, 0
        %2618 = vmatprep.subr.bf16.mxu0 0
        %2619 = vmatpush1.bf16.msra.mxu0 0
        %2620 = vmatprep.subr.bf16.mxu0 0
        %2621 = vmatpush1.bf16.msra.mxu0 0
        %2622 = vmatprep.subr.bf16.mxu0 0
        %2623 = vmatpush1.bf16.msra.mxu0 0
        %2624 = vmatprep.subr.bf16.mxu0 0
        %2625 = vmatpush1.bf16.msra.mxu0 0
        %2626 = vmatprep.subr.bf16.mxu0 0
        %2627 = vmatpush1.bf16.msra.mxu0 0
        %2628 = vmatprep.subr.bf16.mxu0 0
        %2629 = vmatpush1.bf16.msra.mxu0 0
        %2630 = vmatprep.subr.bf16.mxu0 0
        %2631 = vmatpush1.bf16.msra.mxu0 0
        %2632 = vmatprep.subr.bf16.mxu0 0
        %2633 = vmatpush1.bf16.msra.mxu0 %v2616
        %2634 = vmatprep.subr.bf16.mxu0 0
        %2635 = vmatpush2.bf16.msra.mxu0 0
        %2636 = vmatprep.subr.bf16.mxu0 0
        %2637 = vmatpush2.bf16.msra.mxu0 0
        %2638 = vmatprep.subr.bf16.mxu0 0
        %2639 = vmatpush2.bf16.msra.mxu0 0
        %2640 = vmatprep.subr.bf16.mxu0 0
        %2641 = vmatpush2.bf16.msra.mxu0 0
        %2642 = vmatprep.subr.bf16.mxu0 0
        %2643 = vmatpush2.bf16.msra.mxu0 0
        %2644 = vmatprep.subr.bf16.mxu0 0
        %2645 = vmatpush2.bf16.msra.mxu0 0
        %2646 = vmatprep.subr.bf16.mxu0 0
        %2647 = vmatpush2.bf16.msra.mxu0 0
        %2648 = vmatprep.subr.bf16.mxu0 0
        %2649 = vmatpush2.bf16.msra.mxu0 0
        %2650 = vmatprep.mubr.bf16.mxu0 0
        %2651 = vmatmul.mubr.bf16.gmra.mxu0 %v2613
        %v2652 = vpop.f32.mrf.mxu0
        %v2653 = vadd.f32 0.0, %v2652
        %v2654 = vpop.f32.mrf.mxu0
        %v2655 = vpop.f32.mrf.mxu0
        %v2656 = vpop.f32.mrf.mxu0
        %2657 = vdwg.mxu0
        %v2659 = vsel %vm1101, %v2611, 0
        %v2662 = vsel %vm1221, %v2495, 0
        %2664 = vmatprep.subr.bf16.mxu0 0
        %2665 = vmatpush1.bf16.msra.mxu0 0
        %2666 = vmatprep.subr.bf16.mxu0 0
        %2667 = vmatpush1.bf16.msra.mxu0 0
        %2668 = vmatprep.subr.bf16.mxu0 0
        %2669 = vmatpush1.bf16.msra.mxu0 0
        %2670 = vmatprep.subr.bf16.mxu0 0
        %2671 = vmatpush1.bf16.msra.mxu0 0
        %2672 = vmatprep.subr.bf16.mxu0 0
        %2673 = vmatpush1.bf16.msra.mxu0 0
        %2674 = vmatprep.subr.bf16.mxu0 0
        %2675 = vmatpush1.bf16.msra.mxu0 0
        %2676 = vmatprep.subr.bf16.mxu0 0
        %2677 = vmatpush1.bf16.msra.mxu0 0
        %2678 = vmatprep.subr.bf16.mxu0 0
        %2679 = vmatpush1.bf16.msra.mxu0 %v2662
        %2680 = vmatprep.subr.bf16.mxu0 0
        %2681 = vmatpush2.bf16.msra.mxu0 0
        %2682 = vmatprep.subr.bf16.mxu0 0
        %2683 = vmatpush2.bf16.msra.mxu0 0
        %2684 = vmatprep.subr.bf16.mxu0 0
        %2685 = vmatpush2.bf16.msra.mxu0 0
        %2686 = vmatprep.subr.bf16.mxu0 0
        %2687 = vmatpush2.bf16.msra.mxu0 0
        %2688 = vmatprep.subr.bf16.mxu0 0
        %2689 = vmatpush2.bf16.msra.mxu0 0
        %2690 = vmatprep.subr.bf16.mxu0 0
        %2691 = vmatpush2.bf16.msra.mxu0 0
        %2692 = vmatprep.subr.bf16.mxu0 0
        %2693 = vmatpush2.bf16.msra.mxu0 0
        %2694 = vmatprep.subr.bf16.mxu0 0
        %2695 = vmatpush2.bf16.msra.mxu0 0
        %2696 = vmatprep.mubr.bf16.mxu0 0
        %2697 = vmatmul.mubr.bf16.gmra.mxu0 %v2659
        %v2698 = vpop.f32.mrf.mxu0
        %v2699 = vadd.f32 0.0, %v2698
        %v2700 = vpop.f32.mrf.mxu0
        %v2701 = vpop.f32.mrf.mxu0
        %v2702 = vpop.f32.mrf.mxu0
        %2703 = vdwg.mxu0
        %v2704 = vpack.c.bf16 %v2699, %v2653
        %s2705 = scalar_lea.vmem %s837, 12
        %v2706 = vld [vmem:[%s2705] sm:$0xf]
        %v2708 = vsel %vm1101, %v2704, 0
        %v2711 = vsel %vm1221, %v2706, 0
        %2713 = vmatprep.subr.bf16.mxu0 0
        %2714 = vmatpush1.bf16.msra.mxu0 0
        %2715 = vmatprep.subr.bf16.mxu0 0
        %2716 = vmatpush1.bf16.msra.mxu0 0
        %2717 = vmatprep.subr.bf16.mxu0 0
        %2718 = vmatpush1.bf16.msra.mxu0 0
        %2719 = vmatprep.subr.bf16.mxu0 0
        %2720 = vmatpush1.bf16.msra.mxu0 0
        %2721 = vmatprep.subr.bf16.mxu0 0
        %2722 = vmatpush1.bf16.msra.mxu0 0
        %2723 = vmatprep.subr.bf16.mxu0 0
        %2724 = vmatpush1.bf16.msra.mxu0 0
        %2725 = vmatprep.subr.bf16.mxu0 0
        %2726 = vmatpush1.bf16.msra.mxu0 0
        %2727 = vmatprep.subr.bf16.mxu0 0
        %2728 = vmatpush1.bf16.msra.mxu0 %v2711
        %2729 = vmatprep.subr.bf16.mxu0 0
        %2730 = vmatpush2.bf16.msra.mxu0 0
        %2731 = vmatprep.subr.bf16.mxu0 0
        %2732 = vmatpush2.bf16.msra.mxu0 0
        %2733 = vmatprep.subr.bf16.mxu0 0
        %2734 = vmatpush2.bf16.msra.mxu0 0
        %2735 = vmatprep.subr.bf16.mxu0 0
        %2736 = vmatpush2.bf16.msra.mxu0 0
        %2737 = vmatprep.subr.bf16.mxu0 0
        %2738 = vmatpush2.bf16.msra.mxu0 0
        %2739 = vmatprep.subr.bf16.mxu0 0
        %2740 = vmatpush2.bf16.msra.mxu0 0
        %2741 = vmatprep.subr.bf16.mxu0 0
        %2742 = vmatpush2.bf16.msra.mxu0 0
        %2743 = vmatprep.subr.bf16.mxu0 0
        %2744 = vmatpush2.bf16.msra.mxu0 0
        %2745 = vmatprep.mubr.bf16.mxu0 0
        %2746 = vmatmul.mubr.bf16.gmra.mxu0 %v2708
        %v2747 = vpop.f32.mrf.mxu0
        %v2748 = vadd.f32 0.0, %v2747
        %v2749 = vpop.f32.mrf.mxu0
        %v2750 = vpop.f32.mrf.mxu0
        %v2751 = vadd.f32 0.0, %v2750
        %v2752 = vpop.f32.mrf.mxu0
        %2753 = vdwg.mxu0
        %v2754 = vadd.f32 %v2288, %v2748
        %v2755 = vadd.f32 %v2289, %v2751
        %v2756 = vld [vmem:[%s840] sm:$0x1]
        %v2758 = vlaneseq
        %v2759 = vshrl.u32 %v2758, 7
        %v2760 = vsub.s32 0, %v2759
        %v2761 = vrot.slane %v2756, %v2760
        %v2763 = vadd.f32 %v2754, %v2761
        %v2764 = vadd.f32 %v2755, %v2761
        %v2765 = vadd.f32 %v880, %v2763
        %v2766 = vadd.f32 %v881, %v2764
        %v2767 = vld [vmem:[%s843] sm:$0x1]
        %v2768 = vld [vmem:[%s846] sm:$0x1]
        %v2769 = vsel %vm908, %v2765, 0.0
        %2770 = vadd.xlane.f32.xlu0 %v2769
        %v2771 = vpop.xlane.xlu0 %2770
        %v2772 = vsel %vm908, %v2766, 0.0
        %2773 = vadd.xlane.f32.xlu0 %v2772
        %v2774 = vpop.xlane.xlu0 %2773
        %v2775 = vrcp.pop 32.0
        %v2776 = vmul.f32 %v2771, %v2775
        %v2777 = vmul.f32 %v2774, %v2775
        %v2778 = vsub.f32 %v2765, %v2776
        %v2779 = vsub.f32 %v2766, %v2777
        %v2780 = vmul.f32 %v2778, %v2778
        %v2781 = vmul.f32 %v2779, %v2779
        %v2782 = vsel %vm908, %v2780, 0.0
        %2783 = vadd.xlane.f32.xlu0 %v2782
        %v2784 = vpop.xlane.xlu0 %2783
        %v2785 = vsel %vm908, %v2781, 0.0
        %2786 = vadd.xlane.f32.xlu0 %v2785
        %v2787 = vpop.xlane.xlu0 %2786
        %v2788 = vmul.f32 %v2784, %v2775
        %v2789 = vmul.f32 %v2787, %v2775
        %v2790 = vadd.f32 %v2788, 1e-12
        %v2791 = vadd.f32 %v2789, 1e-12
        %v2792 = vrsqrt.pop %v2790
        %v2793 = vrsqrt.pop %v2791
        %v2794 = vmul.f32 %v2778, %v2792
        %v2795 = vmul.f32 %v2779, %v2793
        %v2797 = vlaneseq
        %v2798 = vshrl.u32 %v2797, 7
        %v2799 = vsub.s32 0, %v2798
        %v2800 = vrot.slane %v2767, %v2799
        %v2802 = vmul.f32 %v2794, %v2800
        %v2803 = vmul.f32 %v2795, %v2800
        %v2805 = vlaneseq
        %v2806 = vshrl.u32 %v2805, 7
        %v2807 = vsub.s32 0, %v2806
        %v2808 = vrot.slane %v2768, %v2807
        %v2810 = vadd.f32 %v2802, %v2808
        %v2811 = vadd.f32 %v2803, %v2808
        %v2812 = vpack.c.bf16 %v2811, %v2810
        %v2813 = vld [vmem:[%s851] sm:$0xf]
        %v2814 = vld [vmem:[%s851 + $0x4] sm:$0xf]
        %v2815 = vld [vmem:[%s851 + $0x8] sm:$0xf]
        %v2816 = vld [vmem:[%s851 + $0xc] sm:$0xf]
        %v2817 = vld [vmem:[%s854] sm:$0x1]
        %v2819 = vlaneseq
        %v2820 = vshrl.u32 %v2819, 7
        %v2821 = vsub.s32 0, %v2820
        %v2822 = vrot.slane %v2817, %v2821
        %v2828 = vunpack.c.l.b16 %v2813
        %v2829 = vunpack.c.l.b16 %v2814
        %v2830 = vunpack.c.l.b16 %v2815
        %v2831 = vunpack.c.l.b16 %v2816
        %v2832 = vpack.c.b16 %v2829, %v2828
        %v2833 = vpack.c.b16 %v2831, %v2830
        %v2837 = vsel %vm908, %v2812, 0
        %2839 = vmatprep.subr.bf16.mxu0 0
        %2840 = vmatpush1.bf16.msra.mxu0 0
        %2841 = vmatprep.subr.bf16.mxu0 0
        %2842 = vmatpush1.bf16.msra.mxu0 0
        %2843 = vmatprep.subr.bf16.mxu0 0
        %2844 = vmatpush1.bf16.msra.mxu0 0
        %2845 = vmatprep.subr.bf16.mxu0 0
        %2846 = vmatpush1.bf16.msra.mxu0 0
        %2847 = vmatprep.subr.bf16.mxu0 0
        %2848 = vmatpush1.bf16.msra.mxu0 0
        %2849 = vmatprep.subr.bf16.mxu0 0
        %2850 = vmatpush1.bf16.msra.mxu0 0
        %2851 = vmatprep.subr.bf16.mxu0 0
        %2852 = vmatpush1.bf16.msra.mxu0 %v2833
        %2853 = vmatprep.subr.bf16.mxu0 0
        %2854 = vmatpush1.bf16.msra.mxu0 %v2832
        %2855 = vmatprep.subr.bf16.mxu0 0
        %2856 = vmatpush2.bf16.msra.mxu0 0
        %2857 = vmatprep.subr.bf16.mxu0 0
        %2858 = vmatpush2.bf16.msra.mxu0 0
        %2859 = vmatprep.subr.bf16.mxu0 0
        %2860 = vmatpush2.bf16.msra.mxu0 0
        %2861 = vmatprep.subr.bf16.mxu0 0
        %2862 = vmatpush2.bf16.msra.mxu0 0
        %2863 = vmatprep.subr.bf16.mxu0 0
        %2864 = vmatpush2.bf16.msra.mxu0 0
        %2865 = vmatprep.subr.bf16.mxu0 0
        %2866 = vmatpush2.bf16.msra.mxu0 0
        %2867 = vmatprep.subr.bf16.mxu0 0
        %2868 = vmatpush2.bf16.msra.mxu0 0
        %2869 = vmatprep.subr.bf16.mxu0 0
        %2870 = vmatpush2.bf16.msra.mxu0 0
        %2871 = vmatprep.mubr.bf16.mxu0 0
        %2872 = vmatmul.mubr.bf16.gmra.mxu0 %v2837
        %v2873 = vpop.f32.mrf.mxu0
        %v2874 = vadd.f32 %v2822, %v2873
        %v2875 = vpop.f32.mrf.mxu0
        %v2876 = vpop.f32.mrf.mxu0
        %v2877 = vadd.f32 %v2822, %v2876
        %v2878 = vpop.f32.mrf.mxu0
        %2879 = vdwg.mxu0
        %v2880 = vmul.f32 %v2874, 0.5
        %v2881 = vmul.f32 %v2877, 0.5
        %v2882 = vmul.f32 %v2874, 0.70710677
        %v2883 = vmul.f32 %v2877, 0.70710677
        %v2884 = verf.f32.pop %v2882
        %v2885 = verf.f32.pop %v2883
        %v2886 = vadd.f32 %v2884, 1.0
        %v2887 = vadd.f32 %v2885, 1.0
        %v2888 = vmul.f32 %v2880, %v2886
        %v2889 = vmul.f32 %v2881, %v2887
        %v2890 = vpack.c.bf16 %v2889, %v2888
        %v2891 = vld [vmem:[%s859] sm:$0xf]
        %v2892 = vld [vmem:[%s859 + $0x4] sm:$0xf]
        %v2893 = vld [vmem:[%s859 + $0x8] sm:$0xf]
        %v2894 = vld [vmem:[%s859 + $0xc] sm:$0xf]
        %v2895 = vld [vmem:[%s859 + $0x10] sm:$0xf]
        %v2896 = vld [vmem:[%s859 + $0x14] sm:$0xf]
        %v2897 = vld [vmem:[%s859 + $0x18] sm:$0xf]
        %v2898 = vld [vmem:[%s859 + $0x1c] sm:$0xf]
        %v2899 = vld [vmem:[%s862] sm:$0x1]
        %v2901 = vlaneseq
        %v2902 = vshrl.u32 %v2901, 7
        %v2903 = vsub.s32 0, %v2902
        %v2904 = vrot.slane %v2899, %v2903
        %v2914 = vunpack.c.l.b16 %v2891
        %v2915 = vunpack.c.l.b16 %v2892
        %v2916 = vunpack.c.l.b16 %v2893
        %v2917 = vunpack.c.l.b16 %v2894
        %v2918 = vunpack.c.l.b16 %v2895
        %v2919 = vunpack.c.l.b16 %v2896
        %v2920 = vunpack.c.l.b16 %v2897
        %v2921 = vunpack.c.l.b16 %v2898
        %v2922 = vpack.c.b16 %v2915, %v2914
        %v2923 = vpack.c.b16 %v2917, %v2916
        %v2924 = vpack.c.b16 %v2919, %v2918
        %v2925 = vpack.c.b16 %v2921, %v2920
        %vm2930 = vcmask 523264
        %v2932 = vsel %vm2930, %v2890, 0
        %2934 = vmatprep.subr.bf16.mxu0 0
        %2935 = vmatpush1.bf16.msra.mxu0 0
        %2936 = vmatprep.subr.bf16.mxu0 0
        %2937 = vmatpush1.bf16.msra.mxu0 0
        %2938 = vmatprep.subr.bf16.mxu0 0
        %2939 = vmatpush1.bf16.msra.mxu0 0
        %2940 = vmatprep.subr.bf16.mxu0 0
        %2941 = vmatpush1.bf16.msra.mxu0 0
        %2942 = vmatprep.subr.bf16.mxu0 0
        %2943 = vmatpush1.bf16.msra.mxu0 %v2925
        %2944 = vmatprep.subr.bf16.mxu0 0
        %2945 = vmatpush1.bf16.msra.mxu0 %v2924
        %2946 = vmatprep.subr.bf16.mxu0 0
        %2947 = vmatpush1.bf16.msra.mxu0 %v2923
        %2948 = vmatprep.subr.bf16.mxu0 0
        %2949 = vmatpush1.bf16.msra.mxu0 %v2922
        %2950 = vmatprep.subr.bf16.mxu0 0
        %2951 = vmatpush2.bf16.msra.mxu0 0
        %2952 = vmatprep.subr.bf16.mxu0 0
        %2953 = vmatpush2.bf16.msra.mxu0 0
        %2954 = vmatprep.subr.bf16.mxu0 0
        %2955 = vmatpush2.bf16.msra.mxu0 0
        %2956 = vmatprep.subr.bf16.mxu0 0
        %2957 = vmatpush2.bf16.msra.mxu0 0
        %2958 = vmatprep.subr.bf16.mxu0 0
        %2959 = vmatpush2.bf16.msra.mxu0 0
        %2960 = vmatprep.subr.bf16.mxu0 0
        %2961 = vmatpush2.bf16.msra.mxu0 0
        %2962 = vmatprep.subr.bf16.mxu0 0
        %2963 = vmatpush2.bf16.msra.mxu0 0
        %2964 = vmatprep.subr.bf16.mxu0 0
        %2965 = vmatpush2.bf16.msra.mxu0 0
        %2966 = vmatprep.mubr.bf16.mxu0 0
        %2967 = vmatmul.mubr.bf16.gmra.mxu0 %v2932
        %v2968 = vpop.f32.mrf.mxu0
        %v2969 = vadd.f32 %v2904, %v2968
        %v2970 = vpop.f32.mrf.mxu0
        %v2971 = vpop.f32.mrf.mxu0
        %v2972 = vadd.f32 %v2904, %v2971
        %v2973 = vpop.f32.mrf.mxu0
        %2974 = vdwg.mxu0
        %v2975 = vadd.f32 %v2810, %v2969
        %v2976 = vadd.f32 %v2811, %v2972
        %v2977 = vld [vmem:[%s865] sm:$0x1]
        %v2978 = vld [vmem:[%s868] sm:$0x1]
        %v2979 = vsel %vm908, %v2975, 0.0
        %2980 = vadd.xlane.f32.xlu0 %v2979
        %v2981 = vpop.xlane.xlu0 %2980
        %v2982 = vsel %vm908, %v2976, 0.0
        %2983 = vadd.xlane.f32.xlu0 %v2982
        %v2984 = vpop.xlane.xlu0 %2983
        %v2985 = vmul.f32 %v2981, %v2775
        %v2986 = vmul.f32 %v2984, %v2775
        %v2987 = vsub.f32 %v2975, %v2985
        %v2988 = vsub.f32 %v2976, %v2986
        %v2989 = vmul.f32 %v2987, %v2987
        %v2990 = vmul.f32 %v2988, %v2988
        %v2991 = vsel %vm908, %v2989, 0.0
        %2992 = vadd.xlane.f32.xlu0 %v2991
        %v2993 = vpop.xlane.xlu0 %2992
        %v2994 = vsel %vm908, %v2990, 0.0
        %2995 = vadd.xlane.f32.xlu0 %v2994
        %v2996 = vpop.xlane.xlu0 %2995
        %v2997 = vmul.f32 %v2993, %v2775
        %v2998 = vmul.f32 %v2996, %v2775
        %v2999 = vadd.f32 %v2997, 1e-12
        %v3000 = vadd.f32 %v2998, 1e-12
        %v3001 = vrsqrt.pop %v2999
        %v3002 = vrsqrt.pop %v3000
        %v3003 = vmul.f32 %v2987, %v3001
        %v3004 = vmul.f32 %v2988, %v3002
        %v3006 = vlaneseq
        %v3007 = vshrl.u32 %v3006, 7
        %v3008 = vsub.s32 0, %v3007
        %v3009 = vrot.slane %v2977, %v3008
        %v3011 = vmul.f32 %v3003, %v3009
        %v3012 = vmul.f32 %v3004, %v3009
        %v3014 = vlaneseq
        %v3015 = vshrl.u32 %v3014, 7
        %v3016 = vsub.s32 0, %v3015
        %v3017 = vrot.slane %v2978, %v3016
        %v3019 = vadd.f32 %v3011, %v3017
        %v3020 = vadd.f32 %v3012, %v3017
        %3021 = vst.msk [vmem:[#allocation2] sm:$0xff] %vm908, %v3019
        %3022 = vst.msk [vmem:[#allocation2 + $0x8] sm:$0xff] %vm908, %v3020
        // Predicated region
        $region97: #{tpu_custom_call.1} parent=91 // pred_check
          %p3023 = pneg %p528
        $region98: #{tpu_custom_call.1} parent=91 // pred_check_branch
          %3025 = sbr.rel (%p3023) target = $region100
        $region99: #{tpu_custom_call.1} parent=91 // pred_region
          %s3026 = smul.u32 2, %s34
          %s3028 = ssub.s32 256, 256
          %3029 = vsyncadd [#allocation3], %s3028
          %s3030 = smul.addr %s3026, 128
          %s3031 = scalar_lea.hbm %s18, %s3030
          %s3032 = sshll.u32 [#allocation2], 4
          %s3033 = int_to_ptr.vmem [resolvable:$true] %s3032
          %3038 = dma.vmem_to_hbm [thread:$0]  %s3033, 256, %s3031, [#allocation3], 128, 128, 8
        $region100: #{tpu_custom_call.1} parent=91 // pred_fallthru
          _
        // Predicated region
        $region101: #{tpu_custom_call.1} parent=91 // pred_check
          %p3039 = pneg %p528
        $region102: #{tpu_custom_call.1} parent=91 // pred_check_branch
          %3041 = sbr.rel (%p3039) target = $region104
        $region103: #{tpu_custom_call.1} parent=91 // pred_region
          %3042 = dma.done [#allocation3], 256
        $region104: #{tpu_custom_call.1} parent=91 // pred_fallthru
          _
      $region92: #{tpu_custom_call.1} parent=5 // pred_fallthru
        _
      %p3043 = scmp.le.s32.totalorder 2, %s25
      // Predicated region
      $region105: #{tpu_custom_call.1} parent=5 // pred_check
        %p3044 = pneg %p3043
      $region106: #{tpu_custom_call.1} parent=5 // pred_check_branch
        %3046 = sbr.rel (%p3044) target = $region108
      $region107: #{tpu_custom_call.1} parent=5 // pred_region
        %s3047 = ssub.s32 %s25, 2
      $region108: #{tpu_custom_call.1} parent=5 // pred_fallthru
        _
    $region6: #{tpu_custom_call.1} parent=1 // loop_footer
      %s29 = sadd.s32 1, %s25
    $region7: #{tpu_custom_call.1} parent=1 // loop_footer_branch
      %24 = sbr.rel target = $region3
    $region8: #{tpu_custom_call.1} parent=1 // loop_exit
      _
    %3048 = vsyncpa [#allocation3], 1
    %s3049 = scalar_lea.sflag [#allocation3], 1
    %3050 = vsyncpa %s3049, 1

</llo_original>
